<compile_context>
chip_gen: v7x
topology: tpu7x:2x2x1
jax: 0.10.0
libtpu: 0.0.40
codegen_flags: <defaults>
</compile_context>

<pallas_src>
import jax
import jax.numpy as jnp
from jax.experimental import pallas as pl
from jax.experimental.pallas import tpu as pltpu

INNN = 10
DIM = 96
HID = 96
SCALE = 1.5
HID2 = int(HID * SCALE)   # 144
NBLOCKS = 4               # mlpb / mlpc / mlpd / mlpe inside each Resblock
NRES = 4                  # Resblocks (mlp0..mlp3)
NGRID = 2                 # grid steps (megacore-parallel on v7x)
GROUP = 2                 # Resblocks interleaved per grid step
EPS = 1e-5                # nn.LayerNorm default eps

# packed-vector-table row layout (per Resblock, width 96):
#   row 0..2            : a_b, a_g, a_be            (mlpa bias / LN gain / LN beta)
#   rows 3+6i .. 3+6i+5 : bb1, bg1, bbe1, bb3, bg3, bbe3   for block i
#   row 27              : mr_b2                     (midres second bias)
#   row 28              : md_b1                     (mid first bias)
NV96 = 3 + 6 * NBLOCKS + 2          # 29
# width-144 table: rows 3i, 3i+1, 3i+2 : bb2, bg2, bbe2 for block i
NV144 = 3 * NBLOCKS                 # 12


def _relu(x):
    return jnp.maximum(x, 0.0)


def _layernorm(x, g, b):
    mu = jnp.mean(x, axis=-1, keepdims=True)
    var = jnp.mean((x - mu) ** 2, axis=-1, keepdims=True)
    return (x - mu) * jax.lax.rsqrt(var + EPS) * g + b


# --------------------------- fused kernel ---------------------------

def dora_kernel(x_ref, a_w, bw1, bw2, bw3, mr_w1, mr_w2, md_w1, md_w2,
                v96, v144, mr_b1, md_b2, out_ref):
    # kernel views (per grid step, G = GROUP = 2):
    #   x_ref   (G, B, INNN)
    #   a_w     (G, INNN, DIM)
    #   bw1/2/3 (NBLOCKS, G, K, N)         <- block index is leading
    #   mr_w1   (G, DIM, DIM//2)   mr_w2 (G, DIM//2, DIM)
    #   md_w1   (G, DIM, DIM)      md_w2 (G, DIM, 1)
    #   v96     (G, NV96, 96)      v144  (G, NV144, 144)
    #   mr_b1   (G, 1, DIM//2)     md_b2 (G, 1, 1)
    #   out_ref (G, B, 1)

    def mm(a, w):   # (G,B,K) @ (G,K,N) -> (G,B,N), f32 accumulation on the MXU
        return jnp.einsum('gbk,gkn->gbn', a, w,
                          preferred_element_type=jnp.float32)

    def r96(r):     # (G, 1, 96) packed-vector row
        return v96[:, r:r + 1, :]

    def r144(r):    # (G, 1, 144) packed-vector row
        return v144[:, r:r + 1, :]

    x = x_ref[...]

    # mlpa: Linear -> LayerNorm -> ReLU
    h = _relu(_layernorm(mm(x, a_w[...]) + r96(0), r96(1), r96(2)))

    # mlpb..mlpe:  h = relu(h + mlp(h))
    for i in range(NBLOCKS):
        b96 = 3 + 6 * i
        b144 = 3 * i
        t = _relu(_layernorm(mm(h, bw1[i]) + r96(b96 + 0),
                             r96(b96 + 1), r96(b96 + 2)))
        t = _relu(_layernorm(mm(t, bw2[i]) + r144(b144 + 0),
                             r144(b144 + 1), r144(b144 + 2)))
        t = _layernorm(mm(t, bw3[i]) + r96(b96 + 3),
                       r96(b96 + 4), r96(b96 + 5))
        h = _relu(h + t)

    # midres + residual + relu
    mr = _relu(mm(h, mr_w1[...]) + mr_b1[...])
    mr = mm(mr, mr_w2[...]) + r96(27)          # + mr_b2
    y = _relu(h + mr)

    # mid: Linear -> ReLU -> Linear(dim, 1)
    y = _relu(mm(y, md_w1[...]) + r96(28))     # + md_b1
    out_ref[...] = mm(y, md_w2[...]) + md_b2[...]


def dora_forward(finalpos, packed):
    """finalpos: (B, 4, INNN) f32 -> (B, 4) f32.  Single fused pallas_call."""
    B = finalpos.shape[0]
    # (B, 4, INNN) -> (NGRID, GROUP, B, INNN); resblock r -> (r//2, r%2)
    x = jnp.transpose(finalpos, (1, 0, 2)).reshape(NGRID, GROUP, B, INNN)

    def spec(p):
        nd = p.ndim
        return pl.BlockSpec((None,) + tuple(p.shape[1:]),
                            lambda i, _nd=nd: (i,) + (0,) * (_nd - 1))

    out = pl.pallas_call(
        dora_kernel,
        out_shape=jax.ShapeDtypeStruct((NRES, B, 1), jnp.float32),
        grid=(NGRID,),
        in_specs=[spec(a) for a in (x, *packed)],
        out_specs=pl.BlockSpec((GROUP, B, 1), lambda i: (i, 0, 0)),
        compiler_params=pltpu.CompilerParams(
            dimension_semantics=("parallel",)),   # megacore split on v7x
    )(x, *packed)
    return out[:, :, 0].T    # (B, 4), column r = Resblock r (torch.cat order)


# ---------------- deterministic parameter construction ----------------

def _init_linear(key, fan_in, fan_out):
    kw, kb = jax.random.split(key)
    lim = 1.0 / float(fan_in) ** 0.5
    w = jax.random.uniform(kw, (fan_in, fan_out), jnp.float32, -lim, lim)
    b = jax.random.uniform(kb, (1, fan_out), jnp.float32, -lim, lim)
    return w, b


def make_resblock_params(key):
    keys = jax.random.split(key, 17)
    ki = iter(keys)

    a_w, a_b = _init_linear(next(ki), INNN, DIM)
    a_g = jnp.ones((1, DIM), jnp.float32)
    a_be = jnp.zeros((1, DIM), jnp.float32)

    w1s, b1s, w2s, b2s, w3s, b3s = [], [], [], [], [], []
    for _ in range(NBLOCKS):
        w1, b1 = _init_linear(next(ki), DIM, HID)
        w2, b2 = _init_linear(next(ki), HID, HID2)
        w3, b3 = _init_linear(next(ki), HID2, DIM)
        w1s.append(w1); b1s.append(b1)
        w2s.append(w2); b2s.append(b2)
        w3s.append(w3); b3s.append(b3)
    bw1 = jnp.stack(w1s); bb1 = jnp.stack(b1s)
    bw2 = jnp.stack(w2s); bb2 = jnp.stack(b2s)
    bw3 = jnp.stack(w3s); bb3 = jnp.stack(b3s)
    bg1 = jnp.ones((NBLOCKS, 1, HID), jnp.float32)
    bbe1 = jnp.zeros((NBLOCKS, 1, HID), jnp.float32)
    bg2 = jnp.ones((NBLOCKS, 1, HID2), jnp.float32)
    bbe2 = jnp.zeros((NBLOCKS, 1, HID2), jnp.float32)
    bg3 = jnp.ones((NBLOCKS, 1, DIM), jnp.float32)
    bbe3 = jnp.zeros((NBLOCKS, 1, DIM), jnp.float32)

    mr_w1, mr_b1 = _init_linear(next(ki), DIM, DIM // 2)
    mr_w2, mr_b2 = _init_linear(next(ki), DIM // 2, DIM)

    md_w1, md_b1 = _init_linear(next(ki), DIM, DIM)
    md_w2, md_b2 = _init_linear(next(ki), DIM, 1)

    return [
        a_w, a_b, a_g, a_be,        # 0..3
        bw1, bb1, bg1, bbe1,        # 4..7
        bw2, bb2, bg2, bbe2,        # 8..11
        bw3, bb3, bg3, bbe3,        # 12..15
        mr_w1, mr_b1, mr_w2, mr_b2,  # 16..19
        md_w1, md_b1, md_w2, md_b2,  # 20..23
    ]


def pack_params(all_params):
    """Stack the 4 Resblocks' params and pack small vectors into tables."""
    def stk(idx):
        return jnp.stack([p[idx] for p in all_params])   # leading axis = 4

    def grp(a):
        return a.reshape(NGRID, GROUP, *a.shape[1:])

    def grp_blocked(a):
        # (4res, NBLOCKS, K, N) -> (NGRID, NBLOCKS, GROUP, K, N)
        a = a.reshape(NGRID, GROUP, *a.shape[1:])
        return jnp.transpose(a, (0, 2, 1, 3, 4))

    a_w = grp(stk(0))
    bw1 = grp_blocked(stk(4))
    bw2 = grp_blocked(stk(8))
    bw3 = grp_blocked(stk(12))
    mr_w1 = grp(stk(16)); mr_w2 = grp(stk(18))
    md_w1 = grp(stk(20)); md_w2 = grp(stk(22))
    mr_b1 = grp(stk(17))
    md_b2 = grp(stk(23))

    # width-96 vector table
    rows96 = [stk(1), stk(2), stk(3)]                       # a_b, a_g, a_be
    bb1, bg1, bbe1 = stk(5), stk(6), stk(7)
    bb3, bg3, bbe3 = stk(13), stk(14), stk(15)
    for i in range(NBLOCKS):
        rows96 += [bb1[:, i], bg1[:, i], bbe1[:, i],
                   bb3[:, i], bg3[:, i], bbe3[:, i]]
    rows96 += [stk(19), stk(21)]                            # mr_b2, md_b1
    vec96 = grp(jnp.concatenate(rows96, axis=1))            # (2,2,29,96)

    # width-144 vector table
    bb2, bg2, bbe2 = stk(9), stk(10), stk(11)
    rows144 = []
    for i in range(NBLOCKS):
        rows144 += [bb2[:, i], bg2[:, i], bbe2[:, i]]
    vec144 = grp(jnp.concatenate(rows144, axis=1))          # (2,2,12,144)

    return [a_w, bw1, bw2, bw3, mr_w1, mr_w2, md_w1, md_w2,
            vec96, vec144, mr_b1, md_b2]


# ---------------- pure-JAX reference (for correctness check) ----------------

def resblock_ref(x, params):
    (a_w, a_b, a_g, a_be,
     bw1, bb1, bg1, bbe1,
     bw2, bb2, bg2, bbe2,
     bw3, bb3, bg3, bbe3,
     mr_w1, mr_b1, mr_w2, mr_b2,
     md_w1, md_b1, md_w2, md_b2) = params
    h = _relu(_layernorm(x @ a_w + a_b, a_g, a_be))
    for i in range(NBLOCKS):
        t = _relu(_layernorm(h @ bw1[i] + bb1[i], bg1[i], bbe1[i]))
        t = _relu(_layernorm(t @ bw2[i] + bb2[i], bg2[i], bbe2[i]))
        t = _layernorm(t @ bw3[i] + bb3[i], bg3[i], bbe3[i])
        h = _relu(h + t)
    mr = _relu(h @ mr_w1 + mr_b1) @ mr_w2 + mr_b2
    y = _relu(h + mr)
    y = _relu(y @ md_w1 + md_b1)
    return y @ md_w2 + md_b2


if __name__ == "__main__":
    key = jax.random.PRNGKey(0)
    kx, k0, k1, k2, k3 = jax.random.split(key, 5)

    B = 8
    finalpos = jax.random.normal(kx, (B, NRES, INNN), jnp.float32)
    all_params = [make_resblock_params(k) for k in (k0, k1, k2, k3)]
    packed = pack_params(all_params)

    fwd = jax.jit(dora_forward)
    pathloss = fwd(finalpos, packed)
    jax.block_until_ready(pathloss)
    assert pathloss.shape == (B, NRES), pathloss.shape

    ref = jnp.concatenate(
        [resblock_ref(finalpos[:, i, :], all_params[i]) for i in range(NRES)],
        axis=1,
    )
    assert jnp.allclose(pathloss, ref, atol=2e-4, rtol=2e-4), (
        "mismatch vs reference")

    print("KERNEL_OK")
</pallas_src>

<mosaic_0001>
module attributes {stable_mosaic.version = 11 : i64} {
  func.func @dora_kernel(%arg0: i32, %arg1: memref<1x2x8x10xf32, #tpu.memory_space<vmem>>, %arg2: memref<1x2x10x96xf32, #tpu.memory_space<vmem>>, %arg3: memref<1x4x2x96x96xf32, #tpu.memory_space<vmem>>, %arg4: memref<1x4x2x96x144xf32, #tpu.memory_space<vmem>>, %arg5: memref<1x4x2x144x96xf32, #tpu.memory_space<vmem>>, %arg6: memref<1x2x96x48xf32, #tpu.memory_space<vmem>>, %arg7: memref<1x2x48x96xf32, #tpu.memory_space<vmem>>, %arg8: memref<1x2x96x96xf32, #tpu.memory_space<vmem>>, %arg9: memref<1x2x96x1xf32, #tpu.memory_space<vmem>>, %arg10: memref<1x2x29x96xf32, #tpu.memory_space<vmem>>, %arg11: memref<1x2x12x144xf32, #tpu.memory_space<vmem>>, %arg12: memref<1x2x1x48xf32, #tpu.memory_space<vmem>>, %arg13: memref<1x2x1x1xf32, #tpu.memory_space<vmem>>, %arg14: memref<2x8x1xf32, #tpu.memory_space<vmem>>) attributes {dimension_semantics = [#tpu.dimension_semantics<parallel>], iteration_bounds = array<i64: 2>, scalar_prefetch = 0 : i64, scratch_operands = 0 : i64, tpu.core_type = #tpu.core_type<tc>, window_params = [{transform_indices = @transform_0, window_bounds = array<i64: 1, 2, 8, 10>}, {transform_indices = @transform_1, window_bounds = array<i64: 1, 2, 10, 96>}, {transform_indices = @transform_2, window_bounds = array<i64: 1, 4, 2, 96, 96>}, {transform_indices = @transform_3, window_bounds = array<i64: 1, 4, 2, 96, 144>}, {transform_indices = @transform_4, window_bounds = array<i64: 1, 4, 2, 144, 96>}, {transform_indices = @transform_5, window_bounds = array<i64: 1, 2, 96, 48>}, {transform_indices = @transform_6, window_bounds = array<i64: 1, 2, 48, 96>}, {transform_indices = @transform_7, window_bounds = array<i64: 1, 2, 96, 96>}, {transform_indices = @transform_8, window_bounds = array<i64: 1, 2, 96, 1>}, {transform_indices = @transform_9, window_bounds = array<i64: 1, 2, 29, 96>}, {transform_indices = @transform_10, window_bounds = array<i64: 1, 2, 12, 144>}, {transform_indices = @transform_11, window_bounds = array<i64: 1, 2, 1, 48>}, {transform_indices = @transform_12, window_bounds = array<i64: 1, 2, 1, 1>}, {transform_indices = @transform_13, window_bounds = array<i64: 2, 8, 1>}]} {
    %c0 = arith.constant 0 : index
    %c0_0 = arith.constant 0 : index
    %c0_1 = arith.constant 0 : index
    %c0_2 = arith.constant 0 : index
    %0 = vector.load %arg1[%c0, %c0_0, %c0_1, %c0_2] : memref<1x2x8x10xf32, #tpu.memory_space<vmem>>, vector<1x2x8x10xf32>
    %1 = vector.shape_cast %0 : vector<1x2x8x10xf32> to vector<2x8x10xf32>
    %c0_3 = arith.constant 0 : index
    %c0_4 = arith.constant 0 : index
    %c0_5 = arith.constant 0 : index
    %c0_6 = arith.constant 0 : index
    %2 = vector.load %arg2[%c0_3, %c0_4, %c0_5, %c0_6] : memref<1x2x10x96xf32, #tpu.memory_space<vmem>>, vector<1x2x10x96xf32>
    %3 = vector.shape_cast %2 : vector<1x2x10x96xf32> to vector<2x10x96xf32>
    "tpu.trace_start"() <{level = 10 : i32, message = "gbk,gkn->gbn"}> : () -> ()
    %cst = arith.constant dense<0.000000e+00> : vector<2x8x96xf32>
    %4 = tpu.matmul %1, %3, %cst {dimension_numbers = #tpu.dot_dimension_numbers<[2], [1], [1], [2], [0, 0, 0, 1, 1, 2], [0], [0]>} : vector<2x8x10xf32>, vector<2x10x96xf32>, vector<2x8x96xf32> -> vector<2x8x96xf32>
    "tpu.trace_stop"() : () -> ()
    %c0_7 = arith.constant 0 : index
    %c0_8 = arith.constant 0 : index
    %c0_9 = arith.constant 0 : index
    %c0_10 = arith.constant 0 : index
    %5 = vector.load %arg10[%c0_7, %c0_8, %c0_9, %c0_10] : memref<1x2x29x96xf32, #tpu.memory_space<vmem>>, vector<1x2x1x96xf32>
    %6 = vector.shape_cast %5 : vector<1x2x1x96xf32> to vector<2x1x96xf32>
    %7 = vector.broadcast %6 : vector<2x1x96xf32> to vector<2x8x96xf32>
    %8 = arith.addf %4, %7 : vector<2x8x96xf32>
    %c0_11 = arith.constant 0 : index
    %c0_12 = arith.constant 0 : index
    %c1 = arith.constant 1 : index
    %c0_13 = arith.constant 0 : index
    %9 = vector.load %arg10[%c0_11, %c0_12, %c1, %c0_13] : memref<1x2x29x96xf32, #tpu.memory_space<vmem>>, vector<1x2x1x96xf32>
    %10 = vector.shape_cast %9 : vector<1x2x1x96xf32> to vector<2x1x96xf32>
    %c0_14 = arith.constant 0 : index
    %c0_15 = arith.constant 0 : index
    %c2 = arith.constant 2 : index
    %c0_16 = arith.constant 0 : index
    %11 = vector.load %arg10[%c0_14, %c0_15, %c2, %c0_16] : memref<1x2x29x96xf32, #tpu.memory_space<vmem>>, vector<1x2x1x96xf32>
    %12 = vector.shape_cast %11 : vector<1x2x1x96xf32> to vector<2x1x96xf32>
    %cst_17 = arith.constant dense<0.000000e+00> : vector<2x8xf32>
    %13 = vector.multi_reduction <add>, %8, %cst_17 [2] : vector<2x8x96xf32> to vector<2x8xf32>
    %14 = vector.shape_cast %13 : vector<2x8xf32> to vector<2x8x1xf32>
    %cst_18 = arith.constant 9.600000e+01 : f32
    %15 = vector.broadcast %cst_18 : f32 to vector<2x8x1xf32>
    %16 = arith.divf %14, %15 : vector<2x8x1xf32>
    %17 = vector.broadcast %16 : vector<2x8x1xf32> to vector<2x8x96xf32>
    %18 = arith.subf %8, %17 : vector<2x8x96xf32>
    %19 = arith.mulf %18, %18 : vector<2x8x96xf32>
    %cst_19 = arith.constant dense<0.000000e+00> : vector<2x8xf32>
    %20 = vector.multi_reduction <add>, %19, %cst_19 [2] : vector<2x8x96xf32> to vector<2x8xf32>
    %21 = vector.shape_cast %20 : vector<2x8xf32> to vector<2x8x1xf32>
    %cst_20 = arith.constant 9.600000e+01 : f32
    %22 = vector.broadcast %cst_20 : f32 to vector<2x8x1xf32>
    %23 = arith.divf %21, %22 : vector<2x8x1xf32>
    %24 = vector.broadcast %16 : vector<2x8x1xf32> to vector<2x8x96xf32>
    %25 = arith.subf %8, %24 : vector<2x8x96xf32>
    %cst_21 = arith.constant 9.99999974E-6 : f32
    %26 = vector.broadcast %cst_21 : f32 to vector<2x8x1xf32>
    %27 = arith.addf %23, %26 : vector<2x8x1xf32>
    %28 = math.rsqrt %27 : vector<2x8x1xf32>
    %29 = vector.broadcast %28 : vector<2x8x1xf32> to vector<2x8x96xf32>
    %30 = arith.mulf %25, %29 : vector<2x8x96xf32>
    %31 = vector.broadcast %10 : vector<2x1x96xf32> to vector<2x8x96xf32>
    %32 = arith.mulf %30, %31 : vector<2x8x96xf32>
    %33 = vector.broadcast %12 : vector<2x1x96xf32> to vector<2x8x96xf32>
    %34 = arith.addf %32, %33 : vector<2x8x96xf32>
    %cst_22 = arith.constant 0.000000e+00 : f32
    %35 = vector.broadcast %cst_22 : f32 to vector<2x8x96xf32>
    %36 = arith.maximumf %34, %35 : vector<2x8x96xf32>
    %c0_23 = arith.constant 0 : index
    %c0_24 = arith.constant 0 : index
    %c0_25 = arith.constant 0 : index
    %c0_26 = arith.constant 0 : index
    %c0_27 = arith.constant 0 : index
    %37 = vector.load %arg3[%c0_23, %c0_24, %c0_25, %c0_26, %c0_27] : memref<1x4x2x96x96xf32, #tpu.memory_space<vmem>>, vector<1x1x2x96x96xf32>
    %38 = vector.shape_cast %37 : vector<1x1x2x96x96xf32> to vector<2x96x96xf32>
    "tpu.trace_start"() <{level = 10 : i32, message = "gbk,gkn->gbn"}> : () -> ()
    %cst_28 = arith.constant dense<0.000000e+00> : vector<2x8x96xf32>
    %39 = tpu.matmul %36, %38, %cst_28 {dimension_numbers = #tpu.dot_dimension_numbers<[2], [1], [1], [2], [0, 0, 0, 1, 1, 2], [0], [0]>} : vector<2x8x96xf32>, vector<2x96x96xf32>, vector<2x8x96xf32> -> vector<2x8x96xf32>
    "tpu.trace_stop"() : () -> ()
    %c0_29 = arith.constant 0 : index
    %c0_30 = arith.constant 0 : index
    %c3 = arith.constant 3 : index
    %c0_31 = arith.constant 0 : index
    %40 = vector.load %arg10[%c0_29, %c0_30, %c3, %c0_31] : memref<1x2x29x96xf32, #tpu.memory_space<vmem>>, vector<1x2x1x96xf32>
    %41 = vector.shape_cast %40 : vector<1x2x1x96xf32> to vector<2x1x96xf32>
    %42 = vector.broadcast %41 : vector<2x1x96xf32> to vector<2x8x96xf32>
    %43 = arith.addf %39, %42 : vector<2x8x96xf32>
    %c0_32 = arith.constant 0 : index
    %c0_33 = arith.constant 0 : index
    %c4 = arith.constant 4 : index
    %c0_34 = arith.constant 0 : index
    %44 = vector.load %arg10[%c0_32, %c0_33, %c4, %c0_34] : memref<1x2x29x96xf32, #tpu.memory_space<vmem>>, vector<1x2x1x96xf32>
    %45 = vector.shape_cast %44 : vector<1x2x1x96xf32> to vector<2x1x96xf32>
    %c0_35 = arith.constant 0 : index
    %c0_36 = arith.constant 0 : index
    %c5 = arith.constant 5 : index
    %c0_37 = arith.constant 0 : index
    %46 = vector.load %arg10[%c0_35, %c0_36, %c5, %c0_37] : memref<1x2x29x96xf32, #tpu.memory_space<vmem>>, vector<1x2x1x96xf32>
    %47 = vector.shape_cast %46 : vector<1x2x1x96xf32> to vector<2x1x96xf32>
    %cst_38 = arith.constant dense<0.000000e+00> : vector<2x8xf32>
    %48 = vector.multi_reduction <add>, %43, %cst_38 [2] : vector<2x8x96xf32> to vector<2x8xf32>
    %49 = vector.shape_cast %48 : vector<2x8xf32> to vector<2x8x1xf32>
    %cst_39 = arith.constant 9.600000e+01 : f32
    %50 = vector.broadcast %cst_39 : f32 to vector<2x8x1xf32>
    %51 = arith.divf %49, %50 : vector<2x8x1xf32>
    %52 = vector.broadcast %51 : vector<2x8x1xf32> to vector<2x8x96xf32>
    %53 = arith.subf %43, %52 : vector<2x8x96xf32>
    %54 = arith.mulf %53, %53 : vector<2x8x96xf32>
    %cst_40 = arith.constant dense<0.000000e+00> : vector<2x8xf32>
    %55 = vector.multi_reduction <add>, %54, %cst_40 [2] : vector<2x8x96xf32> to vector<2x8xf32>
    %56 = vector.shape_cast %55 : vector<2x8xf32> to vector<2x8x1xf32>
    %cst_41 = arith.constant 9.600000e+01 : f32
    %57 = vector.broadcast %cst_41 : f32 to vector<2x8x1xf32>
    %58 = arith.divf %56, %57 : vector<2x8x1xf32>
    %59 = vector.broadcast %51 : vector<2x8x1xf32> to vector<2x8x96xf32>
    %60 = arith.subf %43, %59 : vector<2x8x96xf32>
    %cst_42 = arith.constant 9.99999974E-6 : f32
    %61 = vector.broadcast %cst_42 : f32 to vector<2x8x1xf32>
    %62 = arith.addf %58, %61 : vector<2x8x1xf32>
    %63 = math.rsqrt %62 : vector<2x8x1xf32>
    %64 = vector.broadcast %63 : vector<2x8x1xf32> to vector<2x8x96xf32>
    %65 = arith.mulf %60, %64 : vector<2x8x96xf32>
    %66 = vector.broadcast %45 : vector<2x1x96xf32> to vector<2x8x96xf32>
    %67 = arith.mulf %65, %66 : vector<2x8x96xf32>
    %68 = vector.broadcast %47 : vector<2x1x96xf32> to vector<2x8x96xf32>
    %69 = arith.addf %67, %68 : vector<2x8x96xf32>
    %cst_43 = arith.constant 0.000000e+00 : f32
    %70 = vector.broadcast %cst_43 : f32 to vector<2x8x96xf32>
    %71 = arith.maximumf %69, %70 : vector<2x8x96xf32>
    %c0_44 = arith.constant 0 : index
    %c0_45 = arith.constant 0 : index
    %c0_46 = arith.constant 0 : index
    %c0_47 = arith.constant 0 : index
    %c0_48 = arith.constant 0 : index
    %72 = vector.load %arg4[%c0_44, %c0_45, %c0_46, %c0_47, %c0_48] : memref<1x4x2x96x144xf32, #tpu.memory_space<vmem>>, vector<1x1x2x96x144xf32>
    %73 = vector.shape_cast %72 : vector<1x1x2x96x144xf32> to vector<2x96x144xf32>
    "tpu.trace_start"() <{level = 10 : i32, message = "gbk,gkn->gbn"}> : () -> ()
    %cst_49 = arith.constant dense<0.000000e+00> : vector<2x8x144xf32>
    %74 = tpu.matmul %71, %73, %cst_49 {dimension_numbers = #tpu.dot_dimension_numbers<[2], [1], [1], [2], [0, 0, 0, 1, 1, 2], [0], [0]>} : vector<2x8x96xf32>, vector<2x96x144xf32>, vector<2x8x144xf32> -> vector<2x8x144xf32>
    "tpu.trace_stop"() : () -> ()
    %c0_50 = arith.constant 0 : index
    %c0_51 = arith.constant 0 : index
    %c0_52 = arith.constant 0 : index
    %c0_53 = arith.constant 0 : index
    %75 = vector.load %arg11[%c0_50, %c0_51, %c0_52, %c0_53] : memref<1x2x12x144xf32, #tpu.memory_space<vmem>>, vector<1x2x1x144xf32>
    %76 = vector.shape_cast %75 : vector<1x2x1x144xf32> to vector<2x1x144xf32>
    %77 = vector.broadcast %76 : vector<2x1x144xf32> to vector<2x8x144xf32>
    %78 = arith.addf %74, %77 : vector<2x8x144xf32>
    %c0_54 = arith.constant 0 : index
    %c0_55 = arith.constant 0 : index
    %c1_56 = arith.constant 1 : index
    %c0_57 = arith.constant 0 : index
    %79 = vector.load %arg11[%c0_54, %c0_55, %c1_56, %c0_57] : memref<1x2x12x144xf32, #tpu.memory_space<vmem>>, vector<1x2x1x144xf32>
    %80 = vector.shape_cast %79 : vector<1x2x1x144xf32> to vector<2x1x144xf32>
    %c0_58 = arith.constant 0 : index
    %c0_59 = arith.constant 0 : index
    %c2_60 = arith.constant 2 : index
    %c0_61 = arith.constant 0 : index
    %81 = vector.load %arg11[%c0_58, %c0_59, %c2_60, %c0_61] : memref<1x2x12x144xf32, #tpu.memory_space<vmem>>, vector<1x2x1x144xf32>
    %82 = vector.shape_cast %81 : vector<1x2x1x144xf32> to vector<2x1x144xf32>
    %cst_62 = arith.constant dense<0.000000e+00> : vector<2x8xf32>
    %83 = vector.multi_reduction <add>, %78, %cst_62 [2] : vector<2x8x144xf32> to vector<2x8xf32>
    %84 = vector.shape_cast %83 : vector<2x8xf32> to vector<2x8x1xf32>
    %cst_63 = arith.constant 1.440000e+02 : f32
    %85 = vector.broadcast %cst_63 : f32 to vector<2x8x1xf32>
    %86 = arith.divf %84, %85 : vector<2x8x1xf32>
    %87 = vector.broadcast %86 : vector<2x8x1xf32> to vector<2x8x144xf32>
    %88 = arith.subf %78, %87 : vector<2x8x144xf32>
    %89 = arith.mulf %88, %88 : vector<2x8x144xf32>
    %cst_64 = arith.constant dense<0.000000e+00> : vector<2x8xf32>
    %90 = vector.multi_reduction <add>, %89, %cst_64 [2] : vector<2x8x144xf32> to vector<2x8xf32>
    %91 = vector.shape_cast %90 : vector<2x8xf32> to vector<2x8x1xf32>
    %cst_65 = arith.constant 1.440000e+02 : f32
    %92 = vector.broadcast %cst_65 : f32 to vector<2x8x1xf32>
    %93 = arith.divf %91, %92 : vector<2x8x1xf32>
    %94 = vector.broadcast %86 : vector<2x8x1xf32> to vector<2x8x144xf32>
    %95 = arith.subf %78, %94 : vector<2x8x144xf32>
    %cst_66 = arith.constant 9.99999974E-6 : f32
    %96 = vector.broadcast %cst_66 : f32 to vector<2x8x1xf32>
    %97 = arith.addf %93, %96 : vector<2x8x1xf32>
    %98 = math.rsqrt %97 : vector<2x8x1xf32>
    %99 = vector.broadcast %98 : vector<2x8x1xf32> to vector<2x8x144xf32>
    %100 = arith.mulf %95, %99 : vector<2x8x144xf32>
    %101 = vector.broadcast %80 : vector<2x1x144xf32> to vector<2x8x144xf32>
    %102 = arith.mulf %100, %101 : vector<2x8x144xf32>
    %103 = vector.broadcast %82 : vector<2x1x144xf32> to vector<2x8x144xf32>
    %104 = arith.addf %102, %103 : vector<2x8x144xf32>
    %cst_67 = arith.constant 0.000000e+00 : f32
    %105 = vector.broadcast %cst_67 : f32 to vector<2x8x144xf32>
    %106 = arith.maximumf %104, %105 : vector<2x8x144xf32>
    %c0_68 = arith.constant 0 : index
    %c0_69 = arith.constant 0 : index
    %c0_70 = arith.constant 0 : index
    %c0_71 = arith.constant 0 : index
    %c0_72 = arith.constant 0 : index
    %107 = vector.load %arg5[%c0_68, %c0_69, %c0_70, %c0_71, %c0_72] : memref<1x4x2x144x96xf32, #tpu.memory_space<vmem>>, vector<1x1x2x144x96xf32>
    %108 = vector.shape_cast %107 : vector<1x1x2x144x96xf32> to vector<2x144x96xf32>
    "tpu.trace_start"() <{level = 10 : i32, message = "gbk,gkn->gbn"}> : () -> ()
    %cst_73 = arith.constant dense<0.000000e+00> : vector<2x8x96xf32>
    %109 = tpu.matmul %106, %108, %cst_73 {dimension_numbers = #tpu.dot_dimension_numbers<[2], [1], [1], [2], [0, 0, 0, 1, 1, 2], [0], [0]>} : vector<2x8x144xf32>, vector<2x144x96xf32>, vector<2x8x96xf32> -> vector<2x8x96xf32>
    "tpu.trace_stop"() : () -> ()
    %c0_74 = arith.constant 0 : index
    %c0_75 = arith.constant 0 : index
    %c6 = arith.constant 6 : index
    %c0_76 = arith.constant 0 : index
    %110 = vector.load %arg10[%c0_74, %c0_75, %c6, %c0_76] : memref<1x2x29x96xf32, #tpu.memory_space<vmem>>, vector<1x2x1x96xf32>
    %111 = vector.shape_cast %110 : vector<1x2x1x96xf32> to vector<2x1x96xf32>
    %112 = vector.broadcast %111 : vector<2x1x96xf32> to vector<2x8x96xf32>
    %113 = arith.addf %109, %112 : vector<2x8x96xf32>
    %c0_77 = arith.constant 0 : index
    %c0_78 = arith.constant 0 : index
    %c7 = arith.constant 7 : index
    %c0_79 = arith.constant 0 : index
    %114 = vector.load %arg10[%c0_77, %c0_78, %c7, %c0_79] : memref<1x2x29x96xf32, #tpu.memory_space<vmem>>, vector<1x2x1x96xf32>
    %115 = vector.shape_cast %114 : vector<1x2x1x96xf32> to vector<2x1x96xf32>
    %c0_80 = arith.constant 0 : index
    %c0_81 = arith.constant 0 : index
    %c8 = arith.constant 8 : index
    %c0_82 = arith.constant 0 : index
    %116 = vector.load %arg10[%c0_80, %c0_81, %c8, %c0_82] : memref<1x2x29x96xf32, #tpu.memory_space<vmem>>, vector<1x2x1x96xf32>
    %117 = vector.shape_cast %116 : vector<1x2x1x96xf32> to vector<2x1x96xf32>
    %cst_83 = arith.constant dense<0.000000e+00> : vector<2x8xf32>
    %118 = vector.multi_reduction <add>, %113, %cst_83 [2] : vector<2x8x96xf32> to vector<2x8xf32>
    %119 = vector.shape_cast %118 : vector<2x8xf32> to vector<2x8x1xf32>
    %cst_84 = arith.constant 9.600000e+01 : f32
    %120 = vector.broadcast %cst_84 : f32 to vector<2x8x1xf32>
    %121 = arith.divf %119, %120 : vector<2x8x1xf32>
    %122 = vector.broadcast %121 : vector<2x8x1xf32> to vector<2x8x96xf32>
    %123 = arith.subf %113, %122 : vector<2x8x96xf32>
    %124 = arith.mulf %123, %123 : vector<2x8x96xf32>
    %cst_85 = arith.constant dense<0.000000e+00> : vector<2x8xf32>
    %125 = vector.multi_reduction <add>, %124, %cst_85 [2] : vector<2x8x96xf32> to vector<2x8xf32>
    %126 = vector.shape_cast %125 : vector<2x8xf32> to vector<2x8x1xf32>
    %cst_86 = arith.constant 9.600000e+01 : f32
    %127 = vector.broadcast %cst_86 : f32 to vector<2x8x1xf32>
    %128 = arith.divf %126, %127 : vector<2x8x1xf32>
    %129 = vector.broadcast %121 : vector<2x8x1xf32> to vector<2x8x96xf32>
    %130 = arith.subf %113, %129 : vector<2x8x96xf32>
    %cst_87 = arith.constant 9.99999974E-6 : f32
    %131 = vector.broadcast %cst_87 : f32 to vector<2x8x1xf32>
    %132 = arith.addf %128, %131 : vector<2x8x1xf32>
    %133 = math.rsqrt %132 : vector<2x8x1xf32>
    %134 = vector.broadcast %133 : vector<2x8x1xf32> to vector<2x8x96xf32>
    %135 = arith.mulf %130, %134 : vector<2x8x96xf32>
    %136 = vector.broadcast %115 : vector<2x1x96xf32> to vector<2x8x96xf32>
    %137 = arith.mulf %135, %136 : vector<2x8x96xf32>
    %138 = vector.broadcast %117 : vector<2x1x96xf32> to vector<2x8x96xf32>
    %139 = arith.addf %137, %138 : vector<2x8x96xf32>
    %140 = arith.addf %36, %139 : vector<2x8x96xf32>
    %cst_88 = arith.constant 0.000000e+00 : f32
    %141 = vector.broadcast %cst_88 : f32 to vector<2x8x96xf32>
    %142 = arith.maximumf %140, %141 : vector<2x8x96xf32>
    %c0_89 = arith.constant 0 : index
    %c1_90 = arith.constant 1 : index
    %c0_91 = arith.constant 0 : index
    %c0_92 = arith.constant 0 : index
    %c0_93 = arith.constant 0 : index
    %143 = vector.load %arg3[%c0_89, %c1_90, %c0_91, %c0_92, %c0_93] : memref<1x4x2x96x96xf32, #tpu.memory_space<vmem>>, vector<1x1x2x96x96xf32>
    %144 = vector.shape_cast %143 : vector<1x1x2x96x96xf32> to vector<2x96x96xf32>
    "tpu.trace_start"() <{level = 10 : i32, message = "gbk,gkn->gbn"}> : () -> ()
    %cst_94 = arith.constant dense<0.000000e+00> : vector<2x8x96xf32>
    %145 = tpu.matmul %142, %144, %cst_94 {dimension_numbers = #tpu.dot_dimension_numbers<[2], [1], [1], [2], [0, 0, 0, 1, 1, 2], [0], [0]>} : vector<2x8x96xf32>, vector<2x96x96xf32>, vector<2x8x96xf32> -> vector<2x8x96xf32>
    "tpu.trace_stop"() : () -> ()
    %c0_95 = arith.constant 0 : index
    %c0_96 = arith.constant 0 : index
    %c9 = arith.constant 9 : index
    %c0_97 = arith.constant 0 : index
    %146 = vector.load %arg10[%c0_95, %c0_96, %c9, %c0_97] : memref<1x2x29x96xf32, #tpu.memory_space<vmem>>, vector<1x2x1x96xf32>
    %147 = vector.shape_cast %146 : vector<1x2x1x96xf32> to vector<2x1x96xf32>
    %148 = vector.broadcast %147 : vector<2x1x96xf32> to vector<2x8x96xf32>
    %149 = arith.addf %145, %148 : vector<2x8x96xf32>
    %c0_98 = arith.constant 0 : index
    %c0_99 = arith.constant 0 : index
    %c10 = arith.constant 10 : index
    %c0_100 = arith.constant 0 : index
    %150 = vector.load %arg10[%c0_98, %c0_99, %c10, %c0_100] : memref<1x2x29x96xf32, #tpu.memory_space<vmem>>, vector<1x2x1x96xf32>
    %151 = vector.shape_cast %150 : vector<1x2x1x96xf32> to vector<2x1x96xf32>
    %c0_101 = arith.constant 0 : index
    %c0_102 = arith.constant 0 : index
    %c11 = arith.constant 11 : index
    %c0_103 = arith.constant 0 : index
    %152 = vector.load %arg10[%c0_101, %c0_102, %c11, %c0_103] : memref<1x2x29x96xf32, #tpu.memory_space<vmem>>, vector<1x2x1x96xf32>
    %153 = vector.shape_cast %152 : vector<1x2x1x96xf32> to vector<2x1x96xf32>
    %cst_104 = arith.constant dense<0.000000e+00> : vector<2x8xf32>
    %154 = vector.multi_reduction <add>, %149, %cst_104 [2] : vector<2x8x96xf32> to vector<2x8xf32>
    %155 = vector.shape_cast %154 : vector<2x8xf32> to vector<2x8x1xf32>
    %cst_105 = arith.constant 9.600000e+01 : f32
    %156 = vector.broadcast %cst_105 : f32 to vector<2x8x1xf32>
    %157 = arith.divf %155, %156 : vector<2x8x1xf32>
    %158 = vector.broadcast %157 : vector<2x8x1xf32> to vector<2x8x96xf32>
    %159 = arith.subf %149, %158 : vector<2x8x96xf32>
    %160 = arith.mulf %159, %159 : vector<2x8x96xf32>
    %cst_106 = arith.constant dense<0.000000e+00> : vector<2x8xf32>
    %161 = vector.multi_reduction <add>, %160, %cst_106 [2] : vector<2x8x96xf32> to vector<2x8xf32>
    %162 = vector.shape_cast %161 : vector<2x8xf32> to vector<2x8x1xf32>
    %cst_107 = arith.constant 9.600000e+01 : f32
    %163 = vector.broadcast %cst_107 : f32 to vector<2x8x1xf32>
    %164 = arith.divf %162, %163 : vector<2x8x1xf32>
    %165 = vector.broadcast %157 : vector<2x8x1xf32> to vector<2x8x96xf32>
    %166 = arith.subf %149, %165 : vector<2x8x96xf32>
    %cst_108 = arith.constant 9.99999974E-6 : f32
    %167 = vector.broadcast %cst_108 : f32 to vector<2x8x1xf32>
    %168 = arith.addf %164, %167 : vector<2x8x1xf32>
    %169 = math.rsqrt %168 : vector<2x8x1xf32>
    %170 = vector.broadcast %169 : vector<2x8x1xf32> to vector<2x8x96xf32>
    %171 = arith.mulf %166, %170 : vector<2x8x96xf32>
    %172 = vector.broadcast %151 : vector<2x1x96xf32> to vector<2x8x96xf32>
    %173 = arith.mulf %171, %172 : vector<2x8x96xf32>
    %174 = vector.broadcast %153 : vector<2x1x96xf32> to vector<2x8x96xf32>
    %175 = arith.addf %173, %174 : vector<2x8x96xf32>
    %cst_109 = arith.constant 0.000000e+00 : f32
    %176 = vector.broadcast %cst_109 : f32 to vector<2x8x96xf32>
    %177 = arith.maximumf %175, %176 : vector<2x8x96xf32>
    %c0_110 = arith.constant 0 : index
    %c1_111 = arith.constant 1 : index
    %c0_112 = arith.constant 0 : index
    %c0_113 = arith.constant 0 : index
    %c0_114 = arith.constant 0 : index
    %178 = vector.load %arg4[%c0_110, %c1_111, %c0_112, %c0_113, %c0_114] : memref<1x4x2x96x144xf32, #tpu.memory_space<vmem>>, vector<1x1x2x96x144xf32>
    %179 = vector.shape_cast %178 : vector<1x1x2x96x144xf32> to vector<2x96x144xf32>
    "tpu.trace_start"() <{level = 10 : i32, message = "gbk,gkn->gbn"}> : () -> ()
    %cst_115 = arith.constant dense<0.000000e+00> : vector<2x8x144xf32>
    %180 = tpu.matmul %177, %179, %cst_115 {dimension_numbers = #tpu.dot_dimension_numbers<[2], [1], [1], [2], [0, 0, 0, 1, 1, 2], [0], [0]>} : vector<2x8x96xf32>, vector<2x96x144xf32>, vector<2x8x144xf32> -> vector<2x8x144xf32>
    "tpu.trace_stop"() : () -> ()
    %c0_116 = arith.constant 0 : index
    %c0_117 = arith.constant 0 : index
    %c3_118 = arith.constant 3 : index
    %c0_119 = arith.constant 0 : index
    %181 = vector.load %arg11[%c0_116, %c0_117, %c3_118, %c0_119] : memref<1x2x12x144xf32, #tpu.memory_space<vmem>>, vector<1x2x1x144xf32>
    %182 = vector.shape_cast %181 : vector<1x2x1x144xf32> to vector<2x1x144xf32>
    %183 = vector.broadcast %182 : vector<2x1x144xf32> to vector<2x8x144xf32>
    %184 = arith.addf %180, %183 : vector<2x8x144xf32>
    %c0_120 = arith.constant 0 : index
    %c0_121 = arith.constant 0 : index
    %c4_122 = arith.constant 4 : index
    %c0_123 = arith.constant 0 : index
    %185 = vector.load %arg11[%c0_120, %c0_121, %c4_122, %c0_123] : memref<1x2x12x144xf32, #tpu.memory_space<vmem>>, vector<1x2x1x144xf32>
    %186 = vector.shape_cast %185 : vector<1x2x1x144xf32> to vector<2x1x144xf32>
    %c0_124 = arith.constant 0 : index
    %c0_125 = arith.constant 0 : index
    %c5_126 = arith.constant 5 : index
    %c0_127 = arith.constant 0 : index
    %187 = vector.load %arg11[%c0_124, %c0_125, %c5_126, %c0_127] : memref<1x2x12x144xf32, #tpu.memory_space<vmem>>, vector<1x2x1x144xf32>
    %188 = vector.shape_cast %187 : vector<1x2x1x144xf32> to vector<2x1x144xf32>
    %cst_128 = arith.constant dense<0.000000e+00> : vector<2x8xf32>
    %189 = vector.multi_reduction <add>, %184, %cst_128 [2] : vector<2x8x144xf32> to vector<2x8xf32>
    %190 = vector.shape_cast %189 : vector<2x8xf32> to vector<2x8x1xf32>
    %cst_129 = arith.constant 1.440000e+02 : f32
    %191 = vector.broadcast %cst_129 : f32 to vector<2x8x1xf32>
    %192 = arith.divf %190, %191 : vector<2x8x1xf32>
    %193 = vector.broadcast %192 : vector<2x8x1xf32> to vector<2x8x144xf32>
    %194 = arith.subf %184, %193 : vector<2x8x144xf32>
    %195 = arith.mulf %194, %194 : vector<2x8x144xf32>
    %cst_130 = arith.constant dense<0.000000e+00> : vector<2x8xf32>
    %196 = vector.multi_reduction <add>, %195, %cst_130 [2] : vector<2x8x144xf32> to vector<2x8xf32>
    %197 = vector.shape_cast %196 : vector<2x8xf32> to vector<2x8x1xf32>
    %cst_131 = arith.constant 1.440000e+02 : f32
    %198 = vector.broadcast %cst_131 : f32 to vector<2x8x1xf32>
    %199 = arith.divf %197, %198 : vector<2x8x1xf32>
    %200 = vector.broadcast %192 : vector<2x8x1xf32> to vector<2x8x144xf32>
    %201 = arith.subf %184, %200 : vector<2x8x144xf32>
    %cst_132 = arith.constant 9.99999974E-6 : f32
    %202 = vector.broadcast %cst_132 : f32 to vector<2x8x1xf32>
    %203 = arith.addf %199, %202 : vector<2x8x1xf32>
    %204 = math.rsqrt %203 : vector<2x8x1xf32>
    %205 = vector.broadcast %204 : vector<2x8x1xf32> to vector<2x8x144xf32>
    %206 = arith.mulf %201, %205 : vector<2x8x144xf32>
    %207 = vector.broadcast %186 : vector<2x1x144xf32> to vector<2x8x144xf32>
    %208 = arith.mulf %206, %207 : vector<2x8x144xf32>
    %209 = vector.broadcast %188 : vector<2x1x144xf32> to vector<2x8x144xf32>
    %210 = arith.addf %208, %209 : vector<2x8x144xf32>
    %cst_133 = arith.constant 0.000000e+00 : f32
    %211 = vector.broadcast %cst_133 : f32 to vector<2x8x144xf32>
    %212 = arith.maximumf %210, %211 : vector<2x8x144xf32>
    %c0_134 = arith.constant 0 : index
    %c1_135 = arith.constant 1 : index
    %c0_136 = arith.constant 0 : index
    %c0_137 = arith.constant 0 : index
    %c0_138 = arith.constant 0 : index
    %213 = vector.load %arg5[%c0_134, %c1_135, %c0_136, %c0_137, %c0_138] : memref<1x4x2x144x96xf32, #tpu.memory_space<vmem>>, vector<1x1x2x144x96xf32>
    %214 = vector.shape_cast %213 : vector<1x1x2x144x96xf32> to vector<2x144x96xf32>
    "tpu.trace_start"() <{level = 10 : i32, message = "gbk,gkn->gbn"}> : () -> ()
    %cst_139 = arith.constant dense<0.000000e+00> : vector<2x8x96xf32>
    %215 = tpu.matmul %212, %214, %cst_139 {dimension_numbers = #tpu.dot_dimension_numbers<[2], [1], [1], [2], [0, 0, 0, 1, 1, 2], [0], [0]>} : vector<2x8x144xf32>, vector<2x144x96xf32>, vector<2x8x96xf32> -> vector<2x8x96xf32>
    "tpu.trace_stop"() : () -> ()
    %c0_140 = arith.constant 0 : index
    %c0_141 = arith.constant 0 : index
    %c12 = arith.constant 12 : index
    %c0_142 = arith.constant 0 : index
    %216 = vector.load %arg10[%c0_140, %c0_141, %c12, %c0_142] : memref<1x2x29x96xf32, #tpu.memory_space<vmem>>, vector<1x2x1x96xf32>
    %217 = vector.shape_cast %216 : vector<1x2x1x96xf32> to vector<2x1x96xf32>
    %218 = vector.broadcast %217 : vector<2x1x96xf32> to vector<2x8x96xf32>
    %219 = arith.addf %215, %218 : vector<2x8x96xf32>
    %c0_143 = arith.constant 0 : index
    %c0_144 = arith.constant 0 : index
    %c13 = arith.constant 13 : index
    %c0_145 = arith.constant 0 : index
    %220 = vector.load %arg10[%c0_143, %c0_144, %c13, %c0_145] : memref<1x2x29x96xf32, #tpu.memory_space<vmem>>, vector<1x2x1x96xf32>
    %221 = vector.shape_cast %220 : vector<1x2x1x96xf32> to vector<2x1x96xf32>
    %c0_146 = arith.constant 0 : index
    %c0_147 = arith.constant 0 : index
    %c14 = arith.constant 14 : index
    %c0_148 = arith.constant 0 : index
    %222 = vector.load %arg10[%c0_146, %c0_147, %c14, %c0_148] : memref<1x2x29x96xf32, #tpu.memory_space<vmem>>, vector<1x2x1x96xf32>
    %223 = vector.shape_cast %222 : vector<1x2x1x96xf32> to vector<2x1x96xf32>
    %cst_149 = arith.constant dense<0.000000e+00> : vector<2x8xf32>
    %224 = vector.multi_reduction <add>, %219, %cst_149 [2] : vector<2x8x96xf32> to vector<2x8xf32>
    %225 = vector.shape_cast %224 : vector<2x8xf32> to vector<2x8x1xf32>
    %cst_150 = arith.constant 9.600000e+01 : f32
    %226 = vector.broadcast %cst_150 : f32 to vector<2x8x1xf32>
    %227 = arith.divf %225, %226 : vector<2x8x1xf32>
    %228 = vector.broadcast %227 : vector<2x8x1xf32> to vector<2x8x96xf32>
    %229 = arith.subf %219, %228 : vector<2x8x96xf32>
    %230 = arith.mulf %229, %229 : vector<2x8x96xf32>
    %cst_151 = arith.constant dense<0.000000e+00> : vector<2x8xf32>
    %231 = vector.multi_reduction <add>, %230, %cst_151 [2] : vector<2x8x96xf32> to vector<2x8xf32>
    %232 = vector.shape_cast %231 : vector<2x8xf32> to vector<2x8x1xf32>
    %cst_152 = arith.constant 9.600000e+01 : f32
    %233 = vector.broadcast %cst_152 : f32 to vector<2x8x1xf32>
    %234 = arith.divf %232, %233 : vector<2x8x1xf32>
    %235 = vector.broadcast %227 : vector<2x8x1xf32> to vector<2x8x96xf32>
    %236 = arith.subf %219, %235 : vector<2x8x96xf32>
    %cst_153 = arith.constant 9.99999974E-6 : f32
    %237 = vector.broadcast %cst_153 : f32 to vector<2x8x1xf32>
    %238 = arith.addf %234, %237 : vector<2x8x1xf32>
    %239 = math.rsqrt %238 : vector<2x8x1xf32>
    %240 = vector.broadcast %239 : vector<2x8x1xf32> to vector<2x8x96xf32>
    %241 = arith.mulf %236, %240 : vector<2x8x96xf32>
    %242 = vector.broadcast %221 : vector<2x1x96xf32> to vector<2x8x96xf32>
    %243 = arith.mulf %241, %242 : vector<2x8x96xf32>
    %244 = vector.broadcast %223 : vector<2x1x96xf32> to vector<2x8x96xf32>
    %245 = arith.addf %243, %244 : vector<2x8x96xf32>
    %246 = arith.addf %142, %245 : vector<2x8x96xf32>
    %cst_154 = arith.constant 0.000000e+00 : f32
    %247 = vector.broadcast %cst_154 : f32 to vector<2x8x96xf32>
    %248 = arith.maximumf %246, %247 : vector<2x8x96xf32>
    %c0_155 = arith.constant 0 : index
    %c2_156 = arith.constant 2 : index
    %c0_157 = arith.constant 0 : index
    %c0_158 = arith.constant 0 : index
    %c0_159 = arith.constant 0 : index
    %249 = vector.load %arg3[%c0_155, %c2_156, %c0_157, %c0_158, %c0_159] : memref<1x4x2x96x96xf32, #tpu.memory_space<vmem>>, vector<1x1x2x96x96xf32>
    %250 = vector.shape_cast %249 : vector<1x1x2x96x96xf32> to vector<2x96x96xf32>
    "tpu.trace_start"() <{level = 10 : i32, message = "gbk,gkn->gbn"}> : () -> ()
    %cst_160 = arith.constant dense<0.000000e+00> : vector<2x8x96xf32>
    %251 = tpu.matmul %248, %250, %cst_160 {dimension_numbers = #tpu.dot_dimension_numbers<[2], [1], [1], [2], [0, 0, 0, 1, 1, 2], [0], [0]>} : vector<2x8x96xf32>, vector<2x96x96xf32>, vector<2x8x96xf32> -> vector<2x8x96xf32>
    "tpu.trace_stop"() : () -> ()
    %c0_161 = arith.constant 0 : index
    %c0_162 = arith.constant 0 : index
    %c15 = arith.constant 15 : index
    %c0_163 = arith.constant 0 : index
    %252 = vector.load %arg10[%c0_161, %c0_162, %c15, %c0_163] : memref<1x2x29x96xf32, #tpu.memory_space<vmem>>, vector<1x2x1x96xf32>
    %253 = vector.shape_cast %252 : vector<1x2x1x96xf32> to vector<2x1x96xf32>
    %254 = vector.broadcast %253 : vector<2x1x96xf32> to vector<2x8x96xf32>
    %255 = arith.addf %251, %254 : vector<2x8x96xf32>
    %c0_164 = arith.constant 0 : index
    %c0_165 = arith.constant 0 : index
    %c16 = arith.constant 16 : index
    %c0_166 = arith.constant 0 : index
    %256 = vector.load %arg10[%c0_164, %c0_165, %c16, %c0_166] : memref<1x2x29x96xf32, #tpu.memory_space<vmem>>, vector<1x2x1x96xf32>
    %257 = vector.shape_cast %256 : vector<1x2x1x96xf32> to vector<2x1x96xf32>
    %c0_167 = arith.constant 0 : index
    %c0_168 = arith.constant 0 : index
    %c17 = arith.constant 17 : index
    %c0_169 = arith.constant 0 : index
    %258 = vector.load %arg10[%c0_167, %c0_168, %c17, %c0_169] : memref<1x2x29x96xf32, #tpu.memory_space<vmem>>, vector<1x2x1x96xf32>
    %259 = vector.shape_cast %258 : vector<1x2x1x96xf32> to vector<2x1x96xf32>
    %cst_170 = arith.constant dense<0.000000e+00> : vector<2x8xf32>
    %260 = vector.multi_reduction <add>, %255, %cst_170 [2] : vector<2x8x96xf32> to vector<2x8xf32>
    %261 = vector.shape_cast %260 : vector<2x8xf32> to vector<2x8x1xf32>
    %cst_171 = arith.constant 9.600000e+01 : f32
    %262 = vector.broadcast %cst_171 : f32 to vector<2x8x1xf32>
    %263 = arith.divf %261, %262 : vector<2x8x1xf32>
    %264 = vector.broadcast %263 : vector<2x8x1xf32> to vector<2x8x96xf32>
    %265 = arith.subf %255, %264 : vector<2x8x96xf32>
    %266 = arith.mulf %265, %265 : vector<2x8x96xf32>
    %cst_172 = arith.constant dense<0.000000e+00> : vector<2x8xf32>
    %267 = vector.multi_reduction <add>, %266, %cst_172 [2] : vector<2x8x96xf32> to vector<2x8xf32>
    %268 = vector.shape_cast %267 : vector<2x8xf32> to vector<2x8x1xf32>
    %cst_173 = arith.constant 9.600000e+01 : f32
    %269 = vector.broadcast %cst_173 : f32 to vector<2x8x1xf32>
    %270 = arith.divf %268, %269 : vector<2x8x1xf32>
    %271 = vector.broadcast %263 : vector<2x8x1xf32> to vector<2x8x96xf32>
    %272 = arith.subf %255, %271 : vector<2x8x96xf32>
    %cst_174 = arith.constant 9.99999974E-6 : f32
    %273 = vector.broadcast %cst_174 : f32 to vector<2x8x1xf32>
    %274 = arith.addf %270, %273 : vector<2x8x1xf32>
    %275 = math.rsqrt %274 : vector<2x8x1xf32>
    %276 = vector.broadcast %275 : vector<2x8x1xf32> to vector<2x8x96xf32>
    %277 = arith.mulf %272, %276 : vector<2x8x96xf32>
    %278 = vector.broadcast %257 : vector<2x1x96xf32> to vector<2x8x96xf32>
    %279 = arith.mulf %277, %278 : vector<2x8x96xf32>
    %280 = vector.broadcast %259 : vector<2x1x96xf32> to vector<2x8x96xf32>
    %281 = arith.addf %279, %280 : vector<2x8x96xf32>
    %cst_175 = arith.constant 0.000000e+00 : f32
    %282 = vector.broadcast %cst_175 : f32 to vector<2x8x96xf32>
    %283 = arith.maximumf %281, %282 : vector<2x8x96xf32>
    %c0_176 = arith.constant 0 : index
    %c2_177 = arith.constant 2 : index
    %c0_178 = arith.constant 0 : index
    %c0_179 = arith.constant 0 : index
    %c0_180 = arith.constant 0 : index
    %284 = vector.load %arg4[%c0_176, %c2_177, %c0_178, %c0_179, %c0_180] : memref<1x4x2x96x144xf32, #tpu.memory_space<vmem>>, vector<1x1x2x96x144xf32>
    %285 = vector.shape_cast %284 : vector<1x1x2x96x144xf32> to vector<2x96x144xf32>
    "tpu.trace_start"() <{level = 10 : i32, message = "gbk,gkn->gbn"}> : () -> ()
    %cst_181 = arith.constant dense<0.000000e+00> : vector<2x8x144xf32>
    %286 = tpu.matmul %283, %285, %cst_181 {dimension_numbers = #tpu.dot_dimension_numbers<[2], [1], [1], [2], [0, 0, 0, 1, 1, 2], [0], [0]>} : vector<2x8x96xf32>, vector<2x96x144xf32>, vector<2x8x144xf32> -> vector<2x8x144xf32>
    "tpu.trace_stop"() : () -> ()
    %c0_182 = arith.constant 0 : index
    %c0_183 = arith.constant 0 : index
    %c6_184 = arith.constant 6 : index
    %c0_185 = arith.constant 0 : index
    %287 = vector.load %arg11[%c0_182, %c0_183, %c6_184, %c0_185] : memref<1x2x12x144xf32, #tpu.memory_space<vmem>>, vector<1x2x1x144xf32>
    %288 = vector.shape_cast %287 : vector<1x2x1x144xf32> to vector<2x1x144xf32>
    %289 = vector.broadcast %288 : vector<2x1x144xf32> to vector<2x8x144xf32>
    %290 = arith.addf %286, %289 : vector<2x8x144xf32>
    %c0_186 = arith.constant 0 : index
    %c0_187 = arith.constant 0 : index
    %c7_188 = arith.constant 7 : index
    %c0_189 = arith.constant 0 : index
    %291 = vector.load %arg11[%c0_186, %c0_187, %c7_188, %c0_189] : memref<1x2x12x144xf32, #tpu.memory_space<vmem>>, vector<1x2x1x144xf32>
    %292 = vector.shape_cast %291 : vector<1x2x1x144xf32> to vector<2x1x144xf32>
    %c0_190 = arith.constant 0 : index
    %c0_191 = arith.constant 0 : index
    %c8_192 = arith.constant 8 : index
    %c0_193 = arith.constant 0 : index
    %293 = vector.load %arg11[%c0_190, %c0_191, %c8_192, %c0_193] : memref<1x2x12x144xf32, #tpu.memory_space<vmem>>, vector<1x2x1x144xf32>
    %294 = vector.shape_cast %293 : vector<1x2x1x144xf32> to vector<2x1x144xf32>
    %cst_194 = arith.constant dense<0.000000e+00> : vector<2x8xf32>
    %295 = vector.multi_reduction <add>, %290, %cst_194 [2] : vector<2x8x144xf32> to vector<2x8xf32>
    %296 = vector.shape_cast %295 : vector<2x8xf32> to vector<2x8x1xf32>
    %cst_195 = arith.constant 1.440000e+02 : f32
    %297 = vector.broadcast %cst_195 : f32 to vector<2x8x1xf32>
    %298 = arith.divf %296, %297 : vector<2x8x1xf32>
    %299 = vector.broadcast %298 : vector<2x8x1xf32> to vector<2x8x144xf32>
    %300 = arith.subf %290, %299 : vector<2x8x144xf32>
    %301 = arith.mulf %300, %300 : vector<2x8x144xf32>
    %cst_196 = arith.constant dense<0.000000e+00> : vector<2x8xf32>
    %302 = vector.multi_reduction <add>, %301, %cst_196 [2] : vector<2x8x144xf32> to vector<2x8xf32>
    %303 = vector.shape_cast %302 : vector<2x8xf32> to vector<2x8x1xf32>
    %cst_197 = arith.constant 1.440000e+02 : f32
    %304 = vector.broadcast %cst_197 : f32 to vector<2x8x1xf32>
    %305 = arith.divf %303, %304 : vector<2x8x1xf32>
    %306 = vector.broadcast %298 : vector<2x8x1xf32> to vector<2x8x144xf32>
    %307 = arith.subf %290, %306 : vector<2x8x144xf32>
    %cst_198 = arith.constant 9.99999974E-6 : f32
    %308 = vector.broadcast %cst_198 : f32 to vector<2x8x1xf32>
    %309 = arith.addf %305, %308 : vector<2x8x1xf32>
    %310 = math.rsqrt %309 : vector<2x8x1xf32>
    %311 = vector.broadcast %310 : vector<2x8x1xf32> to vector<2x8x144xf32>
    %312 = arith.mulf %307, %311 : vector<2x8x144xf32>
    %313 = vector.broadcast %292 : vector<2x1x144xf32> to vector<2x8x144xf32>
    %314 = arith.mulf %312, %313 : vector<2x8x144xf32>
    %315 = vector.broadcast %294 : vector<2x1x144xf32> to vector<2x8x144xf32>
    %316 = arith.addf %314, %315 : vector<2x8x144xf32>
    %cst_199 = arith.constant 0.000000e+00 : f32
    %317 = vector.broadcast %cst_199 : f32 to vector<2x8x144xf32>
    %318 = arith.maximumf %316, %317 : vector<2x8x144xf32>
    %c0_200 = arith.constant 0 : index
    %c2_201 = arith.constant 2 : index
    %c0_202 = arith.constant 0 : index
    %c0_203 = arith.constant 0 : index
    %c0_204 = arith.constant 0 : index
    %319 = vector.load %arg5[%c0_200, %c2_201, %c0_202, %c0_203, %c0_204] : memref<1x4x2x144x96xf32, #tpu.memory_space<vmem>>, vector<1x1x2x144x96xf32>
    %320 = vector.shape_cast %319 : vector<1x1x2x144x96xf32> to vector<2x144x96xf32>
    "tpu.trace_start"() <{level = 10 : i32, message = "gbk,gkn->gbn"}> : () -> ()
    %cst_205 = arith.constant dense<0.000000e+00> : vector<2x8x96xf32>
    %321 = tpu.matmul %318, %320, %cst_205 {dimension_numbers = #tpu.dot_dimension_numbers<[2], [1], [1], [2], [0, 0, 0, 1, 1, 2], [0], [0]>} : vector<2x8x144xf32>, vector<2x144x96xf32>, vector<2x8x96xf32> -> vector<2x8x96xf32>
    "tpu.trace_stop"() : () -> ()
    %c0_206 = arith.constant 0 : index
    %c0_207 = arith.constant 0 : index
    %c18 = arith.constant 18 : index
    %c0_208 = arith.constant 0 : index
    %322 = vector.load %arg10[%c0_206, %c0_207, %c18, %c0_208] : memref<1x2x29x96xf32, #tpu.memory_space<vmem>>, vector<1x2x1x96xf32>
    %323 = vector.shape_cast %322 : vector<1x2x1x96xf32> to vector<2x1x96xf32>
    %324 = vector.broadcast %323 : vector<2x1x96xf32> to vector<2x8x96xf32>
    %325 = arith.addf %321, %324 : vector<2x8x96xf32>
    %c0_209 = arith.constant 0 : index
    %c0_210 = arith.constant 0 : index
    %c19 = arith.constant 19 : index
    %c0_211 = arith.constant 0 : index
    %326 = vector.load %arg10[%c0_209, %c0_210, %c19, %c0_211] : memref<1x2x29x96xf32, #tpu.memory_space<vmem>>, vector<1x2x1x96xf32>
    %327 = vector.shape_cast %326 : vector<1x2x1x96xf32> to vector<2x1x96xf32>
    %c0_212 = arith.constant 0 : index
    %c0_213 = arith.constant 0 : index
    %c20 = arith.constant 20 : index
    %c0_214 = arith.constant 0 : index
    %328 = vector.load %arg10[%c0_212, %c0_213, %c20, %c0_214] : memref<1x2x29x96xf32, #tpu.memory_space<vmem>>, vector<1x2x1x96xf32>
    %329 = vector.shape_cast %328 : vector<1x2x1x96xf32> to vector<2x1x96xf32>
    %cst_215 = arith.constant dense<0.000000e+00> : vector<2x8xf32>
    %330 = vector.multi_reduction <add>, %325, %cst_215 [2] : vector<2x8x96xf32> to vector<2x8xf32>
    %331 = vector.shape_cast %330 : vector<2x8xf32> to vector<2x8x1xf32>
    %cst_216 = arith.constant 9.600000e+01 : f32
    %332 = vector.broadcast %cst_216 : f32 to vector<2x8x1xf32>
    %333 = arith.divf %331, %332 : vector<2x8x1xf32>
    %334 = vector.broadcast %333 : vector<2x8x1xf32> to vector<2x8x96xf32>
    %335 = arith.subf %325, %334 : vector<2x8x96xf32>
    %336 = arith.mulf %335, %335 : vector<2x8x96xf32>
    %cst_217 = arith.constant dense<0.000000e+00> : vector<2x8xf32>
    %337 = vector.multi_reduction <add>, %336, %cst_217 [2] : vector<2x8x96xf32> to vector<2x8xf32>
    %338 = vector.shape_cast %337 : vector<2x8xf32> to vector<2x8x1xf32>
    %cst_218 = arith.constant 9.600000e+01 : f32
    %339 = vector.broadcast %cst_218 : f32 to vector<2x8x1xf32>
    %340 = arith.divf %338, %339 : vector<2x8x1xf32>
    %341 = vector.broadcast %333 : vector<2x8x1xf32> to vector<2x8x96xf32>
    %342 = arith.subf %325, %341 : vector<2x8x96xf32>
    %cst_219 = arith.constant 9.99999974E-6 : f32
    %343 = vector.broadcast %cst_219 : f32 to vector<2x8x1xf32>
    %344 = arith.addf %340, %343 : vector<2x8x1xf32>
    %345 = math.rsqrt %344 : vector<2x8x1xf32>
    %346 = vector.broadcast %345 : vector<2x8x1xf32> to vector<2x8x96xf32>
    %347 = arith.mulf %342, %346 : vector<2x8x96xf32>
    %348 = vector.broadcast %327 : vector<2x1x96xf32> to vector<2x8x96xf32>
    %349 = arith.mulf %347, %348 : vector<2x8x96xf32>
    %350 = vector.broadcast %329 : vector<2x1x96xf32> to vector<2x8x96xf32>
    %351 = arith.addf %349, %350 : vector<2x8x96xf32>
    %352 = arith.addf %248, %351 : vector<2x8x96xf32>
    %cst_220 = arith.constant 0.000000e+00 : f32
    %353 = vector.broadcast %cst_220 : f32 to vector<2x8x96xf32>
    %354 = arith.maximumf %352, %353 : vector<2x8x96xf32>
    %c0_221 = arith.constant 0 : index
    %c3_222 = arith.constant 3 : index
    %c0_223 = arith.constant 0 : index
    %c0_224 = arith.constant 0 : index
    %c0_225 = arith.constant 0 : index
    %355 = vector.load %arg3[%c0_221, %c3_222, %c0_223, %c0_224, %c0_225] : memref<1x4x2x96x96xf32, #tpu.memory_space<vmem>>, vector<1x1x2x96x96xf32>
    %356 = vector.shape_cast %355 : vector<1x1x2x96x96xf32> to vector<2x96x96xf32>
    "tpu.trace_start"() <{level = 10 : i32, message = "gbk,gkn->gbn"}> : () -> ()
    %cst_226 = arith.constant dense<0.000000e+00> : vector<2x8x96xf32>
    %357 = tpu.matmul %354, %356, %cst_226 {dimension_numbers = #tpu.dot_dimension_numbers<[2], [1], [1], [2], [0, 0, 0, 1, 1, 2], [0], [0]>} : vector<2x8x96xf32>, vector<2x96x96xf32>, vector<2x8x96xf32> -> vector<2x8x96xf32>
    "tpu.trace_stop"() : () -> ()
    %c0_227 = arith.constant 0 : index
    %c0_228 = arith.constant 0 : index
    %c21 = arith.constant 21 : index
    %c0_229 = arith.constant 0 : index
    %358 = vector.load %arg10[%c0_227, %c0_228, %c21, %c0_229] : memref<1x2x29x96xf32, #tpu.memory_space<vmem>>, vector<1x2x1x96xf32>
    %359 = vector.shape_cast %358 : vector<1x2x1x96xf32> to vector<2x1x96xf32>
    %360 = vector.broadcast %359 : vector<2x1x96xf32> to vector<2x8x96xf32>
    %361 = arith.addf %357, %360 : vector<2x8x96xf32>
    %c0_230 = arith.constant 0 : index
    %c0_231 = arith.constant 0 : index
    %c22 = arith.constant 22 : index
    %c0_232 = arith.constant 0 : index
    %362 = vector.load %arg10[%c0_230, %c0_231, %c22, %c0_232] : memref<1x2x29x96xf32, #tpu.memory_space<vmem>>, vector<1x2x1x96xf32>
    %363 = vector.shape_cast %362 : vector<1x2x1x96xf32> to vector<2x1x96xf32>
    %c0_233 = arith.constant 0 : index
    %c0_234 = arith.constant 0 : index
    %c23 = arith.constant 23 : index
    %c0_235 = arith.constant 0 : index
    %364 = vector.load %arg10[%c0_233, %c0_234, %c23, %c0_235] : memref<1x2x29x96xf32, #tpu.memory_space<vmem>>, vector<1x2x1x96xf32>
    %365 = vector.shape_cast %364 : vector<1x2x1x96xf32> to vector<2x1x96xf32>
    %cst_236 = arith.constant dense<0.000000e+00> : vector<2x8xf32>
    %366 = vector.multi_reduction <add>, %361, %cst_236 [2] : vector<2x8x96xf32> to vector<2x8xf32>
    %367 = vector.shape_cast %366 : vector<2x8xf32> to vector<2x8x1xf32>
    %cst_237 = arith.constant 9.600000e+01 : f32
    %368 = vector.broadcast %cst_237 : f32 to vector<2x8x1xf32>
    %369 = arith.divf %367, %368 : vector<2x8x1xf32>
    %370 = vector.broadcast %369 : vector<2x8x1xf32> to vector<2x8x96xf32>
    %371 = arith.subf %361, %370 : vector<2x8x96xf32>
    %372 = arith.mulf %371, %371 : vector<2x8x96xf32>
    %cst_238 = arith.constant dense<0.000000e+00> : vector<2x8xf32>
    %373 = vector.multi_reduction <add>, %372, %cst_238 [2] : vector<2x8x96xf32> to vector<2x8xf32>
    %374 = vector.shape_cast %373 : vector<2x8xf32> to vector<2x8x1xf32>
    %cst_239 = arith.constant 9.600000e+01 : f32
    %375 = vector.broadcast %cst_239 : f32 to vector<2x8x1xf32>
    %376 = arith.divf %374, %375 : vector<2x8x1xf32>
    %377 = vector.broadcast %369 : vector<2x8x1xf32> to vector<2x8x96xf32>
    %378 = arith.subf %361, %377 : vector<2x8x96xf32>
    %cst_240 = arith.constant 9.99999974E-6 : f32
    %379 = vector.broadcast %cst_240 : f32 to vector<2x8x1xf32>
    %380 = arith.addf %376, %379 : vector<2x8x1xf32>
    %381 = math.rsqrt %380 : vector<2x8x1xf32>
    %382 = vector.broadcast %381 : vector<2x8x1xf32> to vector<2x8x96xf32>
    %383 = arith.mulf %378, %382 : vector<2x8x96xf32>
    %384 = vector.broadcast %363 : vector<2x1x96xf32> to vector<2x8x96xf32>
    %385 = arith.mulf %383, %384 : vector<2x8x96xf32>
    %386 = vector.broadcast %365 : vector<2x1x96xf32> to vector<2x8x96xf32>
    %387 = arith.addf %385, %386 : vector<2x8x96xf32>
    %cst_241 = arith.constant 0.000000e+00 : f32
    %388 = vector.broadcast %cst_241 : f32 to vector<2x8x96xf32>
    %389 = arith.maximumf %387, %388 : vector<2x8x96xf32>
    %c0_242 = arith.constant 0 : index
    %c3_243 = arith.constant 3 : index
    %c0_244 = arith.constant 0 : index
    %c0_245 = arith.constant 0 : index
    %c0_246 = arith.constant 0 : index
    %390 = vector.load %arg4[%c0_242, %c3_243, %c0_244, %c0_245, %c0_246] : memref<1x4x2x96x144xf32, #tpu.memory_space<vmem>>, vector<1x1x2x96x144xf32>
    %391 = vector.shape_cast %390 : vector<1x1x2x96x144xf32> to vector<2x96x144xf32>
    "tpu.trace_start"() <{level = 10 : i32, message = "gbk,gkn->gbn"}> : () -> ()
    %cst_247 = arith.constant dense<0.000000e+00> : vector<2x8x144xf32>
    %392 = tpu.matmul %389, %391, %cst_247 {dimension_numbers = #tpu.dot_dimension_numbers<[2], [1], [1], [2], [0, 0, 0, 1, 1, 2], [0], [0]>} : vector<2x8x96xf32>, vector<2x96x144xf32>, vector<2x8x144xf32> -> vector<2x8x144xf32>
    "tpu.trace_stop"() : () -> ()
    %c0_248 = arith.constant 0 : index
    %c0_249 = arith.constant 0 : index
    %c9_250 = arith.constant 9 : index
    %c0_251 = arith.constant 0 : index
    %393 = vector.load %arg11[%c0_248, %c0_249, %c9_250, %c0_251] : memref<1x2x12x144xf32, #tpu.memory_space<vmem>>, vector<1x2x1x144xf32>
    %394 = vector.shape_cast %393 : vector<1x2x1x144xf32> to vector<2x1x144xf32>
    %395 = vector.broadcast %394 : vector<2x1x144xf32> to vector<2x8x144xf32>
    %396 = arith.addf %392, %395 : vector<2x8x144xf32>
    %c0_252 = arith.constant 0 : index
    %c0_253 = arith.constant 0 : index
    %c10_254 = arith.constant 10 : index
    %c0_255 = arith.constant 0 : index
    %397 = vector.load %arg11[%c0_252, %c0_253, %c10_254, %c0_255] : memref<1x2x12x144xf32, #tpu.memory_space<vmem>>, vector<1x2x1x144xf32>
    %398 = vector.shape_cast %397 : vector<1x2x1x144xf32> to vector<2x1x144xf32>
    %c0_256 = arith.constant 0 : index
    %c0_257 = arith.constant 0 : index
    %c11_258 = arith.constant 11 : index
    %c0_259 = arith.constant 0 : index
    %399 = vector.load %arg11[%c0_256, %c0_257, %c11_258, %c0_259] : memref<1x2x12x144xf32, #tpu.memory_space<vmem>>, vector<1x2x1x144xf32>
    %400 = vector.shape_cast %399 : vector<1x2x1x144xf32> to vector<2x1x144xf32>
    %cst_260 = arith.constant dense<0.000000e+00> : vector<2x8xf32>
    %401 = vector.multi_reduction <add>, %396, %cst_260 [2] : vector<2x8x144xf32> to vector<2x8xf32>
    %402 = vector.shape_cast %401 : vector<2x8xf32> to vector<2x8x1xf32>
    %cst_261 = arith.constant 1.440000e+02 : f32
    %403 = vector.broadcast %cst_261 : f32 to vector<2x8x1xf32>
    %404 = arith.divf %402, %403 : vector<2x8x1xf32>
    %405 = vector.broadcast %404 : vector<2x8x1xf32> to vector<2x8x144xf32>
    %406 = arith.subf %396, %405 : vector<2x8x144xf32>
    %407 = arith.mulf %406, %406 : vector<2x8x144xf32>
    %cst_262 = arith.constant dense<0.000000e+00> : vector<2x8xf32>
    %408 = vector.multi_reduction <add>, %407, %cst_262 [2] : vector<2x8x144xf32> to vector<2x8xf32>
    %409 = vector.shape_cast %408 : vector<2x8xf32> to vector<2x8x1xf32>
    %cst_263 = arith.constant 1.440000e+02 : f32
    %410 = vector.broadcast %cst_263 : f32 to vector<2x8x1xf32>
    %411 = arith.divf %409, %410 : vector<2x8x1xf32>
    %412 = vector.broadcast %404 : vector<2x8x1xf32> to vector<2x8x144xf32>
    %413 = arith.subf %396, %412 : vector<2x8x144xf32>
    %cst_264 = arith.constant 9.99999974E-6 : f32
    %414 = vector.broadcast %cst_264 : f32 to vector<2x8x1xf32>
    %415 = arith.addf %411, %414 : vector<2x8x1xf32>
    %416 = math.rsqrt %415 : vector<2x8x1xf32>
    %417 = vector.broadcast %416 : vector<2x8x1xf32> to vector<2x8x144xf32>
    %418 = arith.mulf %413, %417 : vector<2x8x144xf32>
    %419 = vector.broadcast %398 : vector<2x1x144xf32> to vector<2x8x144xf32>
    %420 = arith.mulf %418, %419 : vector<2x8x144xf32>
    %421 = vector.broadcast %400 : vector<2x1x144xf32> to vector<2x8x144xf32>
    %422 = arith.addf %420, %421 : vector<2x8x144xf32>
    %cst_265 = arith.constant 0.000000e+00 : f32
    %423 = vector.broadcast %cst_265 : f32 to vector<2x8x144xf32>
    %424 = arith.maximumf %422, %423 : vector<2x8x144xf32>
    %c0_266 = arith.constant 0 : index
    %c3_267 = arith.constant 3 : index
    %c0_268 = arith.constant 0 : index
    %c0_269 = arith.constant 0 : index
    %c0_270 = arith.constant 0 : index
    %425 = vector.load %arg5[%c0_266, %c3_267, %c0_268, %c0_269, %c0_270] : memref<1x4x2x144x96xf32, #tpu.memory_space<vmem>>, vector<1x1x2x144x96xf32>
    %426 = vector.shape_cast %425 : vector<1x1x2x144x96xf32> to vector<2x144x96xf32>
    "tpu.trace_start"() <{level = 10 : i32, message = "gbk,gkn->gbn"}> : () -> ()
    %cst_271 = arith.constant dense<0.000000e+00> : vector<2x8x96xf32>
    %427 = tpu.matmul %424, %426, %cst_271 {dimension_numbers = #tpu.dot_dimension_numbers<[2], [1], [1], [2], [0, 0, 0, 1, 1, 2], [0], [0]>} : vector<2x8x144xf32>, vector<2x144x96xf32>, vector<2x8x96xf32> -> vector<2x8x96xf32>
    "tpu.trace_stop"() : () -> ()
    %c0_272 = arith.constant 0 : index
    %c0_273 = arith.constant 0 : index
    %c24 = arith.constant 24 : index
    %c0_274 = arith.constant 0 : index
    %428 = vector.load %arg10[%c0_272, %c0_273, %c24, %c0_274] : memref<1x2x29x96xf32, #tpu.memory_space<vmem>>, vector<1x2x1x96xf32>
    %429 = vector.shape_cast %428 : vector<1x2x1x96xf32> to vector<2x1x96xf32>
    %430 = vector.broadcast %429 : vector<2x1x96xf32> to vector<2x8x96xf32>
    %431 = arith.addf %427, %430 : vector<2x8x96xf32>
    %c0_275 = arith.constant 0 : index
    %c0_276 = arith.constant 0 : index
    %c25 = arith.constant 25 : index
    %c0_277 = arith.constant 0 : index
    %432 = vector.load %arg10[%c0_275, %c0_276, %c25, %c0_277] : memref<1x2x29x96xf32, #tpu.memory_space<vmem>>, vector<1x2x1x96xf32>
    %433 = vector.shape_cast %432 : vector<1x2x1x96xf32> to vector<2x1x96xf32>
    %c0_278 = arith.constant 0 : index
    %c0_279 = arith.constant 0 : index
    %c26 = arith.constant 26 : index
    %c0_280 = arith.constant 0 : index
    %434 = vector.load %arg10[%c0_278, %c0_279, %c26, %c0_280] : memref<1x2x29x96xf32, #tpu.memory_space<vmem>>, vector<1x2x1x96xf32>
    %435 = vector.shape_cast %434 : vector<1x2x1x96xf32> to vector<2x1x96xf32>
    %cst_281 = arith.constant dense<0.000000e+00> : vector<2x8xf32>
    %436 = vector.multi_reduction <add>, %431, %cst_281 [2] : vector<2x8x96xf32> to vector<2x8xf32>
    %437 = vector.shape_cast %436 : vector<2x8xf32> to vector<2x8x1xf32>
    %cst_282 = arith.constant 9.600000e+01 : f32
    %438 = vector.broadcast %cst_282 : f32 to vector<2x8x1xf32>
    %439 = arith.divf %437, %438 : vector<2x8x1xf32>
    %440 = vector.broadcast %439 : vector<2x8x1xf32> to vector<2x8x96xf32>
    %441 = arith.subf %431, %440 : vector<2x8x96xf32>
    %442 = arith.mulf %441, %441 : vector<2x8x96xf32>
    %cst_283 = arith.constant dense<0.000000e+00> : vector<2x8xf32>
    %443 = vector.multi_reduction <add>, %442, %cst_283 [2] : vector<2x8x96xf32> to vector<2x8xf32>
    %444 = vector.shape_cast %443 : vector<2x8xf32> to vector<2x8x1xf32>
    %cst_284 = arith.constant 9.600000e+01 : f32
    %445 = vector.broadcast %cst_284 : f32 to vector<2x8x1xf32>
    %446 = arith.divf %444, %445 : vector<2x8x1xf32>
    %447 = vector.broadcast %439 : vector<2x8x1xf32> to vector<2x8x96xf32>
    %448 = arith.subf %431, %447 : vector<2x8x96xf32>
    %cst_285 = arith.constant 9.99999974E-6 : f32
    %449 = vector.broadcast %cst_285 : f32 to vector<2x8x1xf32>
    %450 = arith.addf %446, %449 : vector<2x8x1xf32>
    %451 = math.rsqrt %450 : vector<2x8x1xf32>
    %452 = vector.broadcast %451 : vector<2x8x1xf32> to vector<2x8x96xf32>
    %453 = arith.mulf %448, %452 : vector<2x8x96xf32>
    %454 = vector.broadcast %433 : vector<2x1x96xf32> to vector<2x8x96xf32>
    %455 = arith.mulf %453, %454 : vector<2x8x96xf32>
    %456 = vector.broadcast %435 : vector<2x1x96xf32> to vector<2x8x96xf32>
    %457 = arith.addf %455, %456 : vector<2x8x96xf32>
    %458 = arith.addf %354, %457 : vector<2x8x96xf32>
    %cst_286 = arith.constant 0.000000e+00 : f32
    %459 = vector.broadcast %cst_286 : f32 to vector<2x8x96xf32>
    %460 = arith.maximumf %458, %459 : vector<2x8x96xf32>
    %c0_287 = arith.constant 0 : index
    %c0_288 = arith.constant 0 : index
    %c0_289 = arith.constant 0 : index
    %c0_290 = arith.constant 0 : index
    %461 = vector.load %arg6[%c0_287, %c0_288, %c0_289, %c0_290] : memref<1x2x96x48xf32, #tpu.memory_space<vmem>>, vector<1x2x96x48xf32>
    %462 = vector.shape_cast %461 : vector<1x2x96x48xf32> to vector<2x96x48xf32>
    "tpu.trace_start"() <{level = 10 : i32, message = "gbk,gkn->gbn"}> : () -> ()
    %cst_291 = arith.constant dense<0.000000e+00> : vector<2x8x48xf32>
    %463 = tpu.matmul %460, %462, %cst_291 {dimension_numbers = #tpu.dot_dimension_numbers<[2], [1], [1], [2], [0, 0, 0, 1, 1, 2], [0], [0]>} : vector<2x8x96xf32>, vector<2x96x48xf32>, vector<2x8x48xf32> -> vector<2x8x48xf32>
    "tpu.trace_stop"() : () -> ()
    %c0_292 = arith.constant 0 : index
    %c0_293 = arith.constant 0 : index
    %c0_294 = arith.constant 0 : index
    %c0_295 = arith.constant 0 : index
    %464 = vector.load %arg12[%c0_292, %c0_293, %c0_294, %c0_295] : memref<1x2x1x48xf32, #tpu.memory_space<vmem>>, vector<1x2x1x48xf32>
    %465 = vector.shape_cast %464 : vector<1x2x1x48xf32> to vector<2x1x48xf32>
    %466 = vector.broadcast %465 : vector<2x1x48xf32> to vector<2x8x48xf32>
    %467 = arith.addf %463, %466 : vector<2x8x48xf32>
    %cst_296 = arith.constant 0.000000e+00 : f32
    %468 = vector.broadcast %cst_296 : f32 to vector<2x8x48xf32>
    %469 = arith.maximumf %467, %468 : vector<2x8x48xf32>
    %c0_297 = arith.constant 0 : index
    %c0_298 = arith.constant 0 : index
    %c0_299 = arith.constant 0 : index
    %c0_300 = arith.constant 0 : index
    %470 = vector.load %arg7[%c0_297, %c0_298, %c0_299, %c0_300] : memref<1x2x48x96xf32, #tpu.memory_space<vmem>>, vector<1x2x48x96xf32>
    %471 = vector.shape_cast %470 : vector<1x2x48x96xf32> to vector<2x48x96xf32>
    "tpu.trace_start"() <{level = 10 : i32, message = "gbk,gkn->gbn"}> : () -> ()
    %cst_301 = arith.constant dense<0.000000e+00> : vector<2x8x96xf32>
    %472 = tpu.matmul %469, %471, %cst_301 {dimension_numbers = #tpu.dot_dimension_numbers<[2], [1], [1], [2], [0, 0, 0, 1, 1, 2], [0], [0]>} : vector<2x8x48xf32>, vector<2x48x96xf32>, vector<2x8x96xf32> -> vector<2x8x96xf32>
    "tpu.trace_stop"() : () -> ()
    %c0_302 = arith.constant 0 : index
    %c0_303 = arith.constant 0 : index
    %c27 = arith.constant 27 : index
    %c0_304 = arith.constant 0 : index
    %473 = vector.load %arg10[%c0_302, %c0_303, %c27, %c0_304] : memref<1x2x29x96xf32, #tpu.memory_space<vmem>>, vector<1x2x1x96xf32>
    %474 = vector.shape_cast %473 : vector<1x2x1x96xf32> to vector<2x1x96xf32>
    %475 = vector.broadcast %474 : vector<2x1x96xf32> to vector<2x8x96xf32>
    %476 = arith.addf %472, %475 : vector<2x8x96xf32>
    %477 = arith.addf %460, %476 : vector<2x8x96xf32>
    %cst_305 = arith.constant 0.000000e+00 : f32
    %478 = vector.broadcast %cst_305 : f32 to vector<2x8x96xf32>
    %479 = arith.maximumf %477, %478 : vector<2x8x96xf32>
    %c0_306 = arith.constant 0 : index
    %c0_307 = arith.constant 0 : index
    %c0_308 = arith.constant 0 : index
    %c0_309 = arith.constant 0 : index
    %480 = vector.load %arg8[%c0_306, %c0_307, %c0_308, %c0_309] : memref<1x2x96x96xf32, #tpu.memory_space<vmem>>, vector<1x2x96x96xf32>
    %481 = vector.shape_cast %480 : vector<1x2x96x96xf32> to vector<2x96x96xf32>
    "tpu.trace_start"() <{level = 10 : i32, message = "gbk,gkn->gbn"}> : () -> ()
    %cst_310 = arith.constant dense<0.000000e+00> : vector<2x8x96xf32>
    %482 = tpu.matmul %479, %481, %cst_310 {dimension_numbers = #tpu.dot_dimension_numbers<[2], [1], [1], [2], [0, 0, 0, 1, 1, 2], [0], [0]>} : vector<2x8x96xf32>, vector<2x96x96xf32>, vector<2x8x96xf32> -> vector<2x8x96xf32>
    "tpu.trace_stop"() : () -> ()
    %c0_311 = arith.constant 0 : index
    %c0_312 = arith.constant 0 : index
    %c28 = arith.constant 28 : index
    %c0_313 = arith.constant 0 : index
    %483 = vector.load %arg10[%c0_311, %c0_312, %c28, %c0_313] : memref<1x2x29x96xf32, #tpu.memory_space<vmem>>, vector<1x2x1x96xf32>
    %484 = vector.shape_cast %483 : vector<1x2x1x96xf32> to vector<2x1x96xf32>
    %485 = vector.broadcast %484 : vector<2x1x96xf32> to vector<2x8x96xf32>
    %486 = arith.addf %482, %485 : vector<2x8x96xf32>
    %cst_314 = arith.constant 0.000000e+00 : f32
    %487 = vector.broadcast %cst_314 : f32 to vector<2x8x96xf32>
    %488 = arith.maximumf %486, %487 : vector<2x8x96xf32>
    %c0_315 = arith.constant 0 : index
    %c0_316 = arith.constant 0 : index
    %c0_317 = arith.constant 0 : index
    %c0_318 = arith.constant 0 : index
    %489 = vector.load %arg9[%c0_315, %c0_316, %c0_317, %c0_318] : memref<1x2x96x1xf32, #tpu.memory_space<vmem>>, vector<1x2x96x1xf32>
    %490 = vector.shape_cast %489 : vector<1x2x96x1xf32> to vector<2x96x1xf32>
    "tpu.trace_start"() <{level = 10 : i32, message = "gbk,gkn->gbn"}> : () -> ()
    %cst_319 = arith.constant dense<0.000000e+00> : vector<2x8x1xf32>
    %491 = tpu.matmul %488, %490, %cst_319 {dimension_numbers = #tpu.dot_dimension_numbers<[2], [1], [1], [2], [0, 0, 0, 1, 1, 2], [0], [0]>} : vector<2x8x96xf32>, vector<2x96x1xf32>, vector<2x8x1xf32> -> vector<2x8x1xf32>
    "tpu.trace_stop"() : () -> ()
    %c0_320 = arith.constant 0 : index
    %c0_321 = arith.constant 0 : index
    %c0_322 = arith.constant 0 : index
    %c0_323 = arith.constant 0 : index
    %492 = vector.load %arg13[%c0_320, %c0_321, %c0_322, %c0_323] : memref<1x2x1x1xf32, #tpu.memory_space<vmem>>, vector<1x2x1x1xf32>
    %493 = vector.shape_cast %492 : vector<1x2x1x1xf32> to vector<2x1x1xf32>
    %494 = vector.broadcast %493 : vector<2x1x1xf32> to vector<2x8x1xf32>
    %495 = arith.addf %491, %494 : vector<2x8x1xf32>
    %c0_324 = arith.constant 0 : index
    %c0_325 = arith.constant 0 : index
    %c0_326 = arith.constant 0 : index
    %496 = vector.load %arg14[%c0_324, %c0_325, %c0_326] : memref<2x8x1xf32, #tpu.memory_space<vmem>>, vector<2x8x1xf32>
    tpu.vector_store %arg14[%c0_324, %c0_325, %c0_326], %495 {strides = array<i32>} : memref<2x8x1xf32, #tpu.memory_space<vmem>>, vector<2x8x1xf32>,
    return
  }
  func.func @transform_0(%arg0: i32) -> (i32, i32, i32, i32) {
    %c0_i32 = arith.constant 0 : i32
    %c0_i32_0 = arith.constant 0 : i32
    %c0_i32_1 = arith.constant 0 : i32
    %c0_i32_2 = arith.constant 0 : i32
    return %arg0, %c0_i32, %c0_i32_0, %c0_i32_1 : i32, i32, i32, i32
  }
  func.func @transform_1(%arg0: i32) -> (i32, i32, i32, i32) {
    %c0_i32 = arith.constant 0 : i32
    %c0_i32_0 = arith.constant 0 : i32
    %c0_i32_1 = arith.constant 0 : i32
    %c0_i32_2 = arith.constant 0 : i32
    return %arg0, %c0_i32, %c0_i32_0, %c0_i32_1 : i32, i32, i32, i32
  }
  func.func @transform_2(%arg0: i32) -> (i32, i32, i32, i32, i32) {
    %c0_i32 = arith.constant 0 : i32
    %c0_i32_0 = arith.constant 0 : i32
    %c0_i32_1 = arith.constant 0 : i32
    %c0_i32_2 = arith.constant 0 : i32
    %c0_i32_3 = arith.constant 0 : i32
    return %arg0, %c0_i32, %c0_i32_0, %c0_i32_1, %c0_i32_2 : i32, i32, i32, i32, i32
  }
  func.func @transform_3(%arg0: i32) -> (i32, i32, i32, i32, i32) {
    %c0_i32 = arith.constant 0 : i32
    %c0_i32_0 = arith.constant 0 : i32
    %c0_i32_1 = arith.constant 0 : i32
    %c0_i32_2 = arith.constant 0 : i32
    %c0_i32_3 = arith.constant 0 : i32
    return %arg0, %c0_i32, %c0_i32_0, %c0_i32_1, %c0_i32_2 : i32, i32, i32, i32, i32
  }
  func.func @transform_4(%arg0: i32) -> (i32, i32, i32, i32, i32) {
    %c0_i32 = arith.constant 0 : i32
    %c0_i32_0 = arith.constant 0 : i32
    %c0_i32_1 = arith.constant 0 : i32
    %c0_i32_2 = arith.constant 0 : i32
    %c0_i32_3 = arith.constant 0 : i32
    return %arg0, %c0_i32, %c0_i32_0, %c0_i32_1, %c0_i32_2 : i32, i32, i32, i32, i32
  }
  func.func @transform_5(%arg0: i32) -> (i32, i32, i32, i32) {
    %c0_i32 = arith.constant 0 : i32
    %c0_i32_0 = arith.constant 0 : i32
    %c0_i32_1 = arith.constant 0 : i32
    %c0_i32_2 = arith.constant 0 : i32
    return %arg0, %c0_i32, %c0_i32_0, %c0_i32_1 : i32, i32, i32, i32
  }
  func.func @transform_6(%arg0: i32) -> (i32, i32, i32, i32) {
    %c0_i32 = arith.constant 0 : i32
    %c0_i32_0 = arith.constant 0 : i32
    %c0_i32_1 = arith.constant 0 : i32
    %c0_i32_2 = arith.constant 0 : i32
    return %arg0, %c0_i32, %c0_i32_0, %c0_i32_1 : i32, i32, i32, i32
  }
  func.func @transform_7(%arg0: i32) -> (i32, i32, i32, i32) {
    %c0_i32 = arith.constant 0 : i32
    %c0_i32_0 = arith.constant 0 : i32
    %c0_i32_1 = arith.constant 0 : i32
    %c0_i32_2 = arith.constant 0 : i32
    return %arg0, %c0_i32, %c0_i32_0, %c0_i32_1 : i32, i32, i32, i32
  }
  func.func @transform_8(%arg0: i32) -> (i32, i32, i32, i32) {
    %c0_i32 = arith.constant 0 : i32
    %c0_i32_0 = arith.constant 0 : i32
    %c0_i32_1 = arith.constant 0 : i32
    %c0_i32_2 = arith.constant 0 : i32
    return %arg0, %c0_i32, %c0_i32_0, %c0_i32_1 : i32, i32, i32, i32
  }
  func.func @transform_9(%arg0: i32) -> (i32, i32, i32, i32) {
    %c0_i32 = arith.constant 0 : i32
    %c0_i32_0 = arith.constant 0 : i32
    %c0_i32_1 = arith.constant 0 : i32
    %c0_i32_2 = arith.constant 0 : i32
    return %arg0, %c0_i32, %c0_i32_0, %c0_i32_1 : i32, i32, i32, i32
  }
  func.func @transform_10(%arg0: i32) -> (i32, i32, i32, i32) {
    %c0_i32 = arith.constant 0 : i32
    %c0_i32_0 = arith.constant 0 : i32
    %c0_i32_1 = arith.constant 0 : i32
    %c0_i32_2 = arith.constant 0 : i32
    return %arg0, %c0_i32, %c0_i32_0, %c0_i32_1 : i32, i32, i32, i32
  }
  func.func @transform_11(%arg0: i32) -> (i32, i32, i32, i32) {
    %c0_i32 = arith.constant 0 : i32
    %c0_i32_0 = arith.constant 0 : i32
    %c0_i32_1 = arith.constant 0 : i32
    %c0_i32_2 = arith.constant 0 : i32
    return %arg0, %c0_i32, %c0_i32_0, %c0_i32_1 : i32, i32, i32, i32
  }
  func.func @transform_12(%arg0: i32) -> (i32, i32, i32, i32) {
    %c0_i32 = arith.constant 0 : i32
    %c0_i32_0 = arith.constant 0 : i32
    %c0_i32_1 = arith.constant 0 : i32
    %c0_i32_2 = arith.constant 0 : i32
    return %arg0, %c0_i32, %c0_i32_0, %c0_i32_1 : i32, i32, i32, i32
  }
  func.func @transform_13(%arg0: i32) -> (i32, i32, i32) {
    %c0_i32 = arith.constant 0 : i32
    %c0_i32_0 = arith.constant 0 : i32
    %c0_i32_1 = arith.constant 0 : i32
    return %arg0, %c0_i32, %c0_i32_0 : i32, i32, i32
  }
}

</mosaic_0001>

<llo_original>
// kernel: dora_forward.1
$region0: #{dora_forward.1}
  #allocation0 [shape = 'u32[]', space=smem, size = 0x4, offset = 0x4, fixed_abs, tag = 'smem constant byte address 0x4 - core index']
  #allocation1 [shape = 'u32[144,128]{1,0:T(1,128)}', space=vmem, size = 0x12000, scoped, tag = 'internal scratch']
  %s0 = inlined_call_operand.vmem [shape: f32[2,2,8,10], index: 0, kind: input, shape index: {}]
  %s1 = inlined_call_operand.vmem [shape: f32[2,2,10,96], index: 1, kind: input, shape index: {}]
  %s2 = inlined_call_operand.vmem [shape: f32[2,4,2,96,96], index: 2, kind: input, shape index: {}]
  %s3 = inlined_call_operand.vmem [shape: f32[2,4,2,96,144], index: 3, kind: input, shape index: {}]
  %s4 = inlined_call_operand.vmem [shape: f32[2,4,2,144,96], index: 4, kind: input, shape index: {}]
  %s5 = inlined_call_operand.vmem [shape: f32[2,2,96,48], index: 5, kind: input, shape index: {}]
  %s6 = inlined_call_operand.vmem [shape: f32[2,2,48,96], index: 6, kind: input, shape index: {}]
  %s7 = inlined_call_operand.vmem [shape: f32[2,2,96,96], index: 7, kind: input, shape index: {}]
  %s8 = inlined_call_operand.vmem [shape: f32[2,2,96,1], index: 8, kind: input, shape index: {}]
  %s9 = inlined_call_operand.vmem [shape: f32[2,2,29,96], index: 9, kind: input, shape index: {}]
  %s10 = inlined_call_operand.vmem [shape: f32[2,2,12,144], index: 10, kind: input, shape index: {}]
  %s11 = inlined_call_operand.vmem [shape: f32[2,2,1,48], index: 11, kind: input, shape index: {}]
  %s12 = inlined_call_operand.vmem [shape: f32[2,2,1,1], index: 12, kind: input, shape index: {}]
  %s13 = inlined_call_operand.vmem [shape: f32[4,8,1], index: 13, kind: output, shape index: {}]
  %s14 = sld [smem:[#allocation0]]
  $region85: #{dora_forward.1} parent=0
    _
  %s16 = ssub.s32 1, %s14
  %s17 = scalar_select 0, %s16, %s14
  loop: start=0, step=1, limit=4
  $region2: #{dora_forward.1} parent=0 // loop_pre_header
    _
  $region3: #{dora_forward.1} parent=0 // loop_header
    %s19 = sphi 0, %s23
    %p20 = scmp.ge.s32.totalorder %s19, 4
    %s29 = sphi 0, %s31
    %s32 = sphi 0, %s29
    %s33 = sphi 0, %s32
    %s49 = sphi 0, %s33
    %s55 = sphi 0, %s57
    %s58 = sphi 0, %s55
    %s59 = sphi 0, %s58
    %s75 = sphi 0, %s59
    %s81 = sphi 0, %s83
    %s84 = sphi 0, %s81
    %s85 = sphi 0, %s84
    %s101 = sphi 0, %s85
    %s107 = sphi 0, %s109
    %s110 = sphi 0, %s107
    %s111 = sphi 0, %s110
    %s127 = sphi 0, %s111
    %s133 = sphi 0, %s135
    %s136 = sphi 0, %s133
    %s137 = sphi 0, %s136
    %s153 = sphi 0, %s137
    %s159 = sphi 0, %s161
    %s162 = sphi 0, %s159
    %s163 = sphi 0, %s162
    %s179 = sphi 0, %s163
    %s185 = sphi 0, %s187
    %s188 = sphi 0, %s185
    %s189 = sphi 0, %s188
    %s205 = sphi 0, %s189
    %s211 = sphi 0, %s213
    %s214 = sphi 0, %s211
    %s215 = sphi 0, %s214
    %s231 = sphi 0, %s215
    %s237 = sphi 0, %s239
    %s240 = sphi 0, %s237
    %s241 = sphi 0, %s240
    %s257 = sphi 0, %s241
    %s263 = sphi 0, %s265
    %s266 = sphi 0, %s263
    %s267 = sphi 0, %s266
    %s283 = sphi 0, %s267
    %s289 = sphi 0, %s291
    %s292 = sphi 0, %s289
    %s293 = sphi 0, %s292
    %s309 = sphi 0, %s293
    %s315 = sphi 0, %s317
    %s318 = sphi 0, %s315
    %s319 = sphi 0, %s318
    %s335 = sphi 0, %s319
    %s341 = sphi 0, %s343
    %s344 = sphi 0, %s341
    %s345 = sphi 0, %s344
    %s361 = sphi 0, %s345
    %s367 = sphi 0, %s369
    %s370 = sphi 0, %s367
    %s371 = sphi 0, %s370
    %s387 = sphi 0, %s371
  $region4: #{dora_forward.1} parent=0 // loop_header_branch
    %22 = sbr.rel (%p20) target = $region8
  $region5: #{dora_forward.1} parent=0 // loop_body
    %s24 = ssub.s32 %s19, 1
    %s25 = ssub.s32 %s19, 2
    %s26 = sadd.s32 %s19, 1
    %s27 = ssub.s32 %s19, %s26
    %p28 = scmp.eq.s32.totalorder %s27, 0
    %s30 = sadd.s32 %s29, 1
    %s31 = scalar_select %p28, %s29, %s30
    %p34 = pneg %p28
    %p35 = scmp.eq.s32.totalorder %s19, 1
    %p36 = por %p34, %p35
    %p37 = scmp.ne.s32.totalorder %s29, %s32
    %p38 = scmp.eq.s32.totalorder %s19, 0
    %p39 = por %p37, %p38
    %p40 = scmp.ne.s32.totalorder %s29, %s32
    %p41 = scmp.eq.s32.totalorder %s24, 1
    %p42 = por %p40, %p41
    %p43 = scmp.ne.s32.totalorder %s32, %s33
    %p44 = scmp.eq.s32.totalorder %s24, 0
    %p45 = por %p43, %p44
    %p46 = scmp.ne.s32.totalorder %s32, %s33
    %p47 = scmp.eq.s32.totalorder %s25, 1
    %p48 = por %p46, %p47
    %p50 = scmp.ne.s32.totalorder %s33, %s49
    %p51 = scmp.eq.s32.totalorder %s25, 0
    %p52 = por %p50, %p51
    %s53 = ssub.s32 %s19, %s26
    %p54 = scmp.eq.s32.totalorder %s53, 0
    %s56 = sadd.s32 %s55, 1
    %s57 = scalar_select %p54, %s55, %s56
    %p60 = pneg %p54
    %p61 = scmp.eq.s32.totalorder %s19, 1
    %p62 = por %p60, %p61
    %p63 = scmp.ne.s32.totalorder %s55, %s58
    %p64 = scmp.eq.s32.totalorder %s19, 0
    %p65 = por %p63, %p64
    %p66 = scmp.ne.s32.totalorder %s55, %s58
    %p67 = scmp.eq.s32.totalorder %s24, 1
    %p68 = por %p66, %p67
    %p69 = scmp.ne.s32.totalorder %s58, %s59
    %p70 = scmp.eq.s32.totalorder %s24, 0
    %p71 = por %p69, %p70
    %p72 = scmp.ne.s32.totalorder %s58, %s59
    %p73 = scmp.eq.s32.totalorder %s25, 1
    %p74 = por %p72, %p73
    %p76 = scmp.ne.s32.totalorder %s59, %s75
    %p77 = scmp.eq.s32.totalorder %s25, 0
    %p78 = por %p76, %p77
    %s79 = ssub.s32 %s19, %s26
    %p80 = scmp.eq.s32.totalorder %s79, 0
    %s82 = sadd.s32 %s81, 1
    %s83 = scalar_select %p80, %s81, %s82
    %p86 = pneg %p80
    %p87 = scmp.eq.s32.totalorder %s19, 1
    %p88 = por %p86, %p87
    %p89 = scmp.ne.s32.totalorder %s81, %s84
    %p90 = scmp.eq.s32.totalorder %s19, 0
    %p91 = por %p89, %p90
    %p92 = scmp.ne.s32.totalorder %s81, %s84
    %p93 = scmp.eq.s32.totalorder %s24, 1
    %p94 = por %p92, %p93
    %p95 = scmp.ne.s32.totalorder %s84, %s85
    %p96 = scmp.eq.s32.totalorder %s24, 0
    %p97 = por %p95, %p96
    %p98 = scmp.ne.s32.totalorder %s84, %s85
    %p99 = scmp.eq.s32.totalorder %s25, 1
    %p100 = por %p98, %p99
    %p102 = scmp.ne.s32.totalorder %s85, %s101
    %p103 = scmp.eq.s32.totalorder %s25, 0
    %p104 = por %p102, %p103
    %s105 = ssub.s32 %s19, %s26
    %p106 = scmp.eq.s32.totalorder %s105, 0
    %s108 = sadd.s32 %s107, 1
    %s109 = scalar_select %p106, %s107, %s108
    %p112 = pneg %p106
    %p113 = scmp.eq.s32.totalorder %s19, 1
    %p114 = por %p112, %p113
    %p115 = scmp.ne.s32.totalorder %s107, %s110
    %p116 = scmp.eq.s32.totalorder %s19, 0
    %p117 = por %p115, %p116
    %p118 = scmp.ne.s32.totalorder %s107, %s110
    %p119 = scmp.eq.s32.totalorder %s24, 1
    %p120 = por %p118, %p119
    %p121 = scmp.ne.s32.totalorder %s110, %s111
    %p122 = scmp.eq.s32.totalorder %s24, 0
    %p123 = por %p121, %p122
    %p124 = scmp.ne.s32.totalorder %s110, %s111
    %p125 = scmp.eq.s32.totalorder %s25, 1
    %p126 = por %p124, %p125
    %p128 = scmp.ne.s32.totalorder %s111, %s127
    %p129 = scmp.eq.s32.totalorder %s25, 0
    %p130 = por %p128, %p129
    %s131 = ssub.s32 %s19, %s26
    %p132 = scmp.eq.s32.totalorder %s131, 0
    %s134 = sadd.s32 %s133, 1
    %s135 = scalar_select %p132, %s133, %s134
    %p138 = pneg %p132
    %p139 = scmp.eq.s32.totalorder %s19, 1
    %p140 = por %p138, %p139
    %p141 = scmp.ne.s32.totalorder %s133, %s136
    %p142 = scmp.eq.s32.totalorder %s19, 0
    %p143 = por %p141, %p142
    %p144 = scmp.ne.s32.totalorder %s133, %s136
    %p145 = scmp.eq.s32.totalorder %s24, 1
    %p146 = por %p144, %p145
    %p147 = scmp.ne.s32.totalorder %s136, %s137
    %p148 = scmp.eq.s32.totalorder %s24, 0
    %p149 = por %p147, %p148
    %p150 = scmp.ne.s32.totalorder %s136, %s137
    %p151 = scmp.eq.s32.totalorder %s25, 1
    %p152 = por %p150, %p151
    %p154 = scmp.ne.s32.totalorder %s137, %s153
    %p155 = scmp.eq.s32.totalorder %s25, 0
    %p156 = por %p154, %p155
    %s157 = ssub.s32 %s19, %s26
    %p158 = scmp.eq.s32.totalorder %s157, 0
    %s160 = sadd.s32 %s159, 1
    %s161 = scalar_select %p158, %s159, %s160
    %p164 = pneg %p158
    %p165 = scmp.eq.s32.totalorder %s19, 1
    %p166 = por %p164, %p165
    %p167 = scmp.ne.s32.totalorder %s159, %s162
    %p168 = scmp.eq.s32.totalorder %s19, 0
    %p169 = por %p167, %p168
    %p170 = scmp.ne.s32.totalorder %s159, %s162
    %p171 = scmp.eq.s32.totalorder %s24, 1
    %p172 = por %p170, %p171
    %p173 = scmp.ne.s32.totalorder %s162, %s163
    %p174 = scmp.eq.s32.totalorder %s24, 0
    %p175 = por %p173, %p174
    %p176 = scmp.ne.s32.totalorder %s162, %s163
    %p177 = scmp.eq.s32.totalorder %s25, 1
    %p178 = por %p176, %p177
    %p180 = scmp.ne.s32.totalorder %s163, %s179
    %p181 = scmp.eq.s32.totalorder %s25, 0
    %p182 = por %p180, %p181
    %s183 = ssub.s32 %s19, %s26
    %p184 = scmp.eq.s32.totalorder %s183, 0
    %s186 = sadd.s32 %s185, 1
    %s187 = scalar_select %p184, %s185, %s186
    %p190 = pneg %p184
    %p191 = scmp.eq.s32.totalorder %s19, 1
    %p192 = por %p190, %p191
    %p193 = scmp.ne.s32.totalorder %s185, %s188
    %p194 = scmp.eq.s32.totalorder %s19, 0
    %p195 = por %p193, %p194
    %p196 = scmp.ne.s32.totalorder %s185, %s188
    %p197 = scmp.eq.s32.totalorder %s24, 1
    %p198 = por %p196, %p197
    %p199 = scmp.ne.s32.totalorder %s188, %s189
    %p200 = scmp.eq.s32.totalorder %s24, 0
    %p201 = por %p199, %p200
    %p202 = scmp.ne.s32.totalorder %s188, %s189
    %p203 = scmp.eq.s32.totalorder %s25, 1
    %p204 = por %p202, %p203
    %p206 = scmp.ne.s32.totalorder %s189, %s205
    %p207 = scmp.eq.s32.totalorder %s25, 0
    %p208 = por %p206, %p207
    %s209 = ssub.s32 %s19, %s26
    %p210 = scmp.eq.s32.totalorder %s209, 0
    %s212 = sadd.s32 %s211, 1
    %s213 = scalar_select %p210, %s211, %s212
    %p216 = pneg %p210
    %p217 = scmp.eq.s32.totalorder %s19, 1
    %p218 = por %p216, %p217
    %p219 = scmp.ne.s32.totalorder %s211, %s214
    %p220 = scmp.eq.s32.totalorder %s19, 0
    %p221 = por %p219, %p220
    %p222 = scmp.ne.s32.totalorder %s211, %s214
    %p223 = scmp.eq.s32.totalorder %s24, 1
    %p224 = por %p222, %p223
    %p225 = scmp.ne.s32.totalorder %s214, %s215
    %p226 = scmp.eq.s32.totalorder %s24, 0
    %p227 = por %p225, %p226
    %p228 = scmp.ne.s32.totalorder %s214, %s215
    %p229 = scmp.eq.s32.totalorder %s25, 1
    %p230 = por %p228, %p229
    %p232 = scmp.ne.s32.totalorder %s215, %s231
    %p233 = scmp.eq.s32.totalorder %s25, 0
    %p234 = por %p232, %p233
    %s235 = ssub.s32 %s19, %s26
    %p236 = scmp.eq.s32.totalorder %s235, 0
    %s238 = sadd.s32 %s237, 1
    %s239 = scalar_select %p236, %s237, %s238
    %p242 = pneg %p236
    %p243 = scmp.eq.s32.totalorder %s19, 1
    %p244 = por %p242, %p243
    %p245 = scmp.ne.s32.totalorder %s237, %s240
    %p246 = scmp.eq.s32.totalorder %s19, 0
    %p247 = por %p245, %p246
    %p248 = scmp.ne.s32.totalorder %s237, %s240
    %p249 = scmp.eq.s32.totalorder %s24, 1
    %p250 = por %p248, %p249
    %p251 = scmp.ne.s32.totalorder %s240, %s241
    %p252 = scmp.eq.s32.totalorder %s24, 0
    %p253 = por %p251, %p252
    %p254 = scmp.ne.s32.totalorder %s240, %s241
    %p255 = scmp.eq.s32.totalorder %s25, 1
    %p256 = por %p254, %p255
    %p258 = scmp.ne.s32.totalorder %s241, %s257
    %p259 = scmp.eq.s32.totalorder %s25, 0
    %p260 = por %p258, %p259
    %s261 = ssub.s32 %s19, %s26
    %p262 = scmp.eq.s32.totalorder %s261, 0
    %s264 = sadd.s32 %s263, 1
    %s265 = scalar_select %p262, %s263, %s264
    %p268 = pneg %p262
    %p269 = scmp.eq.s32.totalorder %s19, 1
    %p270 = por %p268, %p269
    %p271 = scmp.ne.s32.totalorder %s263, %s266
    %p272 = scmp.eq.s32.totalorder %s19, 0
    %p273 = por %p271, %p272
    %p274 = scmp.ne.s32.totalorder %s263, %s266
    %p275 = scmp.eq.s32.totalorder %s24, 1
    %p276 = por %p274, %p275
    %p277 = scmp.ne.s32.totalorder %s266, %s267
    %p278 = scmp.eq.s32.totalorder %s24, 0
    %p279 = por %p277, %p278
    %p280 = scmp.ne.s32.totalorder %s266, %s267
    %p281 = scmp.eq.s32.totalorder %s25, 1
    %p282 = por %p280, %p281
    %p284 = scmp.ne.s32.totalorder %s267, %s283
    %p285 = scmp.eq.s32.totalorder %s25, 0
    %p286 = por %p284, %p285
    %s287 = ssub.s32 %s19, %s26
    %p288 = scmp.eq.s32.totalorder %s287, 0
    %s290 = sadd.s32 %s289, 1
    %s291 = scalar_select %p288, %s289, %s290
    %p294 = pneg %p288
    %p295 = scmp.eq.s32.totalorder %s19, 1
    %p296 = por %p294, %p295
    %p297 = scmp.ne.s32.totalorder %s289, %s292
    %p298 = scmp.eq.s32.totalorder %s19, 0
    %p299 = por %p297, %p298
    %p300 = scmp.ne.s32.totalorder %s289, %s292
    %p301 = scmp.eq.s32.totalorder %s24, 1
    %p302 = por %p300, %p301
    %p303 = scmp.ne.s32.totalorder %s292, %s293
    %p304 = scmp.eq.s32.totalorder %s24, 0
    %p305 = por %p303, %p304
    %p306 = scmp.ne.s32.totalorder %s292, %s293
    %p307 = scmp.eq.s32.totalorder %s25, 1
    %p308 = por %p306, %p307
    %p310 = scmp.ne.s32.totalorder %s293, %s309
    %p311 = scmp.eq.s32.totalorder %s25, 0
    %p312 = por %p310, %p311
    %s313 = ssub.s32 %s19, %s26
    %p314 = scmp.eq.s32.totalorder %s313, 0
    %s316 = sadd.s32 %s315, 1
    %s317 = scalar_select %p314, %s315, %s316
    %p320 = pneg %p314
    %p321 = scmp.eq.s32.totalorder %s19, 1
    %p322 = por %p320, %p321
    %p323 = scmp.ne.s32.totalorder %s315, %s318
    %p324 = scmp.eq.s32.totalorder %s19, 0
    %p325 = por %p323, %p324
    %p326 = scmp.ne.s32.totalorder %s315, %s318
    %p327 = scmp.eq.s32.totalorder %s24, 1
    %p328 = por %p326, %p327
    %p329 = scmp.ne.s32.totalorder %s318, %s319
    %p330 = scmp.eq.s32.totalorder %s24, 0
    %p331 = por %p329, %p330
    %p332 = scmp.ne.s32.totalorder %s318, %s319
    %p333 = scmp.eq.s32.totalorder %s25, 1
    %p334 = por %p332, %p333
    %p336 = scmp.ne.s32.totalorder %s319, %s335
    %p337 = scmp.eq.s32.totalorder %s25, 0
    %p338 = por %p336, %p337
    %s339 = ssub.s32 %s19, %s26
    %p340 = scmp.eq.s32.totalorder %s339, 0
    %s342 = sadd.s32 %s341, 1
    %s343 = scalar_select %p340, %s341, %s342
    %p346 = pneg %p340
    %p347 = scmp.eq.s32.totalorder %s19, 1
    %p348 = por %p346, %p347
    %p349 = scmp.ne.s32.totalorder %s341, %s344
    %p350 = scmp.eq.s32.totalorder %s19, 0
    %p351 = por %p349, %p350
    %p352 = scmp.ne.s32.totalorder %s341, %s344
    %p353 = scmp.eq.s32.totalorder %s24, 1
    %p354 = por %p352, %p353
    %p355 = scmp.ne.s32.totalorder %s344, %s345
    %p356 = scmp.eq.s32.totalorder %s24, 0
    %p357 = por %p355, %p356
    %p358 = scmp.ne.s32.totalorder %s344, %s345
    %p359 = scmp.eq.s32.totalorder %s25, 1
    %p360 = por %p358, %p359
    %p362 = scmp.ne.s32.totalorder %s345, %s361
    %p363 = scmp.eq.s32.totalorder %s25, 0
    %p364 = por %p362, %p363
    %s365 = ssub.s32 %s19, %s26
    %p366 = scmp.eq.s32.totalorder %s365, 0
    %s368 = sadd.s32 %s367, 1
    %s369 = scalar_select %p366, %s367, %s368
    %p372 = pneg %p366
    %p373 = scmp.eq.s32.totalorder %s19, 1
    %p374 = por %p372, %p373
    %p375 = scmp.ne.s32.totalorder %s367, %s370
    %p376 = scmp.eq.s32.totalorder %s19, 0
    %p377 = por %p375, %p376
    %p378 = scmp.ne.s32.totalorder %s367, %s370
    %p379 = scmp.eq.s32.totalorder %s24, 1
    %p380 = por %p378, %p379
    %p381 = scmp.ne.s32.totalorder %s370, %s371
    %p382 = scmp.eq.s32.totalorder %s24, 0
    %p383 = por %p381, %p382
    %p384 = scmp.ne.s32.totalorder %s370, %s371
    %p385 = scmp.eq.s32.totalorder %s25, 1
    %p386 = por %p384, %p385
    %p388 = scmp.ne.s32.totalorder %s371, %s387
    %p389 = scmp.eq.s32.totalorder %s25, 0
    %p390 = por %p388, %p389
    %p391 = scmp.le.s32.totalorder 1, %s19
    %p392 = scmp.lt.s32.totalorder %s19, 3
    %p393 = pnand %p391, %p392
    %p394 = pneg %p393
    // Predicated region
    $region9: #{dora_forward.1} parent=5 // pred_check
      _
    $region10: #{dora_forward.1} parent=5 // pred_check_branch
      %396 = sbr.rel (%p393) target = $region12
    $region11: #{dora_forward.1} parent=5 // pred_region
      %s397 = ssub.s32 %s19, 1
    $region12: #{dora_forward.1} parent=5 // pred_fallthru
      _
    %p398 = scmp.lt.s32.totalorder %s19, 2
    // Predicated region
    $region13: #{dora_forward.1} parent=5 // pred_check
      %p399 = pneg %p398
    $region14: #{dora_forward.1} parent=5 // pred_check_branch
      %401 = sbr.rel (%p399) target = $region16
    $region15: #{dora_forward.1} parent=5 // pred_region
      // Predicated region
      $region17: #{dora_forward.1} parent=15 // pred_check
        %p402 = pneg %p39
      $region18: #{dora_forward.1} parent=15 // pred_check_branch
        %404 = sbr.rel (%p402) target = $region20
      $region19: #{dora_forward.1} parent=15 // pred_region
        %p405 = scmp.lt.s32.totalorder %s19, 1
        %s406 = scalar_select %p405, %s19, 1
        %s407 = smul.addr %s406, 2
        %s408 = smul.addr %s407, 8
        %s409 = scalar_lea.vmem %s0, %s408
      $region20: #{dora_forward.1} parent=15 // pred_fallthru
        _
      // Predicated region
      $region21: #{dora_forward.1} parent=15 // pred_check
        %p410 = pneg %p65
      $region22: #{dora_forward.1} parent=15 // pred_check_branch
        %412 = sbr.rel (%p410) target = $region24
      $region23: #{dora_forward.1} parent=15 // pred_region
        %p413 = scmp.lt.s32.totalorder %s19, 1
        %s414 = scalar_select %p413, %s19, 1
        %s415 = smul.addr %s414, 4
        %s416 = smul.addr %s415, 8
        %s417 = scalar_lea.vmem %s1, %s416
      $region24: #{dora_forward.1} parent=15 // pred_fallthru
        _
      // Predicated region
      $region25: #{dora_forward.1} parent=15 // pred_check
        %p418 = pneg %p91
      $region26: #{dora_forward.1} parent=15 // pred_check_branch
        %420 = sbr.rel (%p418) target = $region28
      $region27: #{dora_forward.1} parent=15 // pred_region
        %p421 = scmp.lt.s32.totalorder %s19, 1
        %s422 = scalar_select %p421, %s19, 1
        %s423 = smul.addr %s422, 96
        %s424 = smul.addr %s423, 8
        %s425 = scalar_lea.vmem %s2, %s424
      $region28: #{dora_forward.1} parent=15 // pred_fallthru
        _
      // Predicated region
      $region29: #{dora_forward.1} parent=15 // pred_check
        %p426 = pneg %p117
      $region30: #{dora_forward.1} parent=15 // pred_check_branch
        %428 = sbr.rel (%p426) target = $region32
      $region31: #{dora_forward.1} parent=15 // pred_region
        %p429 = scmp.lt.s32.totalorder %s19, 1
        %s430 = scalar_select %p429, %s19, 1
        %s431 = smul.addr %s430, 192
        %s432 = smul.addr %s431, 8
        %s433 = scalar_lea.vmem %s3, %s432
      $region32: #{dora_forward.1} parent=15 // pred_fallthru
        _
      // Predicated region
      $region33: #{dora_forward.1} parent=15 // pred_check
        %p434 = pneg %p143
      $region34: #{dora_forward.1} parent=15 // pred_check_branch
        %436 = sbr.rel (%p434) target = $region36
      $region35: #{dora_forward.1} parent=15 // pred_region
        %p437 = scmp.lt.s32.totalorder %s19, 1
        %s438 = scalar_select %p437, %s19, 1
        %s439 = smul.addr %s438, 144
        %s440 = smul.addr %s439, 8
        %s441 = scalar_lea.vmem %s4, %s440
      $region36: #{dora_forward.1} parent=15 // pred_fallthru
        _
      // Predicated region
      $region37: #{dora_forward.1} parent=15 // pred_check
        %p442 = pneg %p169
      $region38: #{dora_forward.1} parent=15 // pred_check_branch
        %444 = sbr.rel (%p442) target = $region40
      $region39: #{dora_forward.1} parent=15 // pred_region
        %p445 = scmp.lt.s32.totalorder %s19, 1
        %s446 = scalar_select %p445, %s19, 1
        %s447 = smul.addr %s446, 24
        %s448 = smul.addr %s447, 8
        %s449 = scalar_lea.vmem %s5, %s448
      $region40: #{dora_forward.1} parent=15 // pred_fallthru
        _
      // Predicated region
      $region41: #{dora_forward.1} parent=15 // pred_check
        %p450 = pneg %p195
      $region42: #{dora_forward.1} parent=15 // pred_check_branch
        %452 = sbr.rel (%p450) target = $region44
      $region43: #{dora_forward.1} parent=15 // pred_region
        %p453 = scmp.lt.s32.totalorder %s19, 1
        %s454 = scalar_select %p453, %s19, 1
        %s455 = smul.addr %s454, 12
        %s456 = smul.addr %s455, 8
        %s457 = scalar_lea.vmem %s6, %s456
      $region44: #{dora_forward.1} parent=15 // pred_fallthru
        _
      // Predicated region
      $region45: #{dora_forward.1} parent=15 // pred_check
        %p458 = pneg %p221
      $region46: #{dora_forward.1} parent=15 // pred_check_branch
        %460 = sbr.rel (%p458) target = $region48
      $region47: #{dora_forward.1} parent=15 // pred_region
        %p461 = scmp.lt.s32.totalorder %s19, 1
        %s462 = scalar_select %p461, %s19, 1
        %s463 = smul.addr %s462, 24
        %s464 = smul.addr %s463, 8
        %s465 = scalar_lea.vmem %s7, %s464
      $region48: #{dora_forward.1} parent=15 // pred_fallthru
        _
      // Predicated region
      $region49: #{dora_forward.1} parent=15 // pred_check
        %p466 = pneg %p247
      $region50: #{dora_forward.1} parent=15 // pred_check_branch
        %468 = sbr.rel (%p466) target = $region52
      $region51: #{dora_forward.1} parent=15 // pred_region
        %p469 = scmp.lt.s32.totalorder %s19, 1
        %s470 = scalar_select %p469, %s19, 1
        %s471 = smul.addr %s470, 24
        %s472 = smul.addr %s471, 8
        %s473 = scalar_lea.vmem %s8, %s472
      $region52: #{dora_forward.1} parent=15 // pred_fallthru
        _
      // Predicated region
      $region53: #{dora_forward.1} parent=15 // pred_check
        %p474 = pneg %p273
      $region54: #{dora_forward.1} parent=15 // pred_check_branch
        %476 = sbr.rel (%p474) target = $region56
      $region55: #{dora_forward.1} parent=15 // pred_region
        %p477 = scmp.lt.s32.totalorder %s19, 1
        %s478 = scalar_select %p477, %s19, 1
        %s479 = smul.addr %s478, 8
        %s480 = smul.addr %s479, 8
        %s481 = scalar_lea.vmem %s9, %s480
      $region56: #{dora_forward.1} parent=15 // pred_fallthru
        _
      // Predicated region
      $region57: #{dora_forward.1} parent=15 // pred_check
        %p482 = pneg %p299
      $region58: #{dora_forward.1} parent=15 // pred_check_branch
        %484 = sbr.rel (%p482) target = $region60
      $region59: #{dora_forward.1} parent=15 // pred_region
        %p485 = scmp.lt.s32.totalorder %s19, 1
        %s486 = scalar_select %p485, %s19, 1
        %s487 = smul.addr %s486, 8
        %s488 = smul.addr %s487, 8
        %s489 = scalar_lea.vmem %s10, %s488
      $region60: #{dora_forward.1} parent=15 // pred_fallthru
        _
      // Predicated region
      $region61: #{dora_forward.1} parent=15 // pred_check
        %p490 = pneg %p325
      $region62: #{dora_forward.1} parent=15 // pred_check_branch
        %492 = sbr.rel (%p490) target = $region64
      $region63: #{dora_forward.1} parent=15 // pred_region
        %p493 = scmp.lt.s32.totalorder %s19, 1
        %s494 = scalar_select %p493, %s19, 1
        %s495 = smul.addr %s494, 2
        %s496 = scalar_lea.vmem %s11, %s495
      $region64: #{dora_forward.1} parent=15 // pred_fallthru
        _
      // Predicated region
      $region65: #{dora_forward.1} parent=15 // pred_check
        %p497 = pneg %p351
      $region66: #{dora_forward.1} parent=15 // pred_check_branch
        %499 = sbr.rel (%p497) target = $region68
      $region67: #{dora_forward.1} parent=15 // pred_region
        %p500 = scmp.lt.s32.totalorder %s19, 1
        %s501 = scalar_select %p500, %s19, 1
        %s502 = smul.addr %s501, 2
        %s503 = scalar_lea.vmem %s12, %s502
      $region68: #{dora_forward.1} parent=15 // pred_fallthru
        _
    $region16: #{dora_forward.1} parent=5 // pred_fallthru
      _
    %p504 = scmp.le.s32.totalorder 1, %s19
    %p505 = scmp.lt.s32.totalorder %s19, 3
    %p506 = pnand %p504, %p505
    %p507 = pneg %p506
    // Predicated region
    $region69: #{dora_forward.1} parent=5 // pred_check
      _
    $region70: #{dora_forward.1} parent=5 // pred_check_branch
      %509 = sbr.rel (%p506) target = $region72
    $region71: #{dora_forward.1} parent=5 // pred_region
      %s510 = ssub.s32 %s19, 1
      %p511 = scmp.lt.s32.totalorder %s24, 1
      %s512 = scalar_select %p511, %s24, 1
      %s513 = smul.addr %s512, 2
      %s514 = smul.addr %s513, 8
      %s515 = scalar_lea.vmem %s0, %s514
      %p516 = pneg %p45
      %p517 = pneg %p42
      %p518 = scmp.lt.s32.totalorder %s24, 1
      %s519 = scalar_select %p518, %s24, 1
      %s520 = smul.addr %s519, 4
      %s521 = smul.addr %s520, 8
      %s522 = scalar_lea.vmem %s1, %s521
      %p523 = pneg %p71
      %p524 = pneg %p68
      %p525 = scmp.lt.s32.totalorder %s24, 1
      %s526 = scalar_select %p525, %s24, 1
      %s527 = smul.addr %s526, 96
      %s528 = smul.addr %s527, 8
      %s529 = scalar_lea.vmem %s2, %s528
      %p530 = pneg %p97
      %p531 = pneg %p94
      %p532 = scmp.lt.s32.totalorder %s24, 1
      %s533 = scalar_select %p532, %s24, 1
      %s534 = smul.addr %s533, 192
      %s535 = smul.addr %s534, 8
      %s536 = scalar_lea.vmem %s3, %s535
      %p537 = pneg %p123
      %p538 = pneg %p120
      %p539 = scmp.lt.s32.totalorder %s24, 1
      %s540 = scalar_select %p539, %s24, 1
      %s541 = smul.addr %s540, 144
      %s542 = smul.addr %s541, 8
      %s543 = scalar_lea.vmem %s4, %s542
      %p544 = pneg %p149
      %p545 = pneg %p146
      %p546 = scmp.lt.s32.totalorder %s24, 1
      %s547 = scalar_select %p546, %s24, 1
      %s548 = smul.addr %s547, 24
      %s549 = smul.addr %s548, 8
      %s550 = scalar_lea.vmem %s5, %s549
      %p551 = pneg %p175
      %p552 = pneg %p172
      %p553 = scmp.lt.s32.totalorder %s24, 1
      %s554 = scalar_select %p553, %s24, 1
      %s555 = smul.addr %s554, 12
      %s556 = smul.addr %s555, 8
      %s557 = scalar_lea.vmem %s6, %s556
      %p558 = pneg %p201
      %p559 = pneg %p198
      %p560 = scmp.lt.s32.totalorder %s24, 1
      %s561 = scalar_select %p560, %s24, 1
      %s562 = smul.addr %s561, 24
      %s563 = smul.addr %s562, 8
      %s564 = scalar_lea.vmem %s7, %s563
      %p565 = pneg %p227
      %p566 = pneg %p224
      %p567 = scmp.lt.s32.totalorder %s24, 1
      %s568 = scalar_select %p567, %s24, 1
      %s569 = smul.addr %s568, 24
      %s570 = smul.addr %s569, 8
      %s571 = scalar_lea.vmem %s8, %s570
      %p572 = pneg %p253
      %p573 = pneg %p250
      %p574 = scmp.lt.s32.totalorder %s24, 1
      %s575 = scalar_select %p574, %s24, 1
      %s576 = smul.addr %s575, 8
      %s577 = smul.addr %s576, 8
      %s578 = scalar_lea.vmem %s9, %s577
      %p579 = pneg %p279
      %p580 = pneg %p276
      %p581 = scmp.lt.s32.totalorder %s24, 1
      %s582 = scalar_select %p581, %s24, 1
      %s583 = smul.addr %s582, 8
      %s584 = smul.addr %s583, 8
      %s585 = scalar_lea.vmem %s10, %s584
      %p586 = pneg %p305
      %p587 = pneg %p302
      %p588 = scmp.lt.s32.totalorder %s24, 1
      %s589 = scalar_select %p588, %s24, 1
      %s590 = smul.addr %s589, 2
      %s591 = scalar_lea.vmem %s11, %s590
      %p592 = pneg %p331
      %p593 = pneg %p328
      %p594 = scmp.lt.s32.totalorder %s24, 1
      %s595 = scalar_select %p594, %s24, 1
      %s596 = smul.addr %s595, 2
      %s597 = scalar_lea.vmem %s12, %s596
      %p598 = pneg %p357
      %p599 = pneg %p354
      %p600 = pneg %p383
      %p601 = pneg %p380
      %s602 = smul.u32 2, %s24
      %p603 = scmp.lt.s32.totalorder %s602, 3
      %s604 = scalar_select %p603, %s602, 3
      %s605 = smul.addr %s604, 8
      %s606 = scalar_lea.vmem %s13, %s605
      %p607 = scmp.lt.s32.totalorder %s24, 1
      %s608 = scalar_select %p607, %s24, 1
      %s609 = smul.addr %s608, 2
      %s610 = smul.addr %s609, 8
      %s611 = scalar_lea.vmem %s0, %s610
      %p612 = scmp.lt.s32.totalorder %s24, 1
      %s613 = scalar_select %p612, %s24, 1
      %s614 = smul.addr %s613, 4
      %s615 = smul.addr %s614, 8
      %s616 = scalar_lea.vmem %s1, %s615
      %p617 = scmp.lt.s32.totalorder %s24, 1
      %s618 = scalar_select %p617, %s24, 1
      %s619 = smul.addr %s618, 96
      %s620 = smul.addr %s619, 8
      %s621 = scalar_lea.vmem %s2, %s620
      %p622 = scmp.lt.s32.totalorder %s24, 1
      %s623 = scalar_select %p622, %s24, 1
      %s624 = smul.addr %s623, 192
      %s625 = smul.addr %s624, 8
      %s626 = scalar_lea.vmem %s3, %s625
      %p627 = scmp.lt.s32.totalorder %s24, 1
      %s628 = scalar_select %p627, %s24, 1
      %s629 = smul.addr %s628, 144
      %s630 = smul.addr %s629, 8
      %s631 = scalar_lea.vmem %s4, %s630
      %p632 = scmp.lt.s32.totalorder %s24, 1
      %s633 = scalar_select %p632, %s24, 1
      %s634 = smul.addr %s633, 24
      %s635 = smul.addr %s634, 8
      %s636 = scalar_lea.vmem %s5, %s635
      %p637 = scmp.lt.s32.totalorder %s24, 1
      %s638 = scalar_select %p637, %s24, 1
      %s639 = smul.addr %s638, 12
      %s640 = smul.addr %s639, 8
      %s641 = scalar_lea.vmem %s6, %s640
      %p642 = scmp.lt.s32.totalorder %s24, 1
      %s643 = scalar_select %p642, %s24, 1
      %s644 = smul.addr %s643, 24
      %s645 = smul.addr %s644, 8
      %s646 = scalar_lea.vmem %s7, %s645
      %p647 = scmp.lt.s32.totalorder %s24, 1
      %s648 = scalar_select %p647, %s24, 1
      %s649 = smul.addr %s648, 24
      %s650 = smul.addr %s649, 8
      %s651 = scalar_lea.vmem %s8, %s650
      %p652 = scmp.lt.s32.totalorder %s24, 1
      %s653 = scalar_select %p652, %s24, 1
      %s654 = smul.addr %s653, 8
      %s655 = smul.addr %s654, 8
      %s656 = scalar_lea.vmem %s9, %s655
      %p657 = scmp.lt.s32.totalorder %s24, 1
      %s658 = scalar_select %p657, %s24, 1
      %s659 = smul.addr %s658, 8
      %s660 = smul.addr %s659, 8
      %s661 = scalar_lea.vmem %s10, %s660
      %p662 = scmp.lt.s32.totalorder %s24, 1
      %s663 = scalar_select %p662, %s24, 1
      %s664 = smul.addr %s663, 2
      %s665 = scalar_lea.vmem %s11, %s664
      %p666 = scmp.lt.s32.totalorder %s24, 1
      %s667 = scalar_select %p666, %s24, 1
      %s668 = smul.addr %s667, 2
      %s669 = scalar_lea.vmem %s12, %s668
      %s670 = smul.u32 2, %s24
      %p671 = scmp.lt.s32.totalorder %s670, 3
      %s672 = scalar_select %p671, %s670, 3
      %s673 = smul.addr %s672, 8
      %s674 = scalar_lea.vmem %s13, %s673
      %s675 = smul.u32 2, %s24
      %v676 = vld [vmem:[%s611] sm:$0xff]
      %v677 = vld [vmem:[%s611 + $0x8] sm:$0xff]
      %v678 = vld [vmem:[%s616] sm:$0xff]
      %v679 = vld [vmem:[%s616 + $0x8] sm:$0x3]
      %v680 = vld [vmem:[%s616 + $0x10] sm:$0xff]
      %v681 = vld [vmem:[%s616 + $0x18] sm:$0x3]
      %v682 = vld [vmem:[%s656] sm:$0x1]
      %v683 = vld [vmem:[%s656 + $0x20] sm:$0x1]
      %v684 = vlaneseq
      %v685 = vshrl.u32 %v684, 7
      %v686 = vsub.s32 0, %v685
      %v687 = vrot.slane %v682, %v686
      %v688 = vlaneseq
      %v689 = vshrl.u32 %v688, 7
      %v690 = vsub.s32 0, %v689
      %v691 = vrot.slane %v683, %v690
      %vm692 = vcmask 80896
      %v694 = vsel %vm692, %v676, 0
      %vm696 = vcmask 1041408
      %v698 = vsel %vm696, %v679, 0
      %700 = vmatprep.subr.mxu0 0.0
      %701 = vmatpush1.msra.mxu0 %v678
      %702 = vmatprep.subr.mxu0 0.0
      %703 = vmatpush1.msra.mxu0 %v698
      %704 = vmatprep.subr.mxu0 0.0
      %705 = vmatpush1.msra.mxu0 0.0
      %706 = vmatprep.subr.mxu0 0.0
      %707 = vmatpush1.msra.mxu0 0.0
      %708 = vmatprep.subr.mxu0 0.0
      %709 = vmatpush1.msra.mxu0 0.0
      %710 = vmatprep.subr.mxu0 0.0
      %711 = vmatpush1.msra.mxu0 0.0
      %712 = vmatprep.subr.mxu0 0.0
      %713 = vmatpush1.msra.mxu0 0.0
      %714 = vmatprep.subr.mxu0 0.0
      %715 = vmatpush1.msra.mxu0 0.0
      %716 = vmatprep.subr.mxu0 0.0
      %717 = vmatpush1.msra.mxu0 0.0
      %718 = vmatprep.subr.mxu0 0.0
      %719 = vmatpush1.msra.mxu0 0.0
      %720 = vmatprep.subr.mxu0 0.0
      %721 = vmatpush1.msra.mxu0 0.0
      %722 = vmatprep.subr.mxu0 0.0
      %723 = vmatpush1.msra.mxu0 0.0
      %724 = vmatprep.subr.mxu0 0.0
      %725 = vmatpush1.msra.mxu0 0.0
      %726 = vmatprep.subr.mxu0 0.0
      %727 = vmatpush1.msra.mxu0 0.0
      %728 = vmatprep.subr.mxu0 0.0
      %729 = vmatpush1.msra.mxu0 0.0
      %730 = vmatprep.subr.mxu0 0.0
      %731 = vmatpush1.msra.mxu0 0.0
      %732 = vmatprep.subr.mxu0 0.0
      %733 = vmatpush1.msra.mxu0 0.0
      %734 = vmatprep.subr.mxu0 0.0
      %735 = vmatpush1.msra.mxu0 0.0
      %736 = vmatprep.subr.mxu0 0.0
      %737 = vmatpush1.msra.mxu0 0.0
      %738 = vmatprep.subr.mxu0 0.0
      %739 = vmatpush1.msra.mxu0 0.0
      %740 = vmatprep.subr.mxu0 0.0
      %741 = vmatpush1.msra.mxu0 0.0
      %742 = vmatprep.subr.mxu0 0.0
      %743 = vmatpush1.msra.mxu0 0.0
      %744 = vmatprep.subr.mxu0 0.0
      %745 = vmatpush1.msra.mxu0 0.0
      %746 = vmatprep.subr.mxu0 0.0
      %747 = vmatpush1.msra.mxu0 0.0
      %748 = vmatprep.subr.mxu0 0.0
      %749 = vmatpush1.msra.mxu0 0.0
      %750 = vmatprep.subr.mxu0 0.0
      %751 = vmatpush1.msra.mxu0 0.0
      %752 = vmatprep.subr.mxu0 0.0
      %753 = vmatpush1.msra.mxu0 0.0
      %754 = vmatprep.subr.mxu0 0.0
      %755 = vmatpush1.msra.mxu0 0.0
      %756 = vmatprep.subr.mxu0 0.0
      %757 = vmatpush1.msra.mxu0 0.0
      %758 = vmatprep.subr.mxu0 0.0
      %759 = vmatpush1.msra.mxu0 0.0
      %760 = vmatprep.subr.mxu0 0.0
      %761 = vmatpush1.msra.mxu0 0.0
      %762 = vmatprep.subr.mxu0 0.0
      %763 = vmatpush1.msra.mxu0 0.0
      %764 = vmatprep.mubr.f32.mxu0 0.0
      %765 = vmatmul.mubr.f32.gmra.mrb[0].mxu0 %v694
      %v766 = vpop.f32.mrb[0].mxu0
      %v767 = vadd.f32 %v687, %v766
      %v768 = vpop.f32.mrb[0].mxu0
      %769 = vdwg.mxu0
      %v771 = vsel %vm692, %v677, 0
      %v774 = vsel %vm696, %v681, 0
      %776 = vmatprep.subr.mxu0 0.0
      %777 = vmatpush1.msra.mxu0 %v680
      %778 = vmatprep.subr.mxu0 0.0
      %779 = vmatpush1.msra.mxu0 %v774
      %780 = vmatprep.subr.mxu0 0.0
      %781 = vmatpush1.msra.mxu0 0.0
      %782 = vmatprep.subr.mxu0 0.0
      %783 = vmatpush1.msra.mxu0 0.0
      %784 = vmatprep.subr.mxu0 0.0
      %785 = vmatpush1.msra.mxu0 0.0
      %786 = vmatprep.subr.mxu0 0.0
      %787 = vmatpush1.msra.mxu0 0.0
      %788 = vmatprep.subr.mxu0 0.0
      %789 = vmatpush1.msra.mxu0 0.0
      %790 = vmatprep.subr.mxu0 0.0
      %791 = vmatpush1.msra.mxu0 0.0
      %792 = vmatprep.subr.mxu0 0.0
      %793 = vmatpush1.msra.mxu0 0.0
      %794 = vmatprep.subr.mxu0 0.0
      %795 = vmatpush1.msra.mxu0 0.0
      %796 = vmatprep.subr.mxu0 0.0
      %797 = vmatpush1.msra.mxu0 0.0
      %798 = vmatprep.subr.mxu0 0.0
      %799 = vmatpush1.msra.mxu0 0.0
      %800 = vmatprep.subr.mxu0 0.0
      %801 = vmatpush1.msra.mxu0 0.0
      %802 = vmatprep.subr.mxu0 0.0
      %803 = vmatpush1.msra.mxu0 0.0
      %804 = vmatprep.subr.mxu0 0.0
      %805 = vmatpush1.msra.mxu0 0.0
      %806 = vmatprep.subr.mxu0 0.0
      %807 = vmatpush1.msra.mxu0 0.0
      %808 = vmatprep.subr.mxu0 0.0
      %809 = vmatpush1.msra.mxu0 0.0
      %810 = vmatprep.subr.mxu0 0.0
      %811 = vmatpush1.msra.mxu0 0.0
      %812 = vmatprep.subr.mxu0 0.0
      %813 = vmatpush1.msra.mxu0 0.0
      %814 = vmatprep.subr.mxu0 0.0
      %815 = vmatpush1.msra.mxu0 0.0
      %816 = vmatprep.subr.mxu0 0.0
      %817 = vmatpush1.msra.mxu0 0.0
      %818 = vmatprep.subr.mxu0 0.0
      %819 = vmatpush1.msra.mxu0 0.0
      %820 = vmatprep.subr.mxu0 0.0
      %821 = vmatpush1.msra.mxu0 0.0
      %822 = vmatprep.subr.mxu0 0.0
      %823 = vmatpush1.msra.mxu0 0.0
      %824 = vmatprep.subr.mxu0 0.0
      %825 = vmatpush1.msra.mxu0 0.0
      %826 = vmatprep.subr.mxu0 0.0
      %827 = vmatpush1.msra.mxu0 0.0
      %828 = vmatprep.subr.mxu0 0.0
      %829 = vmatpush1.msra.mxu0 0.0
      %830 = vmatprep.subr.mxu0 0.0
      %831 = vmatpush1.msra.mxu0 0.0
      %832 = vmatprep.subr.mxu0 0.0
      %833 = vmatpush1.msra.mxu0 0.0
      %834 = vmatprep.subr.mxu0 0.0
      %835 = vmatpush1.msra.mxu0 0.0
      %836 = vmatprep.subr.mxu0 0.0
      %837 = vmatpush1.msra.mxu0 0.0
      %838 = vmatprep.subr.mxu0 0.0
      %839 = vmatpush1.msra.mxu0 0.0
      %840 = vmatprep.mubr.f32.mxu0 0.0
      %841 = vmatmul.mubr.f32.gmra.mrb[0].mxu0 %v771
      %v842 = vpop.f32.mrb[0].mxu0
      %v843 = vadd.f32 %v691, %v842
      %v844 = vpop.f32.mrb[0].mxu0
      %845 = vdwg.mxu0
      %v846 = vld [vmem:[%s656 + $0x1] sm:$0x1]
      %v847 = vld [vmem:[%s656 + $0x21] sm:$0x1]
      %v848 = vld [vmem:[%s656 + $0x2] sm:$0x1]
      %v849 = vld [vmem:[%s656 + $0x22] sm:$0x1]
      %vm850 = vcmask 785408
      %v851 = vsel %vm850, %v767, 0.0
      %852 = vadd.xlane.f32.xlu0 %v851
      %v853 = vpop.xlane.xlu0 %852
      %v854 = vsel %vm850, %v843, 0.0
      %855 = vadd.xlane.f32.xlu0 %v854
      %v856 = vpop.xlane.xlu0 %855
      %v857 = vrcp.pop 96.0
      %v858 = vmul.f32 %v853, %v857
      %v859 = vmul.f32 %v856, %v857
      %v860 = vsub.f32 %v767, %v858
      %v861 = vsub.f32 %v843, %v859
      %v862 = vmul.f32 %v860, %v860
      %v863 = vmul.f32 %v861, %v861
      %v864 = vsel %vm850, %v862, 0.0
      %865 = vadd.xlane.f32.xlu0 %v864
      %v866 = vpop.xlane.xlu0 %865
      %v867 = vsel %vm850, %v863, 0.0
      %868 = vadd.xlane.f32.xlu0 %v867
      %v869 = vpop.xlane.xlu0 %868
      %v870 = vmul.f32 %v866, %v857
      %v871 = vmul.f32 %v869, %v857
      %v872 = vadd.f32 %v870, 1e-05
      %v873 = vadd.f32 %v871, 1e-05
      %v874 = vrsqrt.pop %v872
      %v875 = vrsqrt.pop %v873
      %v876 = vmul.f32 %v860, %v874
      %v877 = vmul.f32 %v861, %v875
      %v878 = vlaneseq
      %v879 = vshrl.u32 %v878, 7
      %v880 = vsub.s32 0, %v879
      %v881 = vrot.slane %v846, %v880
      %v882 = vlaneseq
      %v883 = vshrl.u32 %v882, 7
      %v884 = vsub.s32 0, %v883
      %v885 = vrot.slane %v847, %v884
      %v886 = vmul.f32 %v876, %v881
      %v887 = vmul.f32 %v877, %v885
      %v888 = vlaneseq
      %v889 = vshrl.u32 %v888, 7
      %v890 = vsub.s32 0, %v889
      %v891 = vrot.slane %v848, %v890
      %v892 = vlaneseq
      %v893 = vshrl.u32 %v892, 7
      %v894 = vsub.s32 0, %v893
      %v895 = vrot.slane %v849, %v894
      %v896 = vadd.f32 %v886, %v891
      %v897 = vadd.f32 %v887, %v895
      %v898 = vmax.f32 %v896, 0.0
      %v899 = vmax.f32 %v897, 0.0
      %v900 = vld [vmem:[%s621] sm:$0xff]
      %v901 = vld [vmem:[%s621 + $0x8] sm:$0xff]
      %v902 = vld [vmem:[%s621 + $0x10] sm:$0xff]
      %v903 = vld [vmem:[%s621 + $0x18] sm:$0xff]
      %v904 = vld [vmem:[%s621 + $0x20] sm:$0xff]
      %v905 = vld [vmem:[%s621 + $0x28] sm:$0xff]
      %v906 = vld [vmem:[%s621 + $0x30] sm:$0xff]
      %v907 = vld [vmem:[%s621 + $0x38] sm:$0xff]
      %v908 = vld [vmem:[%s621 + $0x40] sm:$0xff]
      %v909 = vld [vmem:[%s621 + $0x48] sm:$0xff]
      %v910 = vld [vmem:[%s621 + $0x50] sm:$0xff]
      %v911 = vld [vmem:[%s621 + $0x58] sm:$0xff]
      %v912 = vld [vmem:[%s621 + $0x60] sm:$0xff]
      %v913 = vld [vmem:[%s621 + $0x68] sm:$0xff]
      %v914 = vld [vmem:[%s621 + $0x70] sm:$0xff]
      %v915 = vld [vmem:[%s621 + $0x78] sm:$0xff]
      %v916 = vld [vmem:[%s621 + $0x80] sm:$0xff]
      %v917 = vld [vmem:[%s621 + $0x88] sm:$0xff]
      %v918 = vld [vmem:[%s621 + $0x90] sm:$0xff]
      %v919 = vld [vmem:[%s621 + $0x98] sm:$0xff]
      %v920 = vld [vmem:[%s621 + $0xa0] sm:$0xff]
      %v921 = vld [vmem:[%s621 + $0xa8] sm:$0xff]
      %v922 = vld [vmem:[%s621 + $0xb0] sm:$0xff]
      %v923 = vld [vmem:[%s621 + $0xb8] sm:$0xff]
      %v924 = vld [vmem:[%s656 + $0x3] sm:$0x1]
      %v925 = vld [vmem:[%s656 + $0x23] sm:$0x1]
      %v926 = vlaneseq
      %v927 = vshrl.u32 %v926, 7
      %v928 = vsub.s32 0, %v927
      %v929 = vrot.slane %v924, %v928
      %v930 = vlaneseq
      %v931 = vshrl.u32 %v930, 7
      %v932 = vsub.s32 0, %v931
      %v933 = vrot.slane %v925, %v932
      %v935 = vsel %vm850, %v898, 0
      %937 = vmatprep.subr.mxu0 0.0
      %938 = vmatpush1.msra.mxu0 %v900
      %939 = vmatprep.subr.mxu0 0.0
      %940 = vmatpush1.msra.mxu0 %v901
      %941 = vmatprep.subr.mxu0 0.0
      %942 = vmatpush1.msra.mxu0 %v902
      %943 = vmatprep.subr.mxu0 0.0
      %944 = vmatpush1.msra.mxu0 %v903
      %945 = vmatprep.subr.mxu0 0.0
      %946 = vmatpush1.msra.mxu0 %v904
      %947 = vmatprep.subr.mxu0 0.0
      %948 = vmatpush1.msra.mxu0 %v905
      %949 = vmatprep.subr.mxu0 0.0
      %950 = vmatpush1.msra.mxu0 %v906
      %951 = vmatprep.subr.mxu0 0.0
      %952 = vmatpush1.msra.mxu0 %v907
      %953 = vmatprep.subr.mxu0 0.0
      %954 = vmatpush1.msra.mxu0 %v908
      %955 = vmatprep.subr.mxu0 0.0
      %956 = vmatpush1.msra.mxu0 %v909
      %957 = vmatprep.subr.mxu0 0.0
      %958 = vmatpush1.msra.mxu0 %v910
      %959 = vmatprep.subr.mxu0 0.0
      %960 = vmatpush1.msra.mxu0 %v911
      %961 = vmatprep.subr.mxu0 0.0
      %962 = vmatpush1.msra.mxu0 0.0
      %963 = vmatprep.subr.mxu0 0.0
      %964 = vmatpush1.msra.mxu0 0.0
      %965 = vmatprep.subr.mxu0 0.0
      %966 = vmatpush1.msra.mxu0 0.0
      %967 = vmatprep.subr.mxu0 0.0
      %968 = vmatpush1.msra.mxu0 0.0
      %969 = vmatprep.subr.mxu0 0.0
      %970 = vmatpush1.msra.mxu0 0.0
      %971 = vmatprep.subr.mxu0 0.0
      %972 = vmatpush1.msra.mxu0 0.0
      %973 = vmatprep.subr.mxu0 0.0
      %974 = vmatpush1.msra.mxu0 0.0
      %975 = vmatprep.subr.mxu0 0.0
      %976 = vmatpush1.msra.mxu0 0.0
      %977 = vmatprep.subr.mxu0 0.0
      %978 = vmatpush1.msra.mxu0 0.0
      %979 = vmatprep.subr.mxu0 0.0
      %980 = vmatpush1.msra.mxu0 0.0
      %981 = vmatprep.subr.mxu0 0.0
      %982 = vmatpush1.msra.mxu0 0.0
      %983 = vmatprep.subr.mxu0 0.0
      %984 = vmatpush1.msra.mxu0 0.0
      %985 = vmatprep.subr.mxu0 0.0
      %986 = vmatpush1.msra.mxu0 0.0
      %987 = vmatprep.subr.mxu0 0.0
      %988 = vmatpush1.msra.mxu0 0.0
      %989 = vmatprep.subr.mxu0 0.0
      %990 = vmatpush1.msra.mxu0 0.0
      %991 = vmatprep.subr.mxu0 0.0
      %992 = vmatpush1.msra.mxu0 0.0
      %993 = vmatprep.subr.mxu0 0.0
      %994 = vmatpush1.msra.mxu0 0.0
      %995 = vmatprep.subr.mxu0 0.0
      %996 = vmatpush1.msra.mxu0 0.0
      %997 = vmatprep.subr.mxu0 0.0
      %998 = vmatpush1.msra.mxu0 0.0
      %999 = vmatprep.subr.mxu0 0.0
      %1000 = vmatpush1.msra.mxu0 0.0
      %1001 = vmatprep.mubr.f32.mxu0 0.0
      %1002 = vmatmul.mubr.f32.gmra.mrb[0].mxu0 %v935
      %v1003 = vpop.f32.mrb[0].mxu0
      %v1004 = vadd.f32 %v929, %v1003
      %v1005 = vpop.f32.mrb[0].mxu0
      %1006 = vdwg.mxu0
      %v1008 = vsel %vm850, %v899, 0
      %1010 = vmatprep.subr.mxu0 0.0
      %1011 = vmatpush1.msra.mxu0 %v912
      %1012 = vmatprep.subr.mxu0 0.0
      %1013 = vmatpush1.msra.mxu0 %v913
      %1014 = vmatprep.subr.mxu0 0.0
      %1015 = vmatpush1.msra.mxu0 %v914
      %1016 = vmatprep.subr.mxu0 0.0
      %1017 = vmatpush1.msra.mxu0 %v915
      %1018 = vmatprep.subr.mxu0 0.0
      %1019 = vmatpush1.msra.mxu0 %v916
      %1020 = vmatprep.subr.mxu0 0.0
      %1021 = vmatpush1.msra.mxu0 %v917
      %1022 = vmatprep.subr.mxu0 0.0
      %1023 = vmatpush1.msra.mxu0 %v918
      %1024 = vmatprep.subr.mxu0 0.0
      %1025 = vmatpush1.msra.mxu0 %v919
      %1026 = vmatprep.subr.mxu0 0.0
      %1027 = vmatpush1.msra.mxu0 %v920
      %1028 = vmatprep.subr.mxu0 0.0
      %1029 = vmatpush1.msra.mxu0 %v921
      %1030 = vmatprep.subr.mxu0 0.0
      %1031 = vmatpush1.msra.mxu0 %v922
      %1032 = vmatprep.subr.mxu0 0.0
      %1033 = vmatpush1.msra.mxu0 %v923
      %1034 = vmatprep.subr.mxu0 0.0
      %1035 = vmatpush1.msra.mxu0 0.0
      %1036 = vmatprep.subr.mxu0 0.0
      %1037 = vmatpush1.msra.mxu0 0.0
      %1038 = vmatprep.subr.mxu0 0.0
      %1039 = vmatpush1.msra.mxu0 0.0
      %1040 = vmatprep.subr.mxu0 0.0
      %1041 = vmatpush1.msra.mxu0 0.0
      %1042 = vmatprep.subr.mxu0 0.0
      %1043 = vmatpush1.msra.mxu0 0.0
      %1044 = vmatprep.subr.mxu0 0.0
      %1045 = vmatpush1.msra.mxu0 0.0
      %1046 = vmatprep.subr.mxu0 0.0
      %1047 = vmatpush1.msra.mxu0 0.0
      %1048 = vmatprep.subr.mxu0 0.0
      %1049 = vmatpush1.msra.mxu0 0.0
      %1050 = vmatprep.subr.mxu0 0.0
      %1051 = vmatpush1.msra.mxu0 0.0
      %1052 = vmatprep.subr.mxu0 0.0
      %1053 = vmatpush1.msra.mxu0 0.0
      %1054 = vmatprep.subr.mxu0 0.0
      %1055 = vmatpush1.msra.mxu0 0.0
      %1056 = vmatprep.subr.mxu0 0.0
      %1057 = vmatpush1.msra.mxu0 0.0
      %1058 = vmatprep.subr.mxu0 0.0
      %1059 = vmatpush1.msra.mxu0 0.0
      %1060 = vmatprep.subr.mxu0 0.0
      %1061 = vmatpush1.msra.mxu0 0.0
      %1062 = vmatprep.subr.mxu0 0.0
      %1063 = vmatpush1.msra.mxu0 0.0
      %1064 = vmatprep.subr.mxu0 0.0
      %1065 = vmatpush1.msra.mxu0 0.0
      %1066 = vmatprep.subr.mxu0 0.0
      %1067 = vmatpush1.msra.mxu0 0.0
      %1068 = vmatprep.subr.mxu0 0.0
      %1069 = vmatpush1.msra.mxu0 0.0
      %1070 = vmatprep.subr.mxu0 0.0
      %1071 = vmatpush1.msra.mxu0 0.0
      %1072 = vmatprep.subr.mxu0 0.0
      %1073 = vmatpush1.msra.mxu0 0.0
      %1074 = vmatprep.mubr.f32.mxu0 0.0
      %1075 = vmatmul.mubr.f32.gmra.mrb[0].mxu0 %v1008
      %v1076 = vpop.f32.mrb[0].mxu0
      %v1077 = vadd.f32 %v933, %v1076
      %v1078 = vpop.f32.mrb[0].mxu0
      %1079 = vdwg.mxu0
      %v1080 = vld [vmem:[%s656 + $0x4] sm:$0x1]
      %v1081 = vld [vmem:[%s656 + $0x24] sm:$0x1]
      %v1082 = vld [vmem:[%s656 + $0x5] sm:$0x1]
      %v1083 = vld [vmem:[%s656 + $0x25] sm:$0x1]
      %v1084 = vsel %vm850, %v1004, 0.0
      %1085 = vadd.xlane.f32.xlu0 %v1084
      %v1086 = vpop.xlane.xlu0 %1085
      %v1087 = vsel %vm850, %v1077, 0.0
      %1088 = vadd.xlane.f32.xlu0 %v1087
      %v1089 = vpop.xlane.xlu0 %1088
      %v1090 = vmul.f32 %v1086, %v857
      %v1091 = vmul.f32 %v1089, %v857
      %v1092 = vsub.f32 %v1004, %v1090
      %v1093 = vsub.f32 %v1077, %v1091
      %v1094 = vmul.f32 %v1092, %v1092
      %v1095 = vmul.f32 %v1093, %v1093
      %v1096 = vsel %vm850, %v1094, 0.0
      %1097 = vadd.xlane.f32.xlu0 %v1096
      %v1098 = vpop.xlane.xlu0 %1097
      %v1099 = vsel %vm850, %v1095, 0.0
      %1100 = vadd.xlane.f32.xlu0 %v1099
      %v1101 = vpop.xlane.xlu0 %1100
      %v1102 = vmul.f32 %v1098, %v857
      %v1103 = vmul.f32 %v1101, %v857
      %v1104 = vadd.f32 %v1102, 1e-05
      %v1105 = vadd.f32 %v1103, 1e-05
      %v1106 = vrsqrt.pop %v1104
      %v1107 = vrsqrt.pop %v1105
      %v1108 = vmul.f32 %v1092, %v1106
      %v1109 = vmul.f32 %v1093, %v1107
      %v1110 = vlaneseq
      %v1111 = vshrl.u32 %v1110, 7
      %v1112 = vsub.s32 0, %v1111
      %v1113 = vrot.slane %v1080, %v1112
      %v1114 = vlaneseq
      %v1115 = vshrl.u32 %v1114, 7
      %v1116 = vsub.s32 0, %v1115
      %v1117 = vrot.slane %v1081, %v1116
      %v1118 = vmul.f32 %v1108, %v1113
      %v1119 = vmul.f32 %v1109, %v1117
      %v1120 = vlaneseq
      %v1121 = vshrl.u32 %v1120, 7
      %v1122 = vsub.s32 0, %v1121
      %v1123 = vrot.slane %v1082, %v1122
      %v1124 = vlaneseq
      %v1125 = vshrl.u32 %v1124, 7
      %v1126 = vsub.s32 0, %v1125
      %v1127 = vrot.slane %v1083, %v1126
      %v1128 = vadd.f32 %v1118, %v1123
      %v1129 = vadd.f32 %v1119, %v1127
      %v1130 = vmax.f32 %v1128, 0.0
      %v1131 = vmax.f32 %v1129, 0.0
      %v1132 = vld [vmem:[%s626] sm:$0xff]
      %v1133 = vld [vmem:[%s626 + $0x8] sm:$0xff]
      %v1134 = vld [vmem:[%s626 + $0x10] sm:$0xff]
      %v1135 = vld [vmem:[%s626 + $0x18] sm:$0xff]
      %v1136 = vld [vmem:[%s626 + $0x20] sm:$0xff]
      %v1137 = vld [vmem:[%s626 + $0x28] sm:$0xff]
      %v1138 = vld [vmem:[%s626 + $0x30] sm:$0xff]
      %v1139 = vld [vmem:[%s626 + $0x38] sm:$0xff]
      %v1140 = vld [vmem:[%s626 + $0x40] sm:$0xff]
      %v1141 = vld [vmem:[%s626 + $0x48] sm:$0xff]
      %v1142 = vld [vmem:[%s626 + $0x50] sm:$0xff]
      %v1143 = vld [vmem:[%s626 + $0x58] sm:$0xff]
      %v1144 = vld [vmem:[%s626 + $0x60] sm:$0xff]
      %v1145 = vld [vmem:[%s626 + $0x68] sm:$0xff]
      %v1146 = vld [vmem:[%s626 + $0x70] sm:$0xff]
      %v1147 = vld [vmem:[%s626 + $0x78] sm:$0xff]
      %v1148 = vld [vmem:[%s626 + $0x80] sm:$0xff]
      %v1149 = vld [vmem:[%s626 + $0x88] sm:$0xff]
      %v1150 = vld [vmem:[%s626 + $0x90] sm:$0xff]
      %v1151 = vld [vmem:[%s626 + $0x98] sm:$0xff]
      %v1152 = vld [vmem:[%s626 + $0xa0] sm:$0xff]
      %v1153 = vld [vmem:[%s626 + $0xa8] sm:$0xff]
      %v1154 = vld [vmem:[%s626 + $0xb0] sm:$0xff]
      %v1155 = vld [vmem:[%s626 + $0xb8] sm:$0xff]
      %v1156 = vld [vmem:[%s626 + $0xc0] sm:$0xff]
      %v1157 = vld [vmem:[%s626 + $0xc8] sm:$0xff]
      %v1158 = vld [vmem:[%s626 + $0xd0] sm:$0xff]
      %v1159 = vld [vmem:[%s626 + $0xd8] sm:$0xff]
      %v1160 = vld [vmem:[%s626 + $0xe0] sm:$0xff]
      %v1161 = vld [vmem:[%s626 + $0xe8] sm:$0xff]
      %v1162 = vld [vmem:[%s626 + $0xf0] sm:$0xff]
      %v1163 = vld [vmem:[%s626 + $0xf8] sm:$0xff]
      %v1164 = vld [vmem:[%s626 + $0x100] sm:$0xff]
      %v1165 = vld [vmem:[%s626 + $0x108] sm:$0xff]
      %v1166 = vld [vmem:[%s626 + $0x110] sm:$0xff]
      %v1167 = vld [vmem:[%s626 + $0x118] sm:$0xff]
      %v1168 = vld [vmem:[%s626 + $0x120] sm:$0xff]
      %v1169 = vld [vmem:[%s626 + $0x128] sm:$0xff]
      %v1170 = vld [vmem:[%s626 + $0x130] sm:$0xff]
      %v1171 = vld [vmem:[%s626 + $0x138] sm:$0xff]
      %v1172 = vld [vmem:[%s626 + $0x140] sm:$0xff]
      %v1173 = vld [vmem:[%s626 + $0x148] sm:$0xff]
      %v1174 = vld [vmem:[%s626 + $0x150] sm:$0xff]
      %v1175 = vld [vmem:[%s626 + $0x158] sm:$0xff]
      %v1176 = vld [vmem:[%s626 + $0x160] sm:$0xff]
      %v1177 = vld [vmem:[%s626 + $0x168] sm:$0xff]
      %v1178 = vld [vmem:[%s626 + $0x170] sm:$0xff]
      %v1179 = vld [vmem:[%s626 + $0x178] sm:$0xff]
      %v1180 = vld [vmem:[%s661] ss:$8 sm:$0x3]
      %s1181 = scalar_lea.vmem %s661, 32
      %v1182 = vld [vmem:[%s1181] ss:$8 sm:$0x3]
      %v1185 = vlaneseq
      %v1186 = vshrl.u32 %v1185, 7
      %v1187 = vsub.s32 0, %v1186
      %v1188 = vrot.slane %v1180, %v1187
      %v1189 = vlaneseq
      %v1190 = vshrl.u32 %v1189, 7
      %v1191 = vsub.s32 1, %v1190
      %v1192 = vrot.slane %v1180, %v1191
      %v1193 = vlaneseq
      %v1194 = vshrl.u32 %v1193, 7
      %v1195 = vsub.s32 0, %v1194
      %v1196 = vrot.slane %v1182, %v1195
      %v1197 = vlaneseq
      %v1198 = vshrl.u32 %v1197, 7
      %v1199 = vsub.s32 1, %v1198
      %v1200 = vrot.slane %v1182, %v1199
      %v1206 = vsel %vm850, %v1130, 0
      %1208 = vmatprep.subr.mxu0 %v1133
      %1209 = vmatpush1.msra.mxu0 %v1132
      %1210 = vmatprep.subr.mxu0 %v1135
      %1211 = vmatpush1.msra.mxu0 %v1134
      %1212 = vmatprep.subr.mxu0 %v1137
      %1213 = vmatpush1.msra.mxu0 %v1136
      %1214 = vmatprep.subr.mxu0 %v1139
      %1215 = vmatpush1.msra.mxu0 %v1138
      %1216 = vmatprep.subr.mxu0 %v1141
      %1217 = vmatpush1.msra.mxu0 %v1140
      %1218 = vmatprep.subr.mxu0 %v1143
      %1219 = vmatpush1.msra.mxu0 %v1142
      %1220 = vmatprep.subr.mxu0 %v1145
      %1221 = vmatpush1.msra.mxu0 %v1144
      %1222 = vmatprep.subr.mxu0 %v1147
      %1223 = vmatpush1.msra.mxu0 %v1146
      %1224 = vmatprep.subr.mxu0 %v1149
      %1225 = vmatpush1.msra.mxu0 %v1148
      %1226 = vmatprep.subr.mxu0 %v1151
      %1227 = vmatpush1.msra.mxu0 %v1150
      %1228 = vmatprep.subr.mxu0 %v1153
      %1229 = vmatpush1.msra.mxu0 %v1152
      %1230 = vmatprep.subr.mxu0 %v1155
      %1231 = vmatpush1.msra.mxu0 %v1154
      %1232 = vmatprep.subr.mxu0 0.0
      %1233 = vmatpush1.msra.mxu0 0.0
      %1234 = vmatprep.subr.mxu0 0.0
      %1235 = vmatpush1.msra.mxu0 0.0
      %1236 = vmatprep.subr.mxu0 0.0
      %1237 = vmatpush1.msra.mxu0 0.0
      %1238 = vmatprep.subr.mxu0 0.0
      %1239 = vmatpush1.msra.mxu0 0.0
      %1240 = vmatprep.subr.mxu0 0.0
      %1241 = vmatpush1.msra.mxu0 0.0
      %1242 = vmatprep.subr.mxu0 0.0
      %1243 = vmatpush1.msra.mxu0 0.0
      %1244 = vmatprep.subr.mxu0 0.0
      %1245 = vmatpush1.msra.mxu0 0.0
      %1246 = vmatprep.subr.mxu0 0.0
      %1247 = vmatpush1.msra.mxu0 0.0
      %1248 = vmatprep.subr.mxu0 0.0
      %1249 = vmatpush1.msra.mxu0 0.0
      %1250 = vmatprep.subr.mxu0 0.0
      %1251 = vmatpush1.msra.mxu0 0.0
      %1252 = vmatprep.subr.mxu0 0.0
      %1253 = vmatpush1.msra.mxu0 0.0
      %1254 = vmatprep.subr.mxu0 0.0
      %1255 = vmatpush1.msra.mxu0 0.0
      %1256 = vmatprep.subr.mxu0 0.0
      %1257 = vmatpush1.msra.mxu0 0.0
      %1258 = vmatprep.subr.mxu0 0.0
      %1259 = vmatpush1.msra.mxu0 0.0
      %1260 = vmatprep.subr.mxu0 0.0
      %1261 = vmatpush1.msra.mxu0 0.0
      %1262 = vmatprep.subr.mxu0 0.0
      %1263 = vmatpush1.msra.mxu0 0.0
      %1264 = vmatprep.subr.mxu0 0.0
      %1265 = vmatpush1.msra.mxu0 0.0
      %1266 = vmatprep.subr.mxu0 0.0
      %1267 = vmatpush1.msra.mxu0 0.0
      %1268 = vmatprep.subr.mxu0 0.0
      %1269 = vmatpush1.msra.mxu0 0.0
      %1270 = vmatprep.subr.mxu0 0.0
      %1271 = vmatpush1.msra.mxu0 0.0
      %1272 = vmatprep.mubr.f32.mxu0 0.0
      %1273 = vmatmul.mubr.f32.gmra.mrb[0].mxu0 %v1206
      %v1274 = vpop.f32.mrb[0].mxu0
      %v1275 = vadd.f32 %v1188, %v1274
      %v1276 = vpop.f32.mrb[0].mxu0
      %v1277 = vadd.f32 %v1192, %v1276
      %1278 = vdwg.mxu0
      %v1280 = vsel %vm850, %v1131, 0
      %1282 = vmatprep.subr.mxu0 %v1157
      %1283 = vmatpush1.msra.mxu0 %v1156
      %1284 = vmatprep.subr.mxu0 %v1159
      %1285 = vmatpush1.msra.mxu0 %v1158
      %1286 = vmatprep.subr.mxu0 %v1161
      %1287 = vmatpush1.msra.mxu0 %v1160
      %1288 = vmatprep.subr.mxu0 %v1163
      %1289 = vmatpush1.msra.mxu0 %v1162
      %1290 = vmatprep.subr.mxu0 %v1165
      %1291 = vmatpush1.msra.mxu0 %v1164
      %1292 = vmatprep.subr.mxu0 %v1167
      %1293 = vmatpush1.msra.mxu0 %v1166
      %1294 = vmatprep.subr.mxu0 %v1169
      %1295 = vmatpush1.msra.mxu0 %v1168
      %1296 = vmatprep.subr.mxu0 %v1171
      %1297 = vmatpush1.msra.mxu0 %v1170
      %1298 = vmatprep.subr.mxu0 %v1173
      %1299 = vmatpush1.msra.mxu0 %v1172
      %1300 = vmatprep.subr.mxu0 %v1175
      %1301 = vmatpush1.msra.mxu0 %v1174
      %1302 = vmatprep.subr.mxu0 %v1177
      %1303 = vmatpush1.msra.mxu0 %v1176
      %1304 = vmatprep.subr.mxu0 %v1179
      %1305 = vmatpush1.msra.mxu0 %v1178
      %1306 = vmatprep.subr.mxu0 0.0
      %1307 = vmatpush1.msra.mxu0 0.0
      %1308 = vmatprep.subr.mxu0 0.0
      %1309 = vmatpush1.msra.mxu0 0.0
      %1310 = vmatprep.subr.mxu0 0.0
      %1311 = vmatpush1.msra.mxu0 0.0
      %1312 = vmatprep.subr.mxu0 0.0
      %1313 = vmatpush1.msra.mxu0 0.0
      %1314 = vmatprep.subr.mxu0 0.0
      %1315 = vmatpush1.msra.mxu0 0.0
      %1316 = vmatprep.subr.mxu0 0.0
      %1317 = vmatpush1.msra.mxu0 0.0
      %1318 = vmatprep.subr.mxu0 0.0
      %1319 = vmatpush1.msra.mxu0 0.0
      %1320 = vmatprep.subr.mxu0 0.0
      %1321 = vmatpush1.msra.mxu0 0.0
      %1322 = vmatprep.subr.mxu0 0.0
      %1323 = vmatpush1.msra.mxu0 0.0
      %1324 = vmatprep.subr.mxu0 0.0
      %1325 = vmatpush1.msra.mxu0 0.0
      %1326 = vmatprep.subr.mxu0 0.0
      %1327 = vmatpush1.msra.mxu0 0.0
      %1328 = vmatprep.subr.mxu0 0.0
      %1329 = vmatpush1.msra.mxu0 0.0
      %1330 = vmatprep.subr.mxu0 0.0
      %1331 = vmatpush1.msra.mxu0 0.0
      %1332 = vmatprep.subr.mxu0 0.0
      %1333 = vmatpush1.msra.mxu0 0.0
      %1334 = vmatprep.subr.mxu0 0.0
      %1335 = vmatpush1.msra.mxu0 0.0
      %1336 = vmatprep.subr.mxu0 0.0
      %1337 = vmatpush1.msra.mxu0 0.0
      %1338 = vmatprep.subr.mxu0 0.0
      %1339 = vmatpush1.msra.mxu0 0.0
      %1340 = vmatprep.subr.mxu0 0.0
      %1341 = vmatpush1.msra.mxu0 0.0
      %1342 = vmatprep.subr.mxu0 0.0
      %1343 = vmatpush1.msra.mxu0 0.0
      %1344 = vmatprep.subr.mxu0 0.0
      %1345 = vmatpush1.msra.mxu0 0.0
      %1346 = vmatprep.mubr.f32.mxu0 0.0
      %1347 = vmatmul.mubr.f32.gmra.mrb[0].mxu0 %v1280
      %v1348 = vpop.f32.mrb[0].mxu0
      %v1349 = vadd.f32 %v1196, %v1348
      %v1350 = vpop.f32.mrb[0].mxu0
      %v1351 = vadd.f32 %v1200, %v1350
      %1352 = vdwg.mxu0
      %s1353 = scalar_lea.vmem %s661, 1
      %v1354 = vld [vmem:[%s1353] ss:$8 sm:$0x3]
      %s1355 = scalar_lea.vmem %s661, 33
      %v1356 = vld [vmem:[%s1355] ss:$8 sm:$0x3]
      %s1357 = scalar_lea.vmem %s661, 2
      %v1358 = vld [vmem:[%s1357] ss:$8 sm:$0x3]
      %s1359 = scalar_lea.vmem %s661, 34
      %v1360 = vld [vmem:[%s1359] ss:$8 sm:$0x3]
      %vm1361 = vcmask 130048
      %v1362 = vsel %vm1361, %v1277, 0.0
      %v1363 = vadd.f32 %v1275, %v1362
      %1364 = vadd.xlane.f32.xlu0 %v1363
      %v1365 = vpop.xlane.xlu0 %1364
      %v1366 = vsel %vm1361, %v1351, 0.0
      %v1367 = vadd.f32 %v1349, %v1366
      %1368 = vadd.xlane.f32.xlu0 %v1367
      %v1369 = vpop.xlane.xlu0 %1368
      %v1370 = vrcp.pop 144.0
      %v1371 = vmul.f32 %v1365, %v1370
      %v1372 = vmul.f32 %v1369, %v1370
      %v1373 = vsub.f32 %v1275, %v1371
      %v1374 = vsub.f32 %v1277, %v1371
      %v1375 = vsub.f32 %v1349, %v1372
      %v1376 = vsub.f32 %v1351, %v1372
      %v1377 = vmul.f32 %v1373, %v1373
      %v1378 = vmul.f32 %v1374, %v1374
      %v1379 = vmul.f32 %v1375, %v1375
      %v1380 = vmul.f32 %v1376, %v1376
      %v1381 = vsel %vm1361, %v1378, 0.0
      %v1382 = vadd.f32 %v1377, %v1381
      %1383 = vadd.xlane.f32.xlu0 %v1382
      %v1384 = vpop.xlane.xlu0 %1383
      %v1385 = vsel %vm1361, %v1380, 0.0
      %v1386 = vadd.f32 %v1379, %v1385
      %1387 = vadd.xlane.f32.xlu0 %v1386
      %v1388 = vpop.xlane.xlu0 %1387
      %v1389 = vmul.f32 %v1384, %v1370
      %v1390 = vmul.f32 %v1388, %v1370
      %v1391 = vadd.f32 %v1389, 1e-05
      %v1392 = vadd.f32 %v1390, 1e-05
      %v1393 = vrsqrt.pop %v1391
      %v1394 = vrsqrt.pop %v1392
      %v1395 = vmul.f32 %v1373, %v1393
      %v1396 = vmul.f32 %v1374, %v1393
      %v1397 = vmul.f32 %v1375, %v1394
      %v1398 = vmul.f32 %v1376, %v1394
      %v1401 = vlaneseq
      %v1402 = vshrl.u32 %v1401, 7
      %v1403 = vsub.s32 0, %v1402
      %v1404 = vrot.slane %v1354, %v1403
      %v1405 = vlaneseq
      %v1406 = vshrl.u32 %v1405, 7
      %v1407 = vsub.s32 1, %v1406
      %v1408 = vrot.slane %v1354, %v1407
      %v1409 = vlaneseq
      %v1410 = vshrl.u32 %v1409, 7
      %v1411 = vsub.s32 0, %v1410
      %v1412 = vrot.slane %v1356, %v1411
      %v1413 = vlaneseq
      %v1414 = vshrl.u32 %v1413, 7
      %v1415 = vsub.s32 1, %v1414
      %v1416 = vrot.slane %v1356, %v1415
      %v1421 = vmul.f32 %v1395, %v1404
      %v1422 = vmul.f32 %v1396, %v1408
      %v1423 = vmul.f32 %v1397, %v1412
      %v1424 = vmul.f32 %v1398, %v1416
      %v1427 = vlaneseq
      %v1428 = vshrl.u32 %v1427, 7
      %v1429 = vsub.s32 0, %v1428
      %v1430 = vrot.slane %v1358, %v1429
      %v1431 = vlaneseq
      %v1432 = vshrl.u32 %v1431, 7
      %v1433 = vsub.s32 1, %v1432
      %v1434 = vrot.slane %v1358, %v1433
      %v1435 = vlaneseq
      %v1436 = vshrl.u32 %v1435, 7
      %v1437 = vsub.s32 0, %v1436
      %v1438 = vrot.slane %v1360, %v1437
      %v1439 = vlaneseq
      %v1440 = vshrl.u32 %v1439, 7
      %v1441 = vsub.s32 1, %v1440
      %v1442 = vrot.slane %v1360, %v1441
      %v1447 = vadd.f32 %v1421, %v1430
      %v1448 = vadd.f32 %v1422, %v1434
      %v1449 = vadd.f32 %v1423, %v1438
      %v1450 = vadd.f32 %v1424, %v1442
      %v1451 = vmax.f32 %v1447, 0.0
      %v1452 = vmax.f32 %v1448, 0.0
      %v1453 = vmax.f32 %v1449, 0.0
      %v1454 = vmax.f32 %v1450, 0.0
      %v1455 = vld [vmem:[%s631] sm:$0xff]
      %v1456 = vld [vmem:[%s631 + $0x8] sm:$0xff]
      %v1457 = vld [vmem:[%s631 + $0x10] sm:$0xff]
      %v1458 = vld [vmem:[%s631 + $0x18] sm:$0xff]
      %v1459 = vld [vmem:[%s631 + $0x20] sm:$0xff]
      %v1460 = vld [vmem:[%s631 + $0x28] sm:$0xff]
      %v1461 = vld [vmem:[%s631 + $0x30] sm:$0xff]
      %v1462 = vld [vmem:[%s631 + $0x38] sm:$0xff]
      %v1463 = vld [vmem:[%s631 + $0x40] sm:$0xff]
      %v1464 = vld [vmem:[%s631 + $0x48] sm:$0xff]
      %v1465 = vld [vmem:[%s631 + $0x50] sm:$0xff]
      %v1466 = vld [vmem:[%s631 + $0x58] sm:$0xff]
      %v1467 = vld [vmem:[%s631 + $0x60] sm:$0xff]
      %v1468 = vld [vmem:[%s631 + $0x68] sm:$0xff]
      %v1469 = vld [vmem:[%s631 + $0x70] sm:$0xff]
      %v1470 = vld [vmem:[%s631 + $0x78] sm:$0xff]
      %v1471 = vld [vmem:[%s631 + $0x80] sm:$0xff]
      %v1472 = vld [vmem:[%s631 + $0x88] sm:$0xff]
      %v1473 = vld [vmem:[%s631 + $0x90] sm:$0xff]
      %v1474 = vld [vmem:[%s631 + $0x98] sm:$0xff]
      %v1475 = vld [vmem:[%s631 + $0xa0] sm:$0xff]
      %v1476 = vld [vmem:[%s631 + $0xa8] sm:$0xff]
      %v1477 = vld [vmem:[%s631 + $0xb0] sm:$0xff]
      %v1478 = vld [vmem:[%s631 + $0xb8] sm:$0xff]
      %v1479 = vld [vmem:[%s631 + $0xc0] sm:$0xff]
      %v1480 = vld [vmem:[%s631 + $0xc8] sm:$0xff]
      %v1481 = vld [vmem:[%s631 + $0xd0] sm:$0xff]
      %v1482 = vld [vmem:[%s631 + $0xd8] sm:$0xff]
      %v1483 = vld [vmem:[%s631 + $0xe0] sm:$0xff]
      %v1484 = vld [vmem:[%s631 + $0xe8] sm:$0xff]
      %v1485 = vld [vmem:[%s631 + $0xf0] sm:$0xff]
      %v1486 = vld [vmem:[%s631 + $0xf8] sm:$0xff]
      %v1487 = vld [vmem:[%s631 + $0x100] sm:$0xff]
      %v1488 = vld [vmem:[%s631 + $0x108] sm:$0xff]
      %v1489 = vld [vmem:[%s631 + $0x110] sm:$0xff]
      %v1490 = vld [vmem:[%s631 + $0x118] sm:$0xff]
      %v1491 = vld [vmem:[%s656 + $0x6] sm:$0x1]
      %v1492 = vld [vmem:[%s656 + $0x26] sm:$0x1]
      %v1493 = vlaneseq
      %v1494 = vshrl.u32 %v1493, 7
      %v1495 = vsub.s32 0, %v1494
      %v1496 = vrot.slane %v1491, %v1495
      %v1497 = vlaneseq
      %v1498 = vshrl.u32 %v1497, 7
      %v1499 = vsub.s32 0, %v1498
      %v1500 = vrot.slane %v1492, %v1499
      %v1502 = vsel %vm1361, %v1452, 0
      %1504 = vmatprep.subr.mxu0 0.0
      %1505 = vmatpush1.msra.mxu0 %v1455
      %1506 = vmatprep.subr.mxu0 0.0
      %1507 = vmatpush1.msra.mxu0 %v1456
      %1508 = vmatprep.subr.mxu0 0.0
      %1509 = vmatpush1.msra.mxu0 %v1457
      %1510 = vmatprep.subr.mxu0 0.0
      %1511 = vmatpush1.msra.mxu0 %v1458
      %1512 = vmatprep.subr.mxu0 0.0
      %1513 = vmatpush1.msra.mxu0 %v1459
      %1514 = vmatprep.subr.mxu0 0.0
      %1515 = vmatpush1.msra.mxu0 %v1460
      %1516 = vmatprep.subr.mxu0 0.0
      %1517 = vmatpush1.msra.mxu0 %v1461
      %1518 = vmatprep.subr.mxu0 0.0
      %1519 = vmatpush1.msra.mxu0 %v1462
      %1520 = vmatprep.subr.mxu0 0.0
      %1521 = vmatpush1.msra.mxu0 %v1463
      %1522 = vmatprep.subr.mxu0 0.0
      %1523 = vmatpush1.msra.mxu0 %v1464
      %1524 = vmatprep.subr.mxu0 0.0
      %1525 = vmatpush1.msra.mxu0 %v1465
      %1526 = vmatprep.subr.mxu0 0.0
      %1527 = vmatpush1.msra.mxu0 %v1466
      %1528 = vmatprep.subr.mxu0 0.0
      %1529 = vmatpush1.msra.mxu0 %v1467
      %1530 = vmatprep.subr.mxu0 0.0
      %1531 = vmatpush1.msra.mxu0 %v1468
      %1532 = vmatprep.subr.mxu0 0.0
      %1533 = vmatpush1.msra.mxu0 %v1469
      %1534 = vmatprep.subr.mxu0 0.0
      %1535 = vmatpush1.msra.mxu0 %v1470
      %1536 = vmatprep.subr.mxu0 0.0
      %1537 = vmatpush1.msra.mxu0 %v1471
      %1538 = vmatprep.subr.mxu0 0.0
      %1539 = vmatpush1.msra.mxu0 %v1472
      %1540 = vmatprep.subr.mxu0 0.0
      %1541 = vmatpush1.msra.mxu0 0.0
      %1542 = vmatprep.subr.mxu0 0.0
      %1543 = vmatpush1.msra.mxu0 0.0
      %1544 = vmatprep.subr.mxu0 0.0
      %1545 = vmatpush1.msra.mxu0 0.0
      %1546 = vmatprep.subr.mxu0 0.0
      %1547 = vmatpush1.msra.mxu0 0.0
      %1548 = vmatprep.subr.mxu0 0.0
      %1549 = vmatpush1.msra.mxu0 0.0
      %1550 = vmatprep.subr.mxu0 0.0
      %1551 = vmatpush1.msra.mxu0 0.0
      %1552 = vmatprep.subr.mxu0 0.0
      %1553 = vmatpush1.msra.mxu0 0.0
      %1554 = vmatprep.subr.mxu0 0.0
      %1555 = vmatpush1.msra.mxu0 0.0
      %1556 = vmatprep.subr.mxu0 0.0
      %1557 = vmatpush1.msra.mxu0 0.0
      %1558 = vmatprep.subr.mxu0 0.0
      %1559 = vmatpush1.msra.mxu0 0.0
      %1560 = vmatprep.subr.mxu0 0.0
      %1561 = vmatpush1.msra.mxu0 0.0
      %1562 = vmatprep.subr.mxu0 0.0
      %1563 = vmatpush1.msra.mxu0 0.0
      %1564 = vmatprep.subr.mxu0 0.0
      %1565 = vmatpush1.msra.mxu0 0.0
      %1566 = vmatprep.subr.mxu0 0.0
      %1567 = vmatpush1.msra.mxu0 0.0
      %1568 = vmatprep.mubr.f32.mxu0 %v1502
      %1569 = vmatmul.mubr.f32.gmra.mrb[0].mxu0 %v1451
      %v1570 = vpop.f32.mrb[0].mxu0
      %v1571 = vadd.f32 %v1496, %v1570
      %v1572 = vpop.f32.mrb[0].mxu0
      %1573 = vdwg.mxu0
      %v1575 = vsel %vm1361, %v1454, 0
      %1577 = vmatprep.subr.mxu0 0.0
      %1578 = vmatpush1.msra.mxu0 %v1473
      %1579 = vmatprep.subr.mxu0 0.0
      %1580 = vmatpush1.msra.mxu0 %v1474
      %1581 = vmatprep.subr.mxu0 0.0
      %1582 = vmatpush1.msra.mxu0 %v1475
      %1583 = vmatprep.subr.mxu0 0.0
      %1584 = vmatpush1.msra.mxu0 %v1476
      %1585 = vmatprep.subr.mxu0 0.0
      %1586 = vmatpush1.msra.mxu0 %v1477
      %1587 = vmatprep.subr.mxu0 0.0
      %1588 = vmatpush1.msra.mxu0 %v1478
      %1589 = vmatprep.subr.mxu0 0.0
      %1590 = vmatpush1.msra.mxu0 %v1479
      %1591 = vmatprep.subr.mxu0 0.0
      %1592 = vmatpush1.msra.mxu0 %v1480
      %1593 = vmatprep.subr.mxu0 0.0
      %1594 = vmatpush1.msra.mxu0 %v1481
      %1595 = vmatprep.subr.mxu0 0.0
      %1596 = vmatpush1.msra.mxu0 %v1482
      %1597 = vmatprep.subr.mxu0 0.0
      %1598 = vmatpush1.msra.mxu0 %v1483
      %1599 = vmatprep.subr.mxu0 0.0
      %1600 = vmatpush1.msra.mxu0 %v1484
      %1601 = vmatprep.subr.mxu0 0.0
      %1602 = vmatpush1.msra.mxu0 %v1485
      %1603 = vmatprep.subr.mxu0 0.0
      %1604 = vmatpush1.msra.mxu0 %v1486
      %1605 = vmatprep.subr.mxu0 0.0
      %1606 = vmatpush1.msra.mxu0 %v1487
      %1607 = vmatprep.subr.mxu0 0.0
      %1608 = vmatpush1.msra.mxu0 %v1488
      %1609 = vmatprep.subr.mxu0 0.0
      %1610 = vmatpush1.msra.mxu0 %v1489
      %1611 = vmatprep.subr.mxu0 0.0
      %1612 = vmatpush1.msra.mxu0 %v1490
      %1613 = vmatprep.subr.mxu0 0.0
      %1614 = vmatpush1.msra.mxu0 0.0
      %1615 = vmatprep.subr.mxu0 0.0
      %1616 = vmatpush1.msra.mxu0 0.0
      %1617 = vmatprep.subr.mxu0 0.0
      %1618 = vmatpush1.msra.mxu0 0.0
      %1619 = vmatprep.subr.mxu0 0.0
      %1620 = vmatpush1.msra.mxu0 0.0
      %1621 = vmatprep.subr.mxu0 0.0
      %1622 = vmatpush1.msra.mxu0 0.0
      %1623 = vmatprep.subr.mxu0 0.0
      %1624 = vmatpush1.msra.mxu0 0.0
      %1625 = vmatprep.subr.mxu0 0.0
      %1626 = vmatpush1.msra.mxu0 0.0
      %1627 = vmatprep.subr.mxu0 0.0
      %1628 = vmatpush1.msra.mxu0 0.0
      %1629 = vmatprep.subr.mxu0 0.0
      %1630 = vmatpush1.msra.mxu0 0.0
      %1631 = vmatprep.subr.mxu0 0.0
      %1632 = vmatpush1.msra.mxu0 0.0
      %1633 = vmatprep.subr.mxu0 0.0
      %1634 = vmatpush1.msra.mxu0 0.0
      %1635 = vmatprep.subr.mxu0 0.0
      %1636 = vmatpush1.msra.mxu0 0.0
      %1637 = vmatprep.subr.mxu0 0.0
      %1638 = vmatpush1.msra.mxu0 0.0
      %1639 = vmatprep.subr.mxu0 0.0
      %1640 = vmatpush1.msra.mxu0 0.0
      %1641 = vmatprep.mubr.f32.mxu0 %v1575
      %1642 = vmatmul.mubr.f32.gmra.mrb[0].mxu0 %v1453
      %v1643 = vpop.f32.mrb[0].mxu0
      %v1644 = vadd.f32 %v1500, %v1643
      %v1645 = vpop.f32.mrb[0].mxu0
      %1646 = vdwg.mxu0
      %v1647 = vld [vmem:[%s656 + $0x7] sm:$0x1]
      %v1648 = vld [vmem:[%s656 + $0x27] sm:$0x1]
      %v1649 = vld [vmem:[%s656 + $0x8] sm:$0x1]
      %v1650 = vld [vmem:[%s656 + $0x28] sm:$0x1]
      %v1651 = vsel %vm850, %v1571, 0.0
      %1652 = vadd.xlane.f32.xlu0 %v1651
      %v1653 = vpop.xlane.xlu0 %1652
      %v1654 = vsel %vm850, %v1644, 0.0
      %1655 = vadd.xlane.f32.xlu0 %v1654
      %v1656 = vpop.xlane.xlu0 %1655
      %v1657 = vmul.f32 %v1653, %v857
      %v1658 = vmul.f32 %v1656, %v857
      %v1659 = vsub.f32 %v1571, %v1657
      %v1660 = vsub.f32 %v1644, %v1658
      %v1661 = vmul.f32 %v1659, %v1659
      %v1662 = vmul.f32 %v1660, %v1660
      %v1663 = vsel %vm850, %v1661, 0.0
      %1664 = vadd.xlane.f32.xlu0 %v1663
      %v1665 = vpop.xlane.xlu0 %1664
      %v1666 = vsel %vm850, %v1662, 0.0
      %1667 = vadd.xlane.f32.xlu0 %v1666
      %v1668 = vpop.xlane.xlu0 %1667
      %v1669 = vmul.f32 %v1665, %v857
      %v1670 = vmul.f32 %v1668, %v857
      %v1671 = vadd.f32 %v1669, 1e-05
      %v1672 = vadd.f32 %v1670, 1e-05
      %v1673 = vrsqrt.pop %v1671
      %v1674 = vrsqrt.pop %v1672
      %v1675 = vmul.f32 %v1659, %v1673
      %v1676 = vmul.f32 %v1660, %v1674
      %v1677 = vlaneseq
      %v1678 = vshrl.u32 %v1677, 7
      %v1679 = vsub.s32 0, %v1678
      %v1680 = vrot.slane %v1647, %v1679
      %v1681 = vlaneseq
      %v1682 = vshrl.u32 %v1681, 7
      %v1683 = vsub.s32 0, %v1682
      %v1684 = vrot.slane %v1648, %v1683
      %v1685 = vmul.f32 %v1675, %v1680
      %v1686 = vmul.f32 %v1676, %v1684
      %v1687 = vlaneseq
      %v1688 = vshrl.u32 %v1687, 7
      %v1689 = vsub.s32 0, %v1688
      %v1690 = vrot.slane %v1649, %v1689
      %v1691 = vlaneseq
      %v1692 = vshrl.u32 %v1691, 7
      %v1693 = vsub.s32 0, %v1692
      %v1694 = vrot.slane %v1650, %v1693
      %v1695 = vadd.f32 %v1685, %v1690
      %v1696 = vadd.f32 %v1686, %v1694
      %v1697 = vadd.f32 %v898, %v1695
      %v1698 = vadd.f32 %v899, %v1696
      %v1699 = vmax.f32 %v1697, 0.0
      %v1700 = vmax.f32 %v1698, 0.0
      %s1701 = scalar_lea.vmem %s621, 192
      %v1702 = vld [vmem:[%s1701] sm:$0xff]
      %v1703 = vld [vmem:[%s1701 + $0x8] sm:$0xff]
      %v1704 = vld [vmem:[%s1701 + $0x10] sm:$0xff]
      %v1705 = vld [vmem:[%s1701 + $0x18] sm:$0xff]
      %v1706 = vld [vmem:[%s1701 + $0x20] sm:$0xff]
      %v1707 = vld [vmem:[%s1701 + $0x28] sm:$0xff]
      %v1708 = vld [vmem:[%s1701 + $0x30] sm:$0xff]
      %v1709 = vld [vmem:[%s1701 + $0x38] sm:$0xff]
      %v1710 = vld [vmem:[%s1701 + $0x40] sm:$0xff]
      %v1711 = vld [vmem:[%s1701 + $0x48] sm:$0xff]
      %v1712 = vld [vmem:[%s1701 + $0x50] sm:$0xff]
      %v1713 = vld [vmem:[%s1701 + $0x58] sm:$0xff]
      %v1714 = vld [vmem:[%s1701 + $0x60] sm:$0xff]
      %v1715 = vld [vmem:[%s1701 + $0x68] sm:$0xff]
      %v1716 = vld [vmem:[%s1701 + $0x70] sm:$0xff]
      %v1717 = vld [vmem:[%s1701 + $0x78] sm:$0xff]
      %v1718 = vld [vmem:[%s1701 + $0x80] sm:$0xff]
      %v1719 = vld [vmem:[%s1701 + $0x88] sm:$0xff]
      %v1720 = vld [vmem:[%s1701 + $0x90] sm:$0xff]
      %v1721 = vld [vmem:[%s1701 + $0x98] sm:$0xff]
      %v1722 = vld [vmem:[%s1701 + $0xa0] sm:$0xff]
      %v1723 = vld [vmem:[%s1701 + $0xa8] sm:$0xff]
      %v1724 = vld [vmem:[%s1701 + $0xb0] sm:$0xff]
      %v1725 = vld [vmem:[%s1701 + $0xb8] sm:$0xff]
      %v1726 = vld [vmem:[%s656 + $0x9] sm:$0x1]
      %v1727 = vld [vmem:[%s656 + $0x29] sm:$0x1]
      %v1728 = vlaneseq
      %v1729 = vshrl.u32 %v1728, 7
      %v1730 = vsub.s32 0, %v1729
      %v1731 = vrot.slane %v1726, %v1730
      %v1732 = vlaneseq
      %v1733 = vshrl.u32 %v1732, 7
      %v1734 = vsub.s32 0, %v1733
      %v1735 = vrot.slane %v1727, %v1734
      %v1737 = vsel %vm850, %v1699, 0
      %1739 = vmatprep.subr.mxu0 0.0
      %1740 = vmatpush1.msra.mxu0 %v1702
      %1741 = vmatprep.subr.mxu0 0.0
      %1742 = vmatpush1.msra.mxu0 %v1703
      %1743 = vmatprep.subr.mxu0 0.0
      %1744 = vmatpush1.msra.mxu0 %v1704
      %1745 = vmatprep.subr.mxu0 0.0
      %1746 = vmatpush1.msra.mxu0 %v1705
      %1747 = vmatprep.subr.mxu0 0.0
      %1748 = vmatpush1.msra.mxu0 %v1706
      %1749 = vmatprep.subr.mxu0 0.0
      %1750 = vmatpush1.msra.mxu0 %v1707
      %1751 = vmatprep.subr.mxu0 0.0
      %1752 = vmatpush1.msra.mxu0 %v1708
      %1753 = vmatprep.subr.mxu0 0.0
      %1754 = vmatpush1.msra.mxu0 %v1709
      %1755 = vmatprep.subr.mxu0 0.0
      %1756 = vmatpush1.msra.mxu0 %v1710
      %1757 = vmatprep.subr.mxu0 0.0
      %1758 = vmatpush1.msra.mxu0 %v1711
      %1759 = vmatprep.subr.mxu0 0.0
      %1760 = vmatpush1.msra.mxu0 %v1712
      %1761 = vmatprep.subr.mxu0 0.0
      %1762 = vmatpush1.msra.mxu0 %v1713
      %1763 = vmatprep.subr.mxu0 0.0
      %1764 = vmatpush1.msra.mxu0 0.0
      %1765 = vmatprep.subr.mxu0 0.0
      %1766 = vmatpush1.msra.mxu0 0.0
      %1767 = vmatprep.subr.mxu0 0.0
      %1768 = vmatpush1.msra.mxu0 0.0
      %1769 = vmatprep.subr.mxu0 0.0
      %1770 = vmatpush1.msra.mxu0 0.0
      %1771 = vmatprep.subr.mxu0 0.0
      %1772 = vmatpush1.msra.mxu0 0.0
      %1773 = vmatprep.subr.mxu0 0.0
      %1774 = vmatpush1.msra.mxu0 0.0
      %1775 = vmatprep.subr.mxu0 0.0
      %1776 = vmatpush1.msra.mxu0 0.0
      %1777 = vmatprep.subr.mxu0 0.0
      %1778 = vmatpush1.msra.mxu0 0.0
      %1779 = vmatprep.subr.mxu0 0.0
      %1780 = vmatpush1.msra.mxu0 0.0
      %1781 = vmatprep.subr.mxu0 0.0
      %1782 = vmatpush1.msra.mxu0 0.0
      %1783 = vmatprep.subr.mxu0 0.0
      %1784 = vmatpush1.msra.mxu0 0.0
      %1785 = vmatprep.subr.mxu0 0.0
      %1786 = vmatpush1.msra.mxu0 0.0
      %1787 = vmatprep.subr.mxu0 0.0
      %1788 = vmatpush1.msra.mxu0 0.0
      %1789 = vmatprep.subr.mxu0 0.0
      %1790 = vmatpush1.msra.mxu0 0.0
      %1791 = vmatprep.subr.mxu0 0.0
      %1792 = vmatpush1.msra.mxu0 0.0
      %1793 = vmatprep.subr.mxu0 0.0
      %1794 = vmatpush1.msra.mxu0 0.0
      %1795 = vmatprep.subr.mxu0 0.0
      %1796 = vmatpush1.msra.mxu0 0.0
      %1797 = vmatprep.subr.mxu0 0.0
      %1798 = vmatpush1.msra.mxu0 0.0
      %1799 = vmatprep.subr.mxu0 0.0
      %1800 = vmatpush1.msra.mxu0 0.0
      %1801 = vmatprep.subr.mxu0 0.0
      %1802 = vmatpush1.msra.mxu0 0.0
      %1803 = vmatprep.mubr.f32.mxu0 0.0
      %1804 = vmatmul.mubr.f32.gmra.mrb[0].mxu0 %v1737
      %v1805 = vpop.f32.mrb[0].mxu0
      %v1806 = vadd.f32 %v1731, %v1805
      %v1807 = vpop.f32.mrb[0].mxu0
      %1808 = vdwg.mxu0
      %v1810 = vsel %vm850, %v1700, 0
      %1812 = vmatprep.subr.mxu0 0.0
      %1813 = vmatpush1.msra.mxu0 %v1714
      %1814 = vmatprep.subr.mxu0 0.0
      %1815 = vmatpush1.msra.mxu0 %v1715
      %1816 = vmatprep.subr.mxu0 0.0
      %1817 = vmatpush1.msra.mxu0 %v1716
      %1818 = vmatprep.subr.mxu0 0.0
      %1819 = vmatpush1.msra.mxu0 %v1717
      %1820 = vmatprep.subr.mxu0 0.0
      %1821 = vmatpush1.msra.mxu0 %v1718
      %1822 = vmatprep.subr.mxu0 0.0
      %1823 = vmatpush1.msra.mxu0 %v1719
      %1824 = vmatprep.subr.mxu0 0.0
      %1825 = vmatpush1.msra.mxu0 %v1720
      %1826 = vmatprep.subr.mxu0 0.0
      %1827 = vmatpush1.msra.mxu0 %v1721
      %1828 = vmatprep.subr.mxu0 0.0
      %1829 = vmatpush1.msra.mxu0 %v1722
      %1830 = vmatprep.subr.mxu0 0.0
      %1831 = vmatpush1.msra.mxu0 %v1723
      %1832 = vmatprep.subr.mxu0 0.0
      %1833 = vmatpush1.msra.mxu0 %v1724
      %1834 = vmatprep.subr.mxu0 0.0
      %1835 = vmatpush1.msra.mxu0 %v1725
      %1836 = vmatprep.subr.mxu0 0.0
      %1837 = vmatpush1.msra.mxu0 0.0
      %1838 = vmatprep.subr.mxu0 0.0
      %1839 = vmatpush1.msra.mxu0 0.0
      %1840 = vmatprep.subr.mxu0 0.0
      %1841 = vmatpush1.msra.mxu0 0.0
      %1842 = vmatprep.subr.mxu0 0.0
      %1843 = vmatpush1.msra.mxu0 0.0
      %1844 = vmatprep.subr.mxu0 0.0
      %1845 = vmatpush1.msra.mxu0 0.0
      %1846 = vmatprep.subr.mxu0 0.0
      %1847 = vmatpush1.msra.mxu0 0.0
      %1848 = vmatprep.subr.mxu0 0.0
      %1849 = vmatpush1.msra.mxu0 0.0
      %1850 = vmatprep.subr.mxu0 0.0
      %1851 = vmatpush1.msra.mxu0 0.0
      %1852 = vmatprep.subr.mxu0 0.0
      %1853 = vmatpush1.msra.mxu0 0.0
      %1854 = vmatprep.subr.mxu0 0.0
      %1855 = vmatpush1.msra.mxu0 0.0
      %1856 = vmatprep.subr.mxu0 0.0
      %1857 = vmatpush1.msra.mxu0 0.0
      %1858 = vmatprep.subr.mxu0 0.0
      %1859 = vmatpush1.msra.mxu0 0.0
      %1860 = vmatprep.subr.mxu0 0.0
      %1861 = vmatpush1.msra.mxu0 0.0
      %1862 = vmatprep.subr.mxu0 0.0
      %1863 = vmatpush1.msra.mxu0 0.0
      %1864 = vmatprep.subr.mxu0 0.0
      %1865 = vmatpush1.msra.mxu0 0.0
      %1866 = vmatprep.subr.mxu0 0.0
      %1867 = vmatpush1.msra.mxu0 0.0
      %1868 = vmatprep.subr.mxu0 0.0
      %1869 = vmatpush1.msra.mxu0 0.0
      %1870 = vmatprep.subr.mxu0 0.0
      %1871 = vmatpush1.msra.mxu0 0.0
      %1872 = vmatprep.subr.mxu0 0.0
      %1873 = vmatpush1.msra.mxu0 0.0
      %1874 = vmatprep.subr.mxu0 0.0
      %1875 = vmatpush1.msra.mxu0 0.0
      %1876 = vmatprep.mubr.f32.mxu0 0.0
      %1877 = vmatmul.mubr.f32.gmra.mrb[0].mxu0 %v1810
      %v1878 = vpop.f32.mrb[0].mxu0
      %v1879 = vadd.f32 %v1735, %v1878
      %v1880 = vpop.f32.mrb[0].mxu0
      %1881 = vdwg.mxu0
      %v1882 = vld [vmem:[%s656 + $0xa] sm:$0x1]
      %v1883 = vld [vmem:[%s656 + $0x2a] sm:$0x1]
      %v1884 = vld [vmem:[%s656 + $0xb] sm:$0x1]
      %v1885 = vld [vmem:[%s656 + $0x2b] sm:$0x1]
      %v1886 = vsel %vm850, %v1806, 0.0
      %1887 = vadd.xlane.f32.xlu0 %v1886
      %v1888 = vpop.xlane.xlu0 %1887
      %v1889 = vsel %vm850, %v1879, 0.0
      %1890 = vadd.xlane.f32.xlu0 %v1889
      %v1891 = vpop.xlane.xlu0 %1890
      %v1892 = vmul.f32 %v1888, %v857
      %v1893 = vmul.f32 %v1891, %v857
      %v1894 = vsub.f32 %v1806, %v1892
      %v1895 = vsub.f32 %v1879, %v1893
      %v1896 = vmul.f32 %v1894, %v1894
      %v1897 = vmul.f32 %v1895, %v1895
      %v1898 = vsel %vm850, %v1896, 0.0
      %1899 = vadd.xlane.f32.xlu0 %v1898
      %v1900 = vpop.xlane.xlu0 %1899
      %v1901 = vsel %vm850, %v1897, 0.0
      %1902 = vadd.xlane.f32.xlu0 %v1901
      %v1903 = vpop.xlane.xlu0 %1902
      %v1904 = vmul.f32 %v1900, %v857
      %v1905 = vmul.f32 %v1903, %v857
      %v1906 = vadd.f32 %v1904, 1e-05
      %v1907 = vadd.f32 %v1905, 1e-05
      %v1908 = vrsqrt.pop %v1906
      %v1909 = vrsqrt.pop %v1907
      %v1910 = vmul.f32 %v1894, %v1908
      %v1911 = vmul.f32 %v1895, %v1909
      %v1912 = vlaneseq
      %v1913 = vshrl.u32 %v1912, 7
      %v1914 = vsub.s32 0, %v1913
      %v1915 = vrot.slane %v1882, %v1914
      %v1916 = vlaneseq
      %v1917 = vshrl.u32 %v1916, 7
      %v1918 = vsub.s32 0, %v1917
      %v1919 = vrot.slane %v1883, %v1918
      %v1920 = vmul.f32 %v1910, %v1915
      %v1921 = vmul.f32 %v1911, %v1919
      %v1922 = vlaneseq
      %v1923 = vshrl.u32 %v1922, 7
      %v1924 = vsub.s32 0, %v1923
      %v1925 = vrot.slane %v1884, %v1924
      %v1926 = vlaneseq
      %v1927 = vshrl.u32 %v1926, 7
      %v1928 = vsub.s32 0, %v1927
      %v1929 = vrot.slane %v1885, %v1928
      %v1930 = vadd.f32 %v1920, %v1925
      %v1931 = vadd.f32 %v1921, %v1929
      %v1932 = vmax.f32 %v1930, 0.0
      %v1933 = vmax.f32 %v1931, 0.0
      %s1934 = scalar_lea.vmem %s626, 384
      %v1935 = vld [vmem:[%s1934] sm:$0xff]
      %v1936 = vld [vmem:[%s1934 + $0x8] sm:$0xff]
      %v1937 = vld [vmem:[%s1934 + $0x10] sm:$0xff]
      %v1938 = vld [vmem:[%s1934 + $0x18] sm:$0xff]
      %v1939 = vld [vmem:[%s1934 + $0x20] sm:$0xff]
      %v1940 = vld [vmem:[%s1934 + $0x28] sm:$0xff]
      %v1941 = vld [vmem:[%s1934 + $0x30] sm:$0xff]
      %v1942 = vld [vmem:[%s1934 + $0x38] sm:$0xff]
      %v1943 = vld [vmem:[%s1934 + $0x40] sm:$0xff]
      %v1944 = vld [vmem:[%s1934 + $0x48] sm:$0xff]
      %v1945 = vld [vmem:[%s1934 + $0x50] sm:$0xff]
      %v1946 = vld [vmem:[%s1934 + $0x58] sm:$0xff]
      %v1947 = vld [vmem:[%s1934 + $0x60] sm:$0xff]
      %v1948 = vld [vmem:[%s1934 + $0x68] sm:$0xff]
      %v1949 = vld [vmem:[%s1934 + $0x70] sm:$0xff]
      %v1950 = vld [vmem:[%s1934 + $0x78] sm:$0xff]
      %v1951 = vld [vmem:[%s1934 + $0x80] sm:$0xff]
      %v1952 = vld [vmem:[%s1934 + $0x88] sm:$0xff]
      %v1953 = vld [vmem:[%s1934 + $0x90] sm:$0xff]
      %v1954 = vld [vmem:[%s1934 + $0x98] sm:$0xff]
      %v1955 = vld [vmem:[%s1934 + $0xa0] sm:$0xff]
      %v1956 = vld [vmem:[%s1934 + $0xa8] sm:$0xff]
      %v1957 = vld [vmem:[%s1934 + $0xb0] sm:$0xff]
      %v1958 = vld [vmem:[%s1934 + $0xb8] sm:$0xff]
      %v1959 = vld [vmem:[%s1934 + $0xc0] sm:$0xff]
      %v1960 = vld [vmem:[%s1934 + $0xc8] sm:$0xff]
      %v1961 = vld [vmem:[%s1934 + $0xd0] sm:$0xff]
      %v1962 = vld [vmem:[%s1934 + $0xd8] sm:$0xff]
      %v1963 = vld [vmem:[%s1934 + $0xe0] sm:$0xff]
      %v1964 = vld [vmem:[%s1934 + $0xe8] sm:$0xff]
      %v1965 = vld [vmem:[%s1934 + $0xf0] sm:$0xff]
      %v1966 = vld [vmem:[%s1934 + $0xf8] sm:$0xff]
      %v1967 = vld [vmem:[%s1934 + $0x100] sm:$0xff]
      %v1968 = vld [vmem:[%s1934 + $0x108] sm:$0xff]
      %v1969 = vld [vmem:[%s1934 + $0x110] sm:$0xff]
      %v1970 = vld [vmem:[%s1934 + $0x118] sm:$0xff]
      %v1971 = vld [vmem:[%s1934 + $0x120] sm:$0xff]
      %v1972 = vld [vmem:[%s1934 + $0x128] sm:$0xff]
      %v1973 = vld [vmem:[%s1934 + $0x130] sm:$0xff]
      %v1974 = vld [vmem:[%s1934 + $0x138] sm:$0xff]
      %v1975 = vld [vmem:[%s1934 + $0x140] sm:$0xff]
      %v1976 = vld [vmem:[%s1934 + $0x148] sm:$0xff]
      %v1977 = vld [vmem:[%s1934 + $0x150] sm:$0xff]
      %v1978 = vld [vmem:[%s1934 + $0x158] sm:$0xff]
      %v1979 = vld [vmem:[%s1934 + $0x160] sm:$0xff]
      %v1980 = vld [vmem:[%s1934 + $0x168] sm:$0xff]
      %v1981 = vld [vmem:[%s1934 + $0x170] sm:$0xff]
      %v1982 = vld [vmem:[%s1934 + $0x178] sm:$0xff]
      %s1983 = scalar_lea.vmem %s661, 3
      %v1984 = vld [vmem:[%s1983] ss:$8 sm:$0x3]
      %s1985 = scalar_lea.vmem %s661, 35
      %v1986 = vld [vmem:[%s1985] ss:$8 sm:$0x3]
      %v1989 = vlaneseq
      %v1990 = vshrl.u32 %v1989, 7
      %v1991 = vsub.s32 0, %v1990
      %v1992 = vrot.slane %v1984, %v1991
      %v1993 = vlaneseq
      %v1994 = vshrl.u32 %v1993, 7
      %v1995 = vsub.s32 1, %v1994
      %v1996 = vrot.slane %v1984, %v1995
      %v1997 = vlaneseq
      %v1998 = vshrl.u32 %v1997, 7
      %v1999 = vsub.s32 0, %v1998
      %v2000 = vrot.slane %v1986, %v1999
      %v2001 = vlaneseq
      %v2002 = vshrl.u32 %v2001, 7
      %v2003 = vsub.s32 1, %v2002
      %v2004 = vrot.slane %v1986, %v2003
      %v2010 = vsel %vm850, %v1932, 0
      %2012 = vmatprep.subr.mxu0 %v1936
      %2013 = vmatpush1.msra.mxu0 %v1935
      %2014 = vmatprep.subr.mxu0 %v1938
      %2015 = vmatpush1.msra.mxu0 %v1937
      %2016 = vmatprep.subr.mxu0 %v1940
      %2017 = vmatpush1.msra.mxu0 %v1939
      %2018 = vmatprep.subr.mxu0 %v1942
      %2019 = vmatpush1.msra.mxu0 %v1941
      %2020 = vmatprep.subr.mxu0 %v1944
      %2021 = vmatpush1.msra.mxu0 %v1943
      %2022 = vmatprep.subr.mxu0 %v1946
      %2023 = vmatpush1.msra.mxu0 %v1945
      %2024 = vmatprep.subr.mxu0 %v1948
      %2025 = vmatpush1.msra.mxu0 %v1947
      %2026 = vmatprep.subr.mxu0 %v1950
      %2027 = vmatpush1.msra.mxu0 %v1949
      %2028 = vmatprep.subr.mxu0 %v1952
      %2029 = vmatpush1.msra.mxu0 %v1951
      %2030 = vmatprep.subr.mxu0 %v1954
      %2031 = vmatpush1.msra.mxu0 %v1953
      %2032 = vmatprep.subr.mxu0 %v1956
      %2033 = vmatpush1.msra.mxu0 %v1955
      %2034 = vmatprep.subr.mxu0 %v1958
      %2035 = vmatpush1.msra.mxu0 %v1957
      %2036 = vmatprep.subr.mxu0 0.0
      %2037 = vmatpush1.msra.mxu0 0.0
      %2038 = vmatprep.subr.mxu0 0.0
      %2039 = vmatpush1.msra.mxu0 0.0
      %2040 = vmatprep.subr.mxu0 0.0
      %2041 = vmatpush1.msra.mxu0 0.0
      %2042 = vmatprep.subr.mxu0 0.0
      %2043 = vmatpush1.msra.mxu0 0.0
      %2044 = vmatprep.subr.mxu0 0.0
      %2045 = vmatpush1.msra.mxu0 0.0
      %2046 = vmatprep.subr.mxu0 0.0
      %2047 = vmatpush1.msra.mxu0 0.0
      %2048 = vmatprep.subr.mxu0 0.0
      %2049 = vmatpush1.msra.mxu0 0.0
      %2050 = vmatprep.subr.mxu0 0.0
      %2051 = vmatpush1.msra.mxu0 0.0
      %2052 = vmatprep.subr.mxu0 0.0
      %2053 = vmatpush1.msra.mxu0 0.0
      %2054 = vmatprep.subr.mxu0 0.0
      %2055 = vmatpush1.msra.mxu0 0.0
      %2056 = vmatprep.subr.mxu0 0.0
      %2057 = vmatpush1.msra.mxu0 0.0
      %2058 = vmatprep.subr.mxu0 0.0
      %2059 = vmatpush1.msra.mxu0 0.0
      %2060 = vmatprep.subr.mxu0 0.0
      %2061 = vmatpush1.msra.mxu0 0.0
      %2062 = vmatprep.subr.mxu0 0.0
      %2063 = vmatpush1.msra.mxu0 0.0
      %2064 = vmatprep.subr.mxu0 0.0
      %2065 = vmatpush1.msra.mxu0 0.0
      %2066 = vmatprep.subr.mxu0 0.0
      %2067 = vmatpush1.msra.mxu0 0.0
      %2068 = vmatprep.subr.mxu0 0.0
      %2069 = vmatpush1.msra.mxu0 0.0
      %2070 = vmatprep.subr.mxu0 0.0
      %2071 = vmatpush1.msra.mxu0 0.0
      %2072 = vmatprep.subr.mxu0 0.0
      %2073 = vmatpush1.msra.mxu0 0.0
      %2074 = vmatprep.subr.mxu0 0.0
      %2075 = vmatpush1.msra.mxu0 0.0
      %2076 = vmatprep.mubr.f32.mxu0 0.0
      %2077 = vmatmul.mubr.f32.gmra.mrb[0].mxu0 %v2010
      %v2078 = vpop.f32.mrb[0].mxu0
      %v2079 = vadd.f32 %v1992, %v2078
      %v2080 = vpop.f32.mrb[0].mxu0
      %v2081 = vadd.f32 %v1996, %v2080
      %2082 = vdwg.mxu0
      %v2084 = vsel %vm850, %v1933, 0
      %2086 = vmatprep.subr.mxu0 %v1960
      %2087 = vmatpush1.msra.mxu0 %v1959
      %2088 = vmatprep.subr.mxu0 %v1962
      %2089 = vmatpush1.msra.mxu0 %v1961
      %2090 = vmatprep.subr.mxu0 %v1964
      %2091 = vmatpush1.msra.mxu0 %v1963
      %2092 = vmatprep.subr.mxu0 %v1966
      %2093 = vmatpush1.msra.mxu0 %v1965
      %2094 = vmatprep.subr.mxu0 %v1968
      %2095 = vmatpush1.msra.mxu0 %v1967
      %2096 = vmatprep.subr.mxu0 %v1970
      %2097 = vmatpush1.msra.mxu0 %v1969
      %2098 = vmatprep.subr.mxu0 %v1972
      %2099 = vmatpush1.msra.mxu0 %v1971
      %2100 = vmatprep.subr.mxu0 %v1974
      %2101 = vmatpush1.msra.mxu0 %v1973
      %2102 = vmatprep.subr.mxu0 %v1976
      %2103 = vmatpush1.msra.mxu0 %v1975
      %2104 = vmatprep.subr.mxu0 %v1978
      %2105 = vmatpush1.msra.mxu0 %v1977
      %2106 = vmatprep.subr.mxu0 %v1980
      %2107 = vmatpush1.msra.mxu0 %v1979
      %2108 = vmatprep.subr.mxu0 %v1982
      %2109 = vmatpush1.msra.mxu0 %v1981
      %2110 = vmatprep.subr.mxu0 0.0
      %2111 = vmatpush1.msra.mxu0 0.0
      %2112 = vmatprep.subr.mxu0 0.0
      %2113 = vmatpush1.msra.mxu0 0.0
      %2114 = vmatprep.subr.mxu0 0.0
      %2115 = vmatpush1.msra.mxu0 0.0
      %2116 = vmatprep.subr.mxu0 0.0
      %2117 = vmatpush1.msra.mxu0 0.0
      %2118 = vmatprep.subr.mxu0 0.0
      %2119 = vmatpush1.msra.mxu0 0.0
      %2120 = vmatprep.subr.mxu0 0.0
      %2121 = vmatpush1.msra.mxu0 0.0
      %2122 = vmatprep.subr.mxu0 0.0
      %2123 = vmatpush1.msra.mxu0 0.0
      %2124 = vmatprep.subr.mxu0 0.0
      %2125 = vmatpush1.msra.mxu0 0.0
      %2126 = vmatprep.subr.mxu0 0.0
      %2127 = vmatpush1.msra.mxu0 0.0
      %2128 = vmatprep.subr.mxu0 0.0
      %2129 = vmatpush1.msra.mxu0 0.0
      %2130 = vmatprep.subr.mxu0 0.0
      %2131 = vmatpush1.msra.mxu0 0.0
      %2132 = vmatprep.subr.mxu0 0.0
      %2133 = vmatpush1.msra.mxu0 0.0
      %2134 = vmatprep.subr.mxu0 0.0
      %2135 = vmatpush1.msra.mxu0 0.0
      %2136 = vmatprep.subr.mxu0 0.0
      %2137 = vmatpush1.msra.mxu0 0.0
      %2138 = vmatprep.subr.mxu0 0.0
      %2139 = vmatpush1.msra.mxu0 0.0
      %2140 = vmatprep.subr.mxu0 0.0
      %2141 = vmatpush1.msra.mxu0 0.0
      %2142 = vmatprep.subr.mxu0 0.0
      %2143 = vmatpush1.msra.mxu0 0.0
      %2144 = vmatprep.subr.mxu0 0.0
      %2145 = vmatpush1.msra.mxu0 0.0
      %2146 = vmatprep.subr.mxu0 0.0
      %2147 = vmatpush1.msra.mxu0 0.0
      %2148 = vmatprep.subr.mxu0 0.0
      %2149 = vmatpush1.msra.mxu0 0.0
      %2150 = vmatprep.mubr.f32.mxu0 0.0
      %2151 = vmatmul.mubr.f32.gmra.mrb[0].mxu0 %v2084
      %v2152 = vpop.f32.mrb[0].mxu0
      %v2153 = vadd.f32 %v2000, %v2152
      %v2154 = vpop.f32.mrb[0].mxu0
      %v2155 = vadd.f32 %v2004, %v2154
      %2156 = vdwg.mxu0
      %s2157 = scalar_lea.vmem %s661, 4
      %v2158 = vld [vmem:[%s2157] ss:$8 sm:$0x3]
      %s2159 = scalar_lea.vmem %s661, 36
      %v2160 = vld [vmem:[%s2159] ss:$8 sm:$0x3]
      %s2161 = scalar_lea.vmem %s661, 5
      %v2162 = vld [vmem:[%s2161] ss:$8 sm:$0x3]
      %s2163 = scalar_lea.vmem %s661, 37
      %v2164 = vld [vmem:[%s2163] ss:$8 sm:$0x3]
      %v2165 = vsel %vm1361, %v2081, 0.0
      %v2166 = vadd.f32 %v2079, %v2165
      %2167 = vadd.xlane.f32.xlu0 %v2166
      %v2168 = vpop.xlane.xlu0 %2167
      %v2169 = vsel %vm1361, %v2155, 0.0
      %v2170 = vadd.f32 %v2153, %v2169
      %2171 = vadd.xlane.f32.xlu0 %v2170
      %v2172 = vpop.xlane.xlu0 %2171
      %v2173 = vmul.f32 %v2168, %v1370
      %v2174 = vmul.f32 %v2172, %v1370
      %v2175 = vsub.f32 %v2079, %v2173
      %v2176 = vsub.f32 %v2081, %v2173
      %v2177 = vsub.f32 %v2153, %v2174
      %v2178 = vsub.f32 %v2155, %v2174
      %v2179 = vmul.f32 %v2175, %v2175
      %v2180 = vmul.f32 %v2176, %v2176
      %v2181 = vmul.f32 %v2177, %v2177
      %v2182 = vmul.f32 %v2178, %v2178
      %v2183 = vsel %vm1361, %v2180, 0.0
      %v2184 = vadd.f32 %v2179, %v2183
      %2185 = vadd.xlane.f32.xlu0 %v2184
      %v2186 = vpop.xlane.xlu0 %2185
      %v2187 = vsel %vm1361, %v2182, 0.0
      %v2188 = vadd.f32 %v2181, %v2187
      %2189 = vadd.xlane.f32.xlu0 %v2188
      %v2190 = vpop.xlane.xlu0 %2189
      %v2191 = vmul.f32 %v2186, %v1370
      %v2192 = vmul.f32 %v2190, %v1370
      %v2193 = vadd.f32 %v2191, 1e-05
      %v2194 = vadd.f32 %v2192, 1e-05
      %v2195 = vrsqrt.pop %v2193
      %v2196 = vrsqrt.pop %v2194
      %v2197 = vmul.f32 %v2175, %v2195
      %v2198 = vmul.f32 %v2176, %v2195
      %v2199 = vmul.f32 %v2177, %v2196
      %v2200 = vmul.f32 %v2178, %v2196
      %v2203 = vlaneseq
      %v2204 = vshrl.u32 %v2203, 7
      %v2205 = vsub.s32 0, %v2204
      %v2206 = vrot.slane %v2158, %v2205
      %v2207 = vlaneseq
      %v2208 = vshrl.u32 %v2207, 7
      %v2209 = vsub.s32 1, %v2208
      %v2210 = vrot.slane %v2158, %v2209
      %v2211 = vlaneseq
      %v2212 = vshrl.u32 %v2211, 7
      %v2213 = vsub.s32 0, %v2212
      %v2214 = vrot.slane %v2160, %v2213
      %v2215 = vlaneseq
      %v2216 = vshrl.u32 %v2215, 7
      %v2217 = vsub.s32 1, %v2216
      %v2218 = vrot.slane %v2160, %v2217
      %v2223 = vmul.f32 %v2197, %v2206
      %v2224 = vmul.f32 %v2198, %v2210
      %v2225 = vmul.f32 %v2199, %v2214
      %v2226 = vmul.f32 %v2200, %v2218
      %v2229 = vlaneseq
      %v2230 = vshrl.u32 %v2229, 7
      %v2231 = vsub.s32 0, %v2230
      %v2232 = vrot.slane %v2162, %v2231
      %v2233 = vlaneseq
      %v2234 = vshrl.u32 %v2233, 7
      %v2235 = vsub.s32 1, %v2234
      %v2236 = vrot.slane %v2162, %v2235
      %v2237 = vlaneseq
      %v2238 = vshrl.u32 %v2237, 7
      %v2239 = vsub.s32 0, %v2238
      %v2240 = vrot.slane %v2164, %v2239
      %v2241 = vlaneseq
      %v2242 = vshrl.u32 %v2241, 7
      %v2243 = vsub.s32 1, %v2242
      %v2244 = vrot.slane %v2164, %v2243
      %v2249 = vadd.f32 %v2223, %v2232
      %v2250 = vadd.f32 %v2224, %v2236
      %v2251 = vadd.f32 %v2225, %v2240
      %v2252 = vadd.f32 %v2226, %v2244
      %v2253 = vmax.f32 %v2249, 0.0
      %v2254 = vmax.f32 %v2250, 0.0
      %v2255 = vmax.f32 %v2251, 0.0
      %v2256 = vmax.f32 %v2252, 0.0
      %s2257 = scalar_lea.vmem %s631, 288
      %v2258 = vld [vmem:[%s2257] sm:$0xff]
      %v2259 = vld [vmem:[%s2257 + $0x8] sm:$0xff]
      %v2260 = vld [vmem:[%s2257 + $0x10] sm:$0xff]
      %v2261 = vld [vmem:[%s2257 + $0x18] sm:$0xff]
      %v2262 = vld [vmem:[%s2257 + $0x20] sm:$0xff]
      %v2263 = vld [vmem:[%s2257 + $0x28] sm:$0xff]
      %v2264 = vld [vmem:[%s2257 + $0x30] sm:$0xff]
      %v2265 = vld [vmem:[%s2257 + $0x38] sm:$0xff]
      %v2266 = vld [vmem:[%s2257 + $0x40] sm:$0xff]
      %v2267 = vld [vmem:[%s2257 + $0x48] sm:$0xff]
      %v2268 = vld [vmem:[%s2257 + $0x50] sm:$0xff]
      %v2269 = vld [vmem:[%s2257 + $0x58] sm:$0xff]
      %v2270 = vld [vmem:[%s2257 + $0x60] sm:$0xff]
      %v2271 = vld [vmem:[%s2257 + $0x68] sm:$0xff]
      %v2272 = vld [vmem:[%s2257 + $0x70] sm:$0xff]
      %v2273 = vld [vmem:[%s2257 + $0x78] sm:$0xff]
      %v2274 = vld [vmem:[%s2257 + $0x80] sm:$0xff]
      %v2275 = vld [vmem:[%s2257 + $0x88] sm:$0xff]
      %v2276 = vld [vmem:[%s2257 + $0x90] sm:$0xff]
      %v2277 = vld [vmem:[%s2257 + $0x98] sm:$0xff]
      %v2278 = vld [vmem:[%s2257 + $0xa0] sm:$0xff]
      %v2279 = vld [vmem:[%s2257 + $0xa8] sm:$0xff]
      %v2280 = vld [vmem:[%s2257 + $0xb0] sm:$0xff]
      %v2281 = vld [vmem:[%s2257 + $0xb8] sm:$0xff]
      %v2282 = vld [vmem:[%s2257 + $0xc0] sm:$0xff]
      %v2283 = vld [vmem:[%s2257 + $0xc8] sm:$0xff]
      %v2284 = vld [vmem:[%s2257 + $0xd0] sm:$0xff]
      %v2285 = vld [vmem:[%s2257 + $0xd8] sm:$0xff]
      %v2286 = vld [vmem:[%s2257 + $0xe0] sm:$0xff]
      %v2287 = vld [vmem:[%s2257 + $0xe8] sm:$0xff]
      %v2288 = vld [vmem:[%s2257 + $0xf0] sm:$0xff]
      %v2289 = vld [vmem:[%s2257 + $0xf8] sm:$0xff]
      %v2290 = vld [vmem:[%s2257 + $0x100] sm:$0xff]
      %v2291 = vld [vmem:[%s2257 + $0x108] sm:$0xff]
      %v2292 = vld [vmem:[%s2257 + $0x110] sm:$0xff]
      %v2293 = vld [vmem:[%s2257 + $0x118] sm:$0xff]
      %v2294 = vld [vmem:[%s656 + $0xc] sm:$0x1]
      %v2295 = vld [vmem:[%s656 + $0x2c] sm:$0x1]
      %v2296 = vlaneseq
      %v2297 = vshrl.u32 %v2296, 7
      %v2298 = vsub.s32 0, %v2297
      %v2299 = vrot.slane %v2294, %v2298
      %v2300 = vlaneseq
      %v2301 = vshrl.u32 %v2300, 7
      %v2302 = vsub.s32 0, %v2301
      %v2303 = vrot.slane %v2295, %v2302
      %v2305 = vsel %vm1361, %v2254, 0
      %2307 = vmatprep.subr.mxu0 0.0
      %2308 = vmatpush1.msra.mxu0 %v2258
      %2309 = vmatprep.subr.mxu0 0.0
      %2310 = vmatpush1.msra.mxu0 %v2259
      %2311 = vmatprep.subr.mxu0 0.0
      %2312 = vmatpush1.msra.mxu0 %v2260
      %2313 = vmatprep.subr.mxu0 0.0
      %2314 = vmatpush1.msra.mxu0 %v2261
      %2315 = vmatprep.subr.mxu0 0.0
      %2316 = vmatpush1.msra.mxu0 %v2262
      %2317 = vmatprep.subr.mxu0 0.0
      %2318 = vmatpush1.msra.mxu0 %v2263
      %2319 = vmatprep.subr.mxu0 0.0
      %2320 = vmatpush1.msra.mxu0 %v2264
      %2321 = vmatprep.subr.mxu0 0.0
      %2322 = vmatpush1.msra.mxu0 %v2265
      %2323 = vmatprep.subr.mxu0 0.0
      %2324 = vmatpush1.msra.mxu0 %v2266
      %2325 = vmatprep.subr.mxu0 0.0
      %2326 = vmatpush1.msra.mxu0 %v2267
      %2327 = vmatprep.subr.mxu0 0.0
      %2328 = vmatpush1.msra.mxu0 %v2268
      %2329 = vmatprep.subr.mxu0 0.0
      %2330 = vmatpush1.msra.mxu0 %v2269
      %2331 = vmatprep.subr.mxu0 0.0
      %2332 = vmatpush1.msra.mxu0 %v2270
      %2333 = vmatprep.subr.mxu0 0.0
      %2334 = vmatpush1.msra.mxu0 %v2271
      %2335 = vmatprep.subr.mxu0 0.0
      %2336 = vmatpush1.msra.mxu0 %v2272
      %2337 = vmatprep.subr.mxu0 0.0
      %2338 = vmatpush1.msra.mxu0 %v2273
      %2339 = vmatprep.subr.mxu0 0.0
      %2340 = vmatpush1.msra.mxu0 %v2274
      %2341 = vmatprep.subr.mxu0 0.0
      %2342 = vmatpush1.msra.mxu0 %v2275
      %2343 = vmatprep.subr.mxu0 0.0
      %2344 = vmatpush1.msra.mxu0 0.0
      %2345 = vmatprep.subr.mxu0 0.0
      %2346 = vmatpush1.msra.mxu0 0.0
      %2347 = vmatprep.subr.mxu0 0.0
      %2348 = vmatpush1.msra.mxu0 0.0
      %2349 = vmatprep.subr.mxu0 0.0
      %2350 = vmatpush1.msra.mxu0 0.0
      %2351 = vmatprep.subr.mxu0 0.0
      %2352 = vmatpush1.msra.mxu0 0.0
      %2353 = vmatprep.subr.mxu0 0.0
      %2354 = vmatpush1.msra.mxu0 0.0
      %2355 = vmatprep.subr.mxu0 0.0
      %2356 = vmatpush1.msra.mxu0 0.0
      %2357 = vmatprep.subr.mxu0 0.0
      %2358 = vmatpush1.msra.mxu0 0.0
      %2359 = vmatprep.subr.mxu0 0.0
      %2360 = vmatpush1.msra.mxu0 0.0
      %2361 = vmatprep.subr.mxu0 0.0
      %2362 = vmatpush1.msra.mxu0 0.0
      %2363 = vmatprep.subr.mxu0 0.0
      %2364 = vmatpush1.msra.mxu0 0.0
      %2365 = vmatprep.subr.mxu0 0.0
      %2366 = vmatpush1.msra.mxu0 0.0
      %2367 = vmatprep.subr.mxu0 0.0
      %2368 = vmatpush1.msra.mxu0 0.0
      %2369 = vmatprep.subr.mxu0 0.0
      %2370 = vmatpush1.msra.mxu0 0.0
      %2371 = vmatprep.mubr.f32.mxu0 %v2305
      %2372 = vmatmul.mubr.f32.gmra.mrb[0].mxu0 %v2253
      %v2373 = vpop.f32.mrb[0].mxu0
      %v2374 = vadd.f32 %v2299, %v2373
      %v2375 = vpop.f32.mrb[0].mxu0
      %2376 = vdwg.mxu0
      %v2378 = vsel %vm1361, %v2256, 0
      %2380 = vmatprep.subr.mxu0 0.0
      %2381 = vmatpush1.msra.mxu0 %v2276
      %2382 = vmatprep.subr.mxu0 0.0
      %2383 = vmatpush1.msra.mxu0 %v2277
      %2384 = vmatprep.subr.mxu0 0.0
      %2385 = vmatpush1.msra.mxu0 %v2278
      %2386 = vmatprep.subr.mxu0 0.0
      %2387 = vmatpush1.msra.mxu0 %v2279
      %2388 = vmatprep.subr.mxu0 0.0
      %2389 = vmatpush1.msra.mxu0 %v2280
      %2390 = vmatprep.subr.mxu0 0.0
      %2391 = vmatpush1.msra.mxu0 %v2281
      %2392 = vmatprep.subr.mxu0 0.0
      %2393 = vmatpush1.msra.mxu0 %v2282
      %2394 = vmatprep.subr.mxu0 0.0
      %2395 = vmatpush1.msra.mxu0 %v2283
      %2396 = vmatprep.subr.mxu0 0.0
      %2397 = vmatpush1.msra.mxu0 %v2284
      %2398 = vmatprep.subr.mxu0 0.0
      %2399 = vmatpush1.msra.mxu0 %v2285
      %2400 = vmatprep.subr.mxu0 0.0
      %2401 = vmatpush1.msra.mxu0 %v2286
      %2402 = vmatprep.subr.mxu0 0.0
      %2403 = vmatpush1.msra.mxu0 %v2287
      %2404 = vmatprep.subr.mxu0 0.0
      %2405 = vmatpush1.msra.mxu0 %v2288
      %2406 = vmatprep.subr.mxu0 0.0
      %2407 = vmatpush1.msra.mxu0 %v2289
      %2408 = vmatprep.subr.mxu0 0.0
      %2409 = vmatpush1.msra.mxu0 %v2290
      %2410 = vmatprep.subr.mxu0 0.0
      %2411 = vmatpush1.msra.mxu0 %v2291
      %2412 = vmatprep.subr.mxu0 0.0
      %2413 = vmatpush1.msra.mxu0 %v2292
      %2414 = vmatprep.subr.mxu0 0.0
      %2415 = vmatpush1.msra.mxu0 %v2293
      %2416 = vmatprep.subr.mxu0 0.0
      %2417 = vmatpush1.msra.mxu0 0.0
      %2418 = vmatprep.subr.mxu0 0.0
      %2419 = vmatpush1.msra.mxu0 0.0
      %2420 = vmatprep.subr.mxu0 0.0
      %2421 = vmatpush1.msra.mxu0 0.0
      %2422 = vmatprep.subr.mxu0 0.0
      %2423 = vmatpush1.msra.mxu0 0.0
      %2424 = vmatprep.subr.mxu0 0.0
      %2425 = vmatpush1.msra.mxu0 0.0
      %2426 = vmatprep.subr.mxu0 0.0
      %2427 = vmatpush1.msra.mxu0 0.0
      %2428 = vmatprep.subr.mxu0 0.0
      %2429 = vmatpush1.msra.mxu0 0.0
      %2430 = vmatprep.subr.mxu0 0.0
      %2431 = vmatpush1.msra.mxu0 0.0
      %2432 = vmatprep.subr.mxu0 0.0
      %2433 = vmatpush1.msra.mxu0 0.0
      %2434 = vmatprep.subr.mxu0 0.0
      %2435 = vmatpush1.msra.mxu0 0.0
      %2436 = vmatprep.subr.mxu0 0.0
      %2437 = vmatpush1.msra.mxu0 0.0
      %2438 = vmatprep.subr.mxu0 0.0
      %2439 = vmatpush1.msra.mxu0 0.0
      %2440 = vmatprep.subr.mxu0 0.0
      %2441 = vmatpush1.msra.mxu0 0.0
      %2442 = vmatprep.subr.mxu0 0.0
      %2443 = vmatpush1.msra.mxu0 0.0
      %2444 = vmatprep.mubr.f32.mxu0 %v2378
      %2445 = vmatmul.mubr.f32.gmra.mrb[0].mxu0 %v2255
      %v2446 = vpop.f32.mrb[0].mxu0
      %v2447 = vadd.f32 %v2303, %v2446
      %v2448 = vpop.f32.mrb[0].mxu0
      %2449 = vdwg.mxu0
      %v2450 = vld [vmem:[%s656 + $0xd] sm:$0x1]
      %v2451 = vld [vmem:[%s656 + $0x2d] sm:$0x1]
      %v2452 = vld [vmem:[%s656 + $0xe] sm:$0x1]
      %v2453 = vld [vmem:[%s656 + $0x2e] sm:$0x1]
      %v2454 = vsel %vm850, %v2374, 0.0
      %2455 = vadd.xlane.f32.xlu0 %v2454
      %v2456 = vpop.xlane.xlu0 %2455
      %v2457 = vsel %vm850, %v2447, 0.0
      %2458 = vadd.xlane.f32.xlu0 %v2457
      %v2459 = vpop.xlane.xlu0 %2458
      %v2460 = vmul.f32 %v2456, %v857
      %v2461 = vmul.f32 %v2459, %v857
      %v2462 = vsub.f32 %v2374, %v2460
      %v2463 = vsub.f32 %v2447, %v2461
      %v2464 = vmul.f32 %v2462, %v2462
      %v2465 = vmul.f32 %v2463, %v2463
      %v2466 = vsel %vm850, %v2464, 0.0
      %2467 = vadd.xlane.f32.xlu0 %v2466
      %v2468 = vpop.xlane.xlu0 %2467
      %v2469 = vsel %vm850, %v2465, 0.0
      %2470 = vadd.xlane.f32.xlu0 %v2469
      %v2471 = vpop.xlane.xlu0 %2470
      %v2472 = vmul.f32 %v2468, %v857
      %v2473 = vmul.f32 %v2471, %v857
      %v2474 = vadd.f32 %v2472, 1e-05
      %v2475 = vadd.f32 %v2473, 1e-05
      %v2476 = vrsqrt.pop %v2474
      %v2477 = vrsqrt.pop %v2475
      %v2478 = vmul.f32 %v2462, %v2476
      %v2479 = vmul.f32 %v2463, %v2477
      %v2480 = vlaneseq
      %v2481 = vshrl.u32 %v2480, 7
      %v2482 = vsub.s32 0, %v2481
      %v2483 = vrot.slane %v2450, %v2482
      %v2484 = vlaneseq
      %v2485 = vshrl.u32 %v2484, 7
      %v2486 = vsub.s32 0, %v2485
      %v2487 = vrot.slane %v2451, %v2486
      %v2488 = vmul.f32 %v2478, %v2483
      %v2489 = vmul.f32 %v2479, %v2487
      %v2490 = vlaneseq
      %v2491 = vshrl.u32 %v2490, 7
      %v2492 = vsub.s32 0, %v2491
      %v2493 = vrot.slane %v2452, %v2492
      %v2494 = vlaneseq
      %v2495 = vshrl.u32 %v2494, 7
      %v2496 = vsub.s32 0, %v2495
      %v2497 = vrot.slane %v2453, %v2496
      %v2498 = vadd.f32 %v2488, %v2493
      %v2499 = vadd.f32 %v2489, %v2497
      %v2500 = vadd.f32 %v1699, %v2498
      %v2501 = vadd.f32 %v1700, %v2499
      %v2502 = vmax.f32 %v2500, 0.0
      %v2503 = vmax.f32 %v2501, 0.0
      %s2504 = scalar_lea.vmem %s621, 384
      %v2505 = vld [vmem:[%s2504] sm:$0xff]
      %v2506 = vld [vmem:[%s2504 + $0x8] sm:$0xff]
      %v2507 = vld [vmem:[%s2504 + $0x10] sm:$0xff]
      %v2508 = vld [vmem:[%s2504 + $0x18] sm:$0xff]
      %v2509 = vld [vmem:[%s2504 + $0x20] sm:$0xff]
      %v2510 = vld [vmem:[%s2504 + $0x28] sm:$0xff]
      %v2511 = vld [vmem:[%s2504 + $0x30] sm:$0xff]
      %v2512 = vld [vmem:[%s2504 + $0x38] sm:$0xff]
      %v2513 = vld [vmem:[%s2504 + $0x40] sm:$0xff]
      %v2514 = vld [vmem:[%s2504 + $0x48] sm:$0xff]
      %v2515 = vld [vmem:[%s2504 + $0x50] sm:$0xff]
      %v2516 = vld [vmem:[%s2504 + $0x58] sm:$0xff]
      %v2517 = vld [vmem:[%s2504 + $0x60] sm:$0xff]
      %v2518 = vld [vmem:[%s2504 + $0x68] sm:$0xff]
      %v2519 = vld [vmem:[%s2504 + $0x70] sm:$0xff]
      %v2520 = vld [vmem:[%s2504 + $0x78] sm:$0xff]
      %v2521 = vld [vmem:[%s2504 + $0x80] sm:$0xff]
      %v2522 = vld [vmem:[%s2504 + $0x88] sm:$0xff]
      %v2523 = vld [vmem:[%s2504 + $0x90] sm:$0xff]
      %v2524 = vld [vmem:[%s2504 + $0x98] sm:$0xff]
      %v2525 = vld [vmem:[%s2504 + $0xa0] sm:$0xff]
      %v2526 = vld [vmem:[%s2504 + $0xa8] sm:$0xff]
      %v2527 = vld [vmem:[%s2504 + $0xb0] sm:$0xff]
      %v2528 = vld [vmem:[%s2504 + $0xb8] sm:$0xff]
      %v2529 = vld [vmem:[%s656 + $0xf] sm:$0x1]
      %v2530 = vld [vmem:[%s656 + $0x2f] sm:$0x1]
      %v2531 = vlaneseq
      %v2532 = vshrl.u32 %v2531, 7
      %v2533 = vsub.s32 0, %v2532
      %v2534 = vrot.slane %v2529, %v2533
      %v2535 = vlaneseq
      %v2536 = vshrl.u32 %v2535, 7
      %v2537 = vsub.s32 0, %v2536
      %v2538 = vrot.slane %v2530, %v2537
      %v2540 = vsel %vm850, %v2502, 0
      %2542 = vmatprep.subr.mxu0 0.0
      %2543 = vmatpush1.msra.mxu0 %v2505
      %2544 = vmatprep.subr.mxu0 0.0
      %2545 = vmatpush1.msra.mxu0 %v2506
      %2546 = vmatprep.subr.mxu0 0.0
      %2547 = vmatpush1.msra.mxu0 %v2507
      %2548 = vmatprep.subr.mxu0 0.0
      %2549 = vmatpush1.msra.mxu0 %v2508
      %2550 = vmatprep.subr.mxu0 0.0
      %2551 = vmatpush1.msra.mxu0 %v2509
      %2552 = vmatprep.subr.mxu0 0.0
      %2553 = vmatpush1.msra.mxu0 %v2510
      %2554 = vmatprep.subr.mxu0 0.0
      %2555 = vmatpush1.msra.mxu0 %v2511
      %2556 = vmatprep.subr.mxu0 0.0
      %2557 = vmatpush1.msra.mxu0 %v2512
      %2558 = vmatprep.subr.mxu0 0.0
      %2559 = vmatpush1.msra.mxu0 %v2513
      %2560 = vmatprep.subr.mxu0 0.0
      %2561 = vmatpush1.msra.mxu0 %v2514
      %2562 = vmatprep.subr.mxu0 0.0
      %2563 = vmatpush1.msra.mxu0 %v2515
      %2564 = vmatprep.subr.mxu0 0.0
      %2565 = vmatpush1.msra.mxu0 %v2516
      %2566 = vmatprep.subr.mxu0 0.0
      %2567 = vmatpush1.msra.mxu0 0.0
      %2568 = vmatprep.subr.mxu0 0.0
      %2569 = vmatpush1.msra.mxu0 0.0
      %2570 = vmatprep.subr.mxu0 0.0
      %2571 = vmatpush1.msra.mxu0 0.0
      %2572 = vmatprep.subr.mxu0 0.0
      %2573 = vmatpush1.msra.mxu0 0.0
      %2574 = vmatprep.subr.mxu0 0.0
      %2575 = vmatpush1.msra.mxu0 0.0
      %2576 = vmatprep.subr.mxu0 0.0
      %2577 = vmatpush1.msra.mxu0 0.0
      %2578 = vmatprep.subr.mxu0 0.0
      %2579 = vmatpush1.msra.mxu0 0.0
      %2580 = vmatprep.subr.mxu0 0.0
      %2581 = vmatpush1.msra.mxu0 0.0
      %2582 = vmatprep.subr.mxu0 0.0
      %2583 = vmatpush1.msra.mxu0 0.0
      %2584 = vmatprep.subr.mxu0 0.0
      %2585 = vmatpush1.msra.mxu0 0.0
      %2586 = vmatprep.subr.mxu0 0.0
      %2587 = vmatpush1.msra.mxu0 0.0
      %2588 = vmatprep.subr.mxu0 0.0
      %2589 = vmatpush1.msra.mxu0 0.0
      %2590 = vmatprep.subr.mxu0 0.0
      %2591 = vmatpush1.msra.mxu0 0.0
      %2592 = vmatprep.subr.mxu0 0.0
      %2593 = vmatpush1.msra.mxu0 0.0
      %2594 = vmatprep.subr.mxu0 0.0
      %2595 = vmatpush1.msra.mxu0 0.0
      %2596 = vmatprep.subr.mxu0 0.0
      %2597 = vmatpush1.msra.mxu0 0.0
      %2598 = vmatprep.subr.mxu0 0.0
      %2599 = vmatpush1.msra.mxu0 0.0
      %2600 = vmatprep.subr.mxu0 0.0
      %2601 = vmatpush1.msra.mxu0 0.0
      %2602 = vmatprep.subr.mxu0 0.0
      %2603 = vmatpush1.msra.mxu0 0.0
      %2604 = vmatprep.subr.mxu0 0.0
      %2605 = vmatpush1.msra.mxu0 0.0
      %2606 = vmatprep.mubr.f32.mxu0 0.0
      %2607 = vmatmul.mubr.f32.gmra.mrb[0].mxu0 %v2540
      %v2608 = vpop.f32.mrb[0].mxu0
      %v2609 = vadd.f32 %v2534, %v2608
      %v2610 = vpop.f32.mrb[0].mxu0
      %2611 = vdwg.mxu0
      %v2613 = vsel %vm850, %v2503, 0
      %2615 = vmatprep.subr.mxu0 0.0
      %2616 = vmatpush1.msra.mxu0 %v2517
      %2617 = vmatprep.subr.mxu0 0.0
      %2618 = vmatpush1.msra.mxu0 %v2518
      %2619 = vmatprep.subr.mxu0 0.0
      %2620 = vmatpush1.msra.mxu0 %v2519
      %2621 = vmatprep.subr.mxu0 0.0
      %2622 = vmatpush1.msra.mxu0 %v2520
      %2623 = vmatprep.subr.mxu0 0.0
      %2624 = vmatpush1.msra.mxu0 %v2521
      %2625 = vmatprep.subr.mxu0 0.0
      %2626 = vmatpush1.msra.mxu0 %v2522
      %2627 = vmatprep.subr.mxu0 0.0
      %2628 = vmatpush1.msra.mxu0 %v2523
      %2629 = vmatprep.subr.mxu0 0.0
      %2630 = vmatpush1.msra.mxu0 %v2524
      %2631 = vmatprep.subr.mxu0 0.0
      %2632 = vmatpush1.msra.mxu0 %v2525
      %2633 = vmatprep.subr.mxu0 0.0
      %2634 = vmatpush1.msra.mxu0 %v2526
      %2635 = vmatprep.subr.mxu0 0.0
      %2636 = vmatpush1.msra.mxu0 %v2527
      %2637 = vmatprep.subr.mxu0 0.0
      %2638 = vmatpush1.msra.mxu0 %v2528
      %2639 = vmatprep.subr.mxu0 0.0
      %2640 = vmatpush1.msra.mxu0 0.0
      %2641 = vmatprep.subr.mxu0 0.0
      %2642 = vmatpush1.msra.mxu0 0.0
      %2643 = vmatprep.subr.mxu0 0.0
      %2644 = vmatpush1.msra.mxu0 0.0
      %2645 = vmatprep.subr.mxu0 0.0
      %2646 = vmatpush1.msra.mxu0 0.0
      %2647 = vmatprep.subr.mxu0 0.0
      %2648 = vmatpush1.msra.mxu0 0.0
      %2649 = vmatprep.subr.mxu0 0.0
      %2650 = vmatpush1.msra.mxu0 0.0
      %2651 = vmatprep.subr.mxu0 0.0
      %2652 = vmatpush1.msra.mxu0 0.0
      %2653 = vmatprep.subr.mxu0 0.0
      %2654 = vmatpush1.msra.mxu0 0.0
      %2655 = vmatprep.subr.mxu0 0.0
      %2656 = vmatpush1.msra.mxu0 0.0
      %2657 = vmatprep.subr.mxu0 0.0
      %2658 = vmatpush1.msra.mxu0 0.0
      %2659 = vmatprep.subr.mxu0 0.0
      %2660 = vmatpush1.msra.mxu0 0.0
      %2661 = vmatprep.subr.mxu0 0.0
      %2662 = vmatpush1.msra.mxu0 0.0
      %2663 = vmatprep.subr.mxu0 0.0
      %2664 = vmatpush1.msra.mxu0 0.0
      %2665 = vmatprep.subr.mxu0 0.0
      %2666 = vmatpush1.msra.mxu0 0.0
      %2667 = vmatprep.subr.mxu0 0.0
      %2668 = vmatpush1.msra.mxu0 0.0
      %2669 = vmatprep.subr.mxu0 0.0
      %2670 = vmatpush1.msra.mxu0 0.0
      %2671 = vmatprep.subr.mxu0 0.0
      %2672 = vmatpush1.msra.mxu0 0.0
      %2673 = vmatprep.subr.mxu0 0.0
      %2674 = vmatpush1.msra.mxu0 0.0
      %2675 = vmatprep.subr.mxu0 0.0
      %2676 = vmatpush1.msra.mxu0 0.0
      %2677 = vmatprep.subr.mxu0 0.0
      %2678 = vmatpush1.msra.mxu0 0.0
      %2679 = vmatprep.mubr.f32.mxu0 0.0
      %2680 = vmatmul.mubr.f32.gmra.mrb[0].mxu0 %v2613
      %v2681 = vpop.f32.mrb[0].mxu0
      %v2682 = vadd.f32 %v2538, %v2681
      %v2683 = vpop.f32.mrb[0].mxu0
      %2684 = vdwg.mxu0
      %v2685 = vld [vmem:[%s656 + $0x10] sm:$0x1]
      %v2686 = vld [vmem:[%s656 + $0x30] sm:$0x1]
      %v2687 = vld [vmem:[%s656 + $0x11] sm:$0x1]
      %v2688 = vld [vmem:[%s656 + $0x31] sm:$0x1]
      %v2689 = vsel %vm850, %v2609, 0.0
      %2690 = vadd.xlane.f32.xlu0 %v2689
      %v2691 = vpop.xlane.xlu0 %2690
      %v2692 = vsel %vm850, %v2682, 0.0
      %2693 = vadd.xlane.f32.xlu0 %v2692
      %v2694 = vpop.xlane.xlu0 %2693
      %v2695 = vmul.f32 %v2691, %v857
      %v2696 = vmul.f32 %v2694, %v857
      %v2697 = vsub.f32 %v2609, %v2695
      %v2698 = vsub.f32 %v2682, %v2696
      %v2699 = vmul.f32 %v2697, %v2697
      %v2700 = vmul.f32 %v2698, %v2698
      %v2701 = vsel %vm850, %v2699, 0.0
      %2702 = vadd.xlane.f32.xlu0 %v2701
      %v2703 = vpop.xlane.xlu0 %2702
      %v2704 = vsel %vm850, %v2700, 0.0
      %2705 = vadd.xlane.f32.xlu0 %v2704
      %v2706 = vpop.xlane.xlu0 %2705
      %v2707 = vmul.f32 %v2703, %v857
      %v2708 = vmul.f32 %v2706, %v857
      %v2709 = vadd.f32 %v2707, 1e-05
      %v2710 = vadd.f32 %v2708, 1e-05
      %v2711 = vrsqrt.pop %v2709
      %v2712 = vrsqrt.pop %v2710
      %v2713 = vmul.f32 %v2697, %v2711
      %v2714 = vmul.f32 %v2698, %v2712
      %v2715 = vlaneseq
      %v2716 = vshrl.u32 %v2715, 7
      %v2717 = vsub.s32 0, %v2716
      %v2718 = vrot.slane %v2685, %v2717
      %v2719 = vlaneseq
      %v2720 = vshrl.u32 %v2719, 7
      %v2721 = vsub.s32 0, %v2720
      %v2722 = vrot.slane %v2686, %v2721
      %v2723 = vmul.f32 %v2713, %v2718
      %v2724 = vmul.f32 %v2714, %v2722
      %v2725 = vlaneseq
      %v2726 = vshrl.u32 %v2725, 7
      %v2727 = vsub.s32 0, %v2726
      %v2728 = vrot.slane %v2687, %v2727
      %v2729 = vlaneseq
      %v2730 = vshrl.u32 %v2729, 7
      %v2731 = vsub.s32 0, %v2730
      %v2732 = vrot.slane %v2688, %v2731
      %v2733 = vadd.f32 %v2723, %v2728
      %v2734 = vadd.f32 %v2724, %v2732
      %v2735 = vmax.f32 %v2733, 0.0
      %v2736 = vmax.f32 %v2734, 0.0
      %s2737 = scalar_lea.vmem %s626, 768
      %v2738 = vld [vmem:[%s2737] sm:$0xff]
      %v2739 = vld [vmem:[%s2737 + $0x8] sm:$0xff]
      %v2740 = vld [vmem:[%s2737 + $0x10] sm:$0xff]
      %v2741 = vld [vmem:[%s2737 + $0x18] sm:$0xff]
      %v2742 = vld [vmem:[%s2737 + $0x20] sm:$0xff]
      %v2743 = vld [vmem:[%s2737 + $0x28] sm:$0xff]
      %v2744 = vld [vmem:[%s2737 + $0x30] sm:$0xff]
      %v2745 = vld [vmem:[%s2737 + $0x38] sm:$0xff]
      %v2746 = vld [vmem:[%s2737 + $0x40] sm:$0xff]
      %v2747 = vld [vmem:[%s2737 + $0x48] sm:$0xff]
      %v2748 = vld [vmem:[%s2737 + $0x50] sm:$0xff]
      %v2749 = vld [vmem:[%s2737 + $0x58] sm:$0xff]
      %v2750 = vld [vmem:[%s2737 + $0x60] sm:$0xff]
      %v2751 = vld [vmem:[%s2737 + $0x68] sm:$0xff]
      %v2752 = vld [vmem:[%s2737 + $0x70] sm:$0xff]
      %v2753 = vld [vmem:[%s2737 + $0x78] sm:$0xff]
      %v2754 = vld [vmem:[%s2737 + $0x80] sm:$0xff]
      %v2755 = vld [vmem:[%s2737 + $0x88] sm:$0xff]
      %v2756 = vld [vmem:[%s2737 + $0x90] sm:$0xff]
      %v2757 = vld [vmem:[%s2737 + $0x98] sm:$0xff]
      %v2758 = vld [vmem:[%s2737 + $0xa0] sm:$0xff]
      %v2759 = vld [vmem:[%s2737 + $0xa8] sm:$0xff]
      %v2760 = vld [vmem:[%s2737 + $0xb0] sm:$0xff]
      %v2761 = vld [vmem:[%s2737 + $0xb8] sm:$0xff]
      %v2762 = vld [vmem:[%s2737 + $0xc0] sm:$0xff]
      %v2763 = vld [vmem:[%s2737 + $0xc8] sm:$0xff]
      %v2764 = vld [vmem:[%s2737 + $0xd0] sm:$0xff]
      %v2765 = vld [vmem:[%s2737 + $0xd8] sm:$0xff]
      %v2766 = vld [vmem:[%s2737 + $0xe0] sm:$0xff]
      %v2767 = vld [vmem:[%s2737 + $0xe8] sm:$0xff]
      %v2768 = vld [vmem:[%s2737 + $0xf0] sm:$0xff]
      %v2769 = vld [vmem:[%s2737 + $0xf8] sm:$0xff]
      %v2770 = vld [vmem:[%s2737 + $0x100] sm:$0xff]
      %v2771 = vld [vmem:[%s2737 + $0x108] sm:$0xff]
      %v2772 = vld [vmem:[%s2737 + $0x110] sm:$0xff]
      %v2773 = vld [vmem:[%s2737 + $0x118] sm:$0xff]
      %v2774 = vld [vmem:[%s2737 + $0x120] sm:$0xff]
      %v2775 = vld [vmem:[%s2737 + $0x128] sm:$0xff]
      %v2776 = vld [vmem:[%s2737 + $0x130] sm:$0xff]
      %v2777 = vld [vmem:[%s2737 + $0x138] sm:$0xff]
      %v2778 = vld [vmem:[%s2737 + $0x140] sm:$0xff]
      %v2779 = vld [vmem:[%s2737 + $0x148] sm:$0xff]
      %v2780 = vld [vmem:[%s2737 + $0x150] sm:$0xff]
      %v2781 = vld [vmem:[%s2737 + $0x158] sm:$0xff]
      %v2782 = vld [vmem:[%s2737 + $0x160] sm:$0xff]
      %v2783 = vld [vmem:[%s2737 + $0x168] sm:$0xff]
      %v2784 = vld [vmem:[%s2737 + $0x170] sm:$0xff]
      %v2785 = vld [vmem:[%s2737 + $0x178] sm:$0xff]
      %s2786 = scalar_lea.vmem %s661, 6
      %v2787 = vld [vmem:[%s2786] ss:$8 sm:$0x3]
      %s2788 = scalar_lea.vmem %s661, 38
      %v2789 = vld [vmem:[%s2788] ss:$8 sm:$0x3]
      %v2792 = vlaneseq
      %v2793 = vshrl.u32 %v2792, 7
      %v2794 = vsub.s32 0, %v2793
      %v2795 = vrot.slane %v2787, %v2794
      %v2796 = vlaneseq
      %v2797 = vshrl.u32 %v2796, 7
      %v2798 = vsub.s32 1, %v2797
      %v2799 = vrot.slane %v2787, %v2798
      %v2800 = vlaneseq
      %v2801 = vshrl.u32 %v2800, 7
      %v2802 = vsub.s32 0, %v2801
      %v2803 = vrot.slane %v2789, %v2802
      %v2804 = vlaneseq
      %v2805 = vshrl.u32 %v2804, 7
      %v2806 = vsub.s32 1, %v2805
      %v2807 = vrot.slane %v2789, %v2806
      %v2813 = vsel %vm850, %v2735, 0
      %2815 = vmatprep.subr.mxu0 %v2739
      %2816 = vmatpush1.msra.mxu0 %v2738
      %2817 = vmatprep.subr.mxu0 %v2741
      %2818 = vmatpush1.msra.mxu0 %v2740
      %2819 = vmatprep.subr.mxu0 %v2743
      %2820 = vmatpush1.msra.mxu0 %v2742
      %2821 = vmatprep.subr.mxu0 %v2745
      %2822 = vmatpush1.msra.mxu0 %v2744
      %2823 = vmatprep.subr.mxu0 %v2747
      %2824 = vmatpush1.msra.mxu0 %v2746
      %2825 = vmatprep.subr.mxu0 %v2749
      %2826 = vmatpush1.msra.mxu0 %v2748
      %2827 = vmatprep.subr.mxu0 %v2751
      %2828 = vmatpush1.msra.mxu0 %v2750
      %2829 = vmatprep.subr.mxu0 %v2753
      %2830 = vmatpush1.msra.mxu0 %v2752
      %2831 = vmatprep.subr.mxu0 %v2755
      %2832 = vmatpush1.msra.mxu0 %v2754
      %2833 = vmatprep.subr.mxu0 %v2757
      %2834 = vmatpush1.msra.mxu0 %v2756
      %2835 = vmatprep.subr.mxu0 %v2759
      %2836 = vmatpush1.msra.mxu0 %v2758
      %2837 = vmatprep.subr.mxu0 %v2761
      %2838 = vmatpush1.msra.mxu0 %v2760
      %2839 = vmatprep.subr.mxu0 0.0
      %2840 = vmatpush1.msra.mxu0 0.0
      %2841 = vmatprep.subr.mxu0 0.0
      %2842 = vmatpush1.msra.mxu0 0.0
      %2843 = vmatprep.subr.mxu0 0.0
      %2844 = vmatpush1.msra.mxu0 0.0
      %2845 = vmatprep.subr.mxu0 0.0
      %2846 = vmatpush1.msra.mxu0 0.0
      %2847 = vmatprep.subr.mxu0 0.0
      %2848 = vmatpush1.msra.mxu0 0.0
      %2849 = vmatprep.subr.mxu0 0.0
      %2850 = vmatpush1.msra.mxu0 0.0
      %2851 = vmatprep.subr.mxu0 0.0
      %2852 = vmatpush1.msra.mxu0 0.0
      %2853 = vmatprep.subr.mxu0 0.0
      %2854 = vmatpush1.msra.mxu0 0.0
      %2855 = vmatprep.subr.mxu0 0.0
      %2856 = vmatpush1.msra.mxu0 0.0
      %2857 = vmatprep.subr.mxu0 0.0
      %2858 = vmatpush1.msra.mxu0 0.0
      %2859 = vmatprep.subr.mxu0 0.0
      %2860 = vmatpush1.msra.mxu0 0.0
      %2861 = vmatprep.subr.mxu0 0.0
      %2862 = vmatpush1.msra.mxu0 0.0
      %2863 = vmatprep.subr.mxu0 0.0
      %2864 = vmatpush1.msra.mxu0 0.0
      %2865 = vmatprep.subr.mxu0 0.0
      %2866 = vmatpush1.msra.mxu0 0.0
      %2867 = vmatprep.subr.mxu0 0.0
      %2868 = vmatpush1.msra.mxu0 0.0
      %2869 = vmatprep.subr.mxu0 0.0
      %2870 = vmatpush1.msra.mxu0 0.0
      %2871 = vmatprep.subr.mxu0 0.0
      %2872 = vmatpush1.msra.mxu0 0.0
      %2873 = vmatprep.subr.mxu0 0.0
      %2874 = vmatpush1.msra.mxu0 0.0
      %2875 = vmatprep.subr.mxu0 0.0
      %2876 = vmatpush1.msra.mxu0 0.0
      %2877 = vmatprep.subr.mxu0 0.0
      %2878 = vmatpush1.msra.mxu0 0.0
      %2879 = vmatprep.mubr.f32.mxu0 0.0
      %2880 = vmatmul.mubr.f32.gmra.mrb[0].mxu0 %v2813
      %v2881 = vpop.f32.mrb[0].mxu0
      %v2882 = vadd.f32 %v2795, %v2881
      %v2883 = vpop.f32.mrb[0].mxu0
      %v2884 = vadd.f32 %v2799, %v2883
      %2885 = vdwg.mxu0
      %v2887 = vsel %vm850, %v2736, 0
      %2889 = vmatprep.subr.mxu0 %v2763
      %2890 = vmatpush1.msra.mxu0 %v2762
      %2891 = vmatprep.subr.mxu0 %v2765
      %2892 = vmatpush1.msra.mxu0 %v2764
      %2893 = vmatprep.subr.mxu0 %v2767
      %2894 = vmatpush1.msra.mxu0 %v2766
      %2895 = vmatprep.subr.mxu0 %v2769
      %2896 = vmatpush1.msra.mxu0 %v2768
      %2897 = vmatprep.subr.mxu0 %v2771
      %2898 = vmatpush1.msra.mxu0 %v2770
      %2899 = vmatprep.subr.mxu0 %v2773
      %2900 = vmatpush1.msra.mxu0 %v2772
      %2901 = vmatprep.subr.mxu0 %v2775
      %2902 = vmatpush1.msra.mxu0 %v2774
      %2903 = vmatprep.subr.mxu0 %v2777
      %2904 = vmatpush1.msra.mxu0 %v2776
      %2905 = vmatprep.subr.mxu0 %v2779
      %2906 = vmatpush1.msra.mxu0 %v2778
      %2907 = vmatprep.subr.mxu0 %v2781
      %2908 = vmatpush1.msra.mxu0 %v2780
      %2909 = vmatprep.subr.mxu0 %v2783
      %2910 = vmatpush1.msra.mxu0 %v2782
      %2911 = vmatprep.subr.mxu0 %v2785
      %2912 = vmatpush1.msra.mxu0 %v2784
      %2913 = vmatprep.subr.mxu0 0.0
      %2914 = vmatpush1.msra.mxu0 0.0
      %2915 = vmatprep.subr.mxu0 0.0
      %2916 = vmatpush1.msra.mxu0 0.0
      %2917 = vmatprep.subr.mxu0 0.0
      %2918 = vmatpush1.msra.mxu0 0.0
      %2919 = vmatprep.subr.mxu0 0.0
      %2920 = vmatpush1.msra.mxu0 0.0
      %2921 = vmatprep.subr.mxu0 0.0
      %2922 = vmatpush1.msra.mxu0 0.0
      %2923 = vmatprep.subr.mxu0 0.0
      %2924 = vmatpush1.msra.mxu0 0.0
      %2925 = vmatprep.subr.mxu0 0.0
      %2926 = vmatpush1.msra.mxu0 0.0
      %2927 = vmatprep.subr.mxu0 0.0
      %2928 = vmatpush1.msra.mxu0 0.0
      %2929 = vmatprep.subr.mxu0 0.0
      %2930 = vmatpush1.msra.mxu0 0.0
      %2931 = vmatprep.subr.mxu0 0.0
      %2932 = vmatpush1.msra.mxu0 0.0
      %2933 = vmatprep.subr.mxu0 0.0
      %2934 = vmatpush1.msra.mxu0 0.0
      %2935 = vmatprep.subr.mxu0 0.0
      %2936 = vmatpush1.msra.mxu0 0.0
      %2937 = vmatprep.subr.mxu0 0.0
      %2938 = vmatpush1.msra.mxu0 0.0
      %2939 = vmatprep.subr.mxu0 0.0
      %2940 = vmatpush1.msra.mxu0 0.0
      %2941 = vmatprep.subr.mxu0 0.0
      %2942 = vmatpush1.msra.mxu0 0.0
      %2943 = vmatprep.subr.mxu0 0.0
      %2944 = vmatpush1.msra.mxu0 0.0
      %2945 = vmatprep.subr.mxu0 0.0
      %2946 = vmatpush1.msra.mxu0 0.0
      %2947 = vmatprep.subr.mxu0 0.0
      %2948 = vmatpush1.msra.mxu0 0.0
      %2949 = vmatprep.subr.mxu0 0.0
      %2950 = vmatpush1.msra.mxu0 0.0
      %2951 = vmatprep.subr.mxu0 0.0
      %2952 = vmatpush1.msra.mxu0 0.0
      %2953 = vmatprep.mubr.f32.mxu0 0.0
      %2954 = vmatmul.mubr.f32.gmra.mrb[0].mxu0 %v2887
      %v2955 = vpop.f32.mrb[0].mxu0
      %v2956 = vadd.f32 %v2803, %v2955
      %v2957 = vpop.f32.mrb[0].mxu0
      %v2958 = vadd.f32 %v2807, %v2957
      %2959 = vdwg.mxu0
      %s2960 = scalar_lea.vmem %s661, 7
      %v2961 = vld [vmem:[%s2960] ss:$8 sm:$0x3]
      %s2962 = scalar_lea.vmem %s661, 39
      %v2963 = vld [vmem:[%s2962] ss:$8 sm:$0x3]
      %s2964 = scalar_lea.vmem %s661, 16
      %v2965 = vld [vmem:[%s2964] ss:$8 sm:$0x3]
      %s2966 = scalar_lea.vmem %s661, 48
      %v2967 = vld [vmem:[%s2966] ss:$8 sm:$0x3]
      %v2968 = vsel %vm1361, %v2884, 0.0
      %v2969 = vadd.f32 %v2882, %v2968
      %2970 = vadd.xlane.f32.xlu0 %v2969
      %v2971 = vpop.xlane.xlu0 %2970
      %v2972 = vsel %vm1361, %v2958, 0.0
      %v2973 = vadd.f32 %v2956, %v2972
      %2974 = vadd.xlane.f32.xlu0 %v2973
      %v2975 = vpop.xlane.xlu0 %2974
      %v2976 = vmul.f32 %v2971, %v1370
      %v2977 = vmul.f32 %v2975, %v1370
      %v2978 = vsub.f32 %v2882, %v2976
      %v2979 = vsub.f32 %v2884, %v2976
      %v2980 = vsub.f32 %v2956, %v2977
      %v2981 = vsub.f32 %v2958, %v2977
      %v2982 = vmul.f32 %v2978, %v2978
      %v2983 = vmul.f32 %v2979, %v2979
      %v2984 = vmul.f32 %v2980, %v2980
      %v2985 = vmul.f32 %v2981, %v2981
      %v2986 = vsel %vm1361, %v2983, 0.0
      %v2987 = vadd.f32 %v2982, %v2986
      %2988 = vadd.xlane.f32.xlu0 %v2987
      %v2989 = vpop.xlane.xlu0 %2988
      %v2990 = vsel %vm1361, %v2985, 0.0
      %v2991 = vadd.f32 %v2984, %v2990
      %2992 = vadd.xlane.f32.xlu0 %v2991
      %v2993 = vpop.xlane.xlu0 %2992
      %v2994 = vmul.f32 %v2989, %v1370
      %v2995 = vmul.f32 %v2993, %v1370
      %v2996 = vadd.f32 %v2994, 1e-05
      %v2997 = vadd.f32 %v2995, 1e-05
      %v2998 = vrsqrt.pop %v2996
      %v2999 = vrsqrt.pop %v2997
      %v3000 = vmul.f32 %v2978, %v2998
      %v3001 = vmul.f32 %v2979, %v2998
      %v3002 = vmul.f32 %v2980, %v2999
      %v3003 = vmul.f32 %v2981, %v2999
      %v3006 = vlaneseq
      %v3007 = vshrl.u32 %v3006, 7
      %v3008 = vsub.s32 0, %v3007
      %v3009 = vrot.slane %v2961, %v3008
      %v3010 = vlaneseq
      %v3011 = vshrl.u32 %v3010, 7
      %v3012 = vsub.s32 1, %v3011
      %v3013 = vrot.slane %v2961, %v3012
      %v3014 = vlaneseq
      %v3015 = vshrl.u32 %v3014, 7
      %v3016 = vsub.s32 0, %v3015
      %v3017 = vrot.slane %v2963, %v3016
      %v3018 = vlaneseq
      %v3019 = vshrl.u32 %v3018, 7
      %v3020 = vsub.s32 1, %v3019
      %v3021 = vrot.slane %v2963, %v3020
      %v3026 = vmul.f32 %v3000, %v3009
      %v3027 = vmul.f32 %v3001, %v3013
      %v3028 = vmul.f32 %v3002, %v3017
      %v3029 = vmul.f32 %v3003, %v3021
      %v3032 = vlaneseq
      %v3033 = vshrl.u32 %v3032, 7
      %v3034 = vsub.s32 0, %v3033
      %v3035 = vrot.slane %v2965, %v3034
      %v3036 = vlaneseq
      %v3037 = vshrl.u32 %v3036, 7
      %v3038 = vsub.s32 1, %v3037
      %v3039 = vrot.slane %v2965, %v3038
      %v3040 = vlaneseq
      %v3041 = vshrl.u32 %v3040, 7
      %v3042 = vsub.s32 0, %v3041
      %v3043 = vrot.slane %v2967, %v3042
      %v3044 = vlaneseq
      %v3045 = vshrl.u32 %v3044, 7
      %v3046 = vsub.s32 1, %v3045
      %v3047 = vrot.slane %v2967, %v3046
      %v3052 = vadd.f32 %v3026, %v3035
      %v3053 = vadd.f32 %v3027, %v3039
      %v3054 = vadd.f32 %v3028, %v3043
      %v3055 = vadd.f32 %v3029, %v3047
      %v3056 = vmax.f32 %v3052, 0.0
      %v3057 = vmax.f32 %v3053, 0.0
      %v3058 = vmax.f32 %v3054, 0.0
      %v3059 = vmax.f32 %v3055, 0.0
      %s3060 = scalar_lea.vmem %s631, 576
      %v3061 = vld [vmem:[%s3060] sm:$0xff]
      %v3062 = vld [vmem:[%s3060 + $0x8] sm:$0xff]
      %v3063 = vld [vmem:[%s3060 + $0x10] sm:$0xff]
      %v3064 = vld [vmem:[%s3060 + $0x18] sm:$0xff]
      %v3065 = vld [vmem:[%s3060 + $0x20] sm:$0xff]
      %v3066 = vld [vmem:[%s3060 + $0x28] sm:$0xff]
      %v3067 = vld [vmem:[%s3060 + $0x30] sm:$0xff]
      %v3068 = vld [vmem:[%s3060 + $0x38] sm:$0xff]
      %v3069 = vld [vmem:[%s3060 + $0x40] sm:$0xff]
      %v3070 = vld [vmem:[%s3060 + $0x48] sm:$0xff]
      %v3071 = vld [vmem:[%s3060 + $0x50] sm:$0xff]
      %v3072 = vld [vmem:[%s3060 + $0x58] sm:$0xff]
      %v3073 = vld [vmem:[%s3060 + $0x60] sm:$0xff]
      %v3074 = vld [vmem:[%s3060 + $0x68] sm:$0xff]
      %v3075 = vld [vmem:[%s3060 + $0x70] sm:$0xff]
      %v3076 = vld [vmem:[%s3060 + $0x78] sm:$0xff]
      %v3077 = vld [vmem:[%s3060 + $0x80] sm:$0xff]
      %v3078 = vld [vmem:[%s3060 + $0x88] sm:$0xff]
      %v3079 = vld [vmem:[%s3060 + $0x90] sm:$0xff]
      %v3080 = vld [vmem:[%s3060 + $0x98] sm:$0xff]
      %v3081 = vld [vmem:[%s3060 + $0xa0] sm:$0xff]
      %v3082 = vld [vmem:[%s3060 + $0xa8] sm:$0xff]
      %v3083 = vld [vmem:[%s3060 + $0xb0] sm:$0xff]
      %v3084 = vld [vmem:[%s3060 + $0xb8] sm:$0xff]
      %v3085 = vld [vmem:[%s3060 + $0xc0] sm:$0xff]
      %v3086 = vld [vmem:[%s3060 + $0xc8] sm:$0xff]
      %v3087 = vld [vmem:[%s3060 + $0xd0] sm:$0xff]
      %v3088 = vld [vmem:[%s3060 + $0xd8] sm:$0xff]
      %v3089 = vld [vmem:[%s3060 + $0xe0] sm:$0xff]
      %v3090 = vld [vmem:[%s3060 + $0xe8] sm:$0xff]
      %v3091 = vld [vmem:[%s3060 + $0xf0] sm:$0xff]
      %v3092 = vld [vmem:[%s3060 + $0xf8] sm:$0xff]
      %v3093 = vld [vmem:[%s3060 + $0x100] sm:$0xff]
      %v3094 = vld [vmem:[%s3060 + $0x108] sm:$0xff]
      %v3095 = vld [vmem:[%s3060 + $0x110] sm:$0xff]
      %v3096 = vld [vmem:[%s3060 + $0x118] sm:$0xff]
      %v3097 = vld [vmem:[%s656 + $0x12] sm:$0x1]
      %v3098 = vld [vmem:[%s656 + $0x32] sm:$0x1]
      %v3099 = vlaneseq
      %v3100 = vshrl.u32 %v3099, 7
      %v3101 = vsub.s32 0, %v3100
      %v3102 = vrot.slane %v3097, %v3101
      %v3103 = vlaneseq
      %v3104 = vshrl.u32 %v3103, 7
      %v3105 = vsub.s32 0, %v3104
      %v3106 = vrot.slane %v3098, %v3105
      %v3108 = vsel %vm1361, %v3057, 0
      %3110 = vmatprep.subr.mxu0 0.0
      %3111 = vmatpush1.msra.mxu0 %v3061
      %3112 = vmatprep.subr.mxu0 0.0
      %3113 = vmatpush1.msra.mxu0 %v3062
      %3114 = vmatprep.subr.mxu0 0.0
      %3115 = vmatpush1.msra.mxu0 %v3063
      %3116 = vmatprep.subr.mxu0 0.0
      %3117 = vmatpush1.msra.mxu0 %v3064
      %3118 = vmatprep.subr.mxu0 0.0
      %3119 = vmatpush1.msra.mxu0 %v3065
      %3120 = vmatprep.subr.mxu0 0.0
      %3121 = vmatpush1.msra.mxu0 %v3066
      %3122 = vmatprep.subr.mxu0 0.0
      %3123 = vmatpush1.msra.mxu0 %v3067
      %3124 = vmatprep.subr.mxu0 0.0
      %3125 = vmatpush1.msra.mxu0 %v3068
      %3126 = vmatprep.subr.mxu0 0.0
      %3127 = vmatpush1.msra.mxu0 %v3069
      %3128 = vmatprep.subr.mxu0 0.0
      %3129 = vmatpush1.msra.mxu0 %v3070
      %3130 = vmatprep.subr.mxu0 0.0
      %3131 = vmatpush1.msra.mxu0 %v3071
      %3132 = vmatprep.subr.mxu0 0.0
      %3133 = vmatpush1.msra.mxu0 %v3072
      %3134 = vmatprep.subr.mxu0 0.0
      %3135 = vmatpush1.msra.mxu0 %v3073
      %3136 = vmatprep.subr.mxu0 0.0
      %3137 = vmatpush1.msra.mxu0 %v3074
      %3138 = vmatprep.subr.mxu0 0.0
      %3139 = vmatpush1.msra.mxu0 %v3075
      %3140 = vmatprep.subr.mxu0 0.0
      %3141 = vmatpush1.msra.mxu0 %v3076
      %3142 = vmatprep.subr.mxu0 0.0
      %3143 = vmatpush1.msra.mxu0 %v3077
      %3144 = vmatprep.subr.mxu0 0.0
      %3145 = vmatpush1.msra.mxu0 %v3078
      %3146 = vmatprep.subr.mxu0 0.0
      %3147 = vmatpush1.msra.mxu0 0.0
      %3148 = vmatprep.subr.mxu0 0.0
      %3149 = vmatpush1.msra.mxu0 0.0
      %3150 = vmatprep.subr.mxu0 0.0
      %3151 = vmatpush1.msra.mxu0 0.0
      %3152 = vmatprep.subr.mxu0 0.0
      %3153 = vmatpush1.msra.mxu0 0.0
      %3154 = vmatprep.subr.mxu0 0.0
      %3155 = vmatpush1.msra.mxu0 0.0
      %3156 = vmatprep.subr.mxu0 0.0
      %3157 = vmatpush1.msra.mxu0 0.0
      %3158 = vmatprep.subr.mxu0 0.0
      %3159 = vmatpush1.msra.mxu0 0.0
      %3160 = vmatprep.subr.mxu0 0.0
      %3161 = vmatpush1.msra.mxu0 0.0
      %3162 = vmatprep.subr.mxu0 0.0
      %3163 = vmatpush1.msra.mxu0 0.0
      %3164 = vmatprep.subr.mxu0 0.0
      %3165 = vmatpush1.msra.mxu0 0.0
      %3166 = vmatprep.subr.mxu0 0.0
      %3167 = vmatpush1.msra.mxu0 0.0
      %3168 = vmatprep.subr.mxu0 0.0
      %3169 = vmatpush1.msra.mxu0 0.0
      %3170 = vmatprep.subr.mxu0 0.0
      %3171 = vmatpush1.msra.mxu0 0.0
      %3172 = vmatprep.subr.mxu0 0.0
      %3173 = vmatpush1.msra.mxu0 0.0
      %3174 = vmatprep.mubr.f32.mxu0 %v3108
      %3175 = vmatmul.mubr.f32.gmra.mrb[0].mxu0 %v3056
      %v3176 = vpop.f32.mrb[0].mxu0
      %v3177 = vadd.f32 %v3102, %v3176
      %v3178 = vpop.f32.mrb[0].mxu0
      %3179 = vdwg.mxu0
      %v3181 = vsel %vm1361, %v3059, 0
      %3183 = vmatprep.subr.mxu0 0.0
      %3184 = vmatpush1.msra.mxu0 %v3079
      %3185 = vmatprep.subr.mxu0 0.0
      %3186 = vmatpush1.msra.mxu0 %v3080
      %3187 = vmatprep.subr.mxu0 0.0
      %3188 = vmatpush1.msra.mxu0 %v3081
      %3189 = vmatprep.subr.mxu0 0.0
      %3190 = vmatpush1.msra.mxu0 %v3082
      %3191 = vmatprep.subr.mxu0 0.0
      %3192 = vmatpush1.msra.mxu0 %v3083
      %3193 = vmatprep.subr.mxu0 0.0
      %3194 = vmatpush1.msra.mxu0 %v3084
      %3195 = vmatprep.subr.mxu0 0.0
      %3196 = vmatpush1.msra.mxu0 %v3085
      %3197 = vmatprep.subr.mxu0 0.0
      %3198 = vmatpush1.msra.mxu0 %v3086
      %3199 = vmatprep.subr.mxu0 0.0
      %3200 = vmatpush1.msra.mxu0 %v3087
      %3201 = vmatprep.subr.mxu0 0.0
      %3202 = vmatpush1.msra.mxu0 %v3088
      %3203 = vmatprep.subr.mxu0 0.0
      %3204 = vmatpush1.msra.mxu0 %v3089
      %3205 = vmatprep.subr.mxu0 0.0
      %3206 = vmatpush1.msra.mxu0 %v3090
      %3207 = vmatprep.subr.mxu0 0.0
      %3208 = vmatpush1.msra.mxu0 %v3091
      %3209 = vmatprep.subr.mxu0 0.0
      %3210 = vmatpush1.msra.mxu0 %v3092
      %3211 = vmatprep.subr.mxu0 0.0
      %3212 = vmatpush1.msra.mxu0 %v3093
      %3213 = vmatprep.subr.mxu0 0.0
      %3214 = vmatpush1.msra.mxu0 %v3094
      %3215 = vmatprep.subr.mxu0 0.0
      %3216 = vmatpush1.msra.mxu0 %v3095
      %3217 = vmatprep.subr.mxu0 0.0
      %3218 = vmatpush1.msra.mxu0 %v3096
      %3219 = vmatprep.subr.mxu0 0.0
      %3220 = vmatpush1.msra.mxu0 0.0
      %3221 = vmatprep.subr.mxu0 0.0
      %3222 = vmatpush1.msra.mxu0 0.0
      %3223 = vmatprep.subr.mxu0 0.0
      %3224 = vmatpush1.msra.mxu0 0.0
      %3225 = vmatprep.subr.mxu0 0.0
      %3226 = vmatpush1.msra.mxu0 0.0
      %3227 = vmatprep.subr.mxu0 0.0
      %3228 = vmatpush1.msra.mxu0 0.0
      %3229 = vmatprep.subr.mxu0 0.0
      %3230 = vmatpush1.msra.mxu0 0.0
      %3231 = vmatprep.subr.mxu0 0.0
      %3232 = vmatpush1.msra.mxu0 0.0
      %3233 = vmatprep.subr.mxu0 0.0
      %3234 = vmatpush1.msra.mxu0 0.0
      %3235 = vmatprep.subr.mxu0 0.0
      %3236 = vmatpush1.msra.mxu0 0.0
      %3237 = vmatprep.subr.mxu0 0.0
      %3238 = vmatpush1.msra.mxu0 0.0
      %3239 = vmatprep.subr.mxu0 0.0
      %3240 = vmatpush1.msra.mxu0 0.0
      %3241 = vmatprep.subr.mxu0 0.0
      %3242 = vmatpush1.msra.mxu0 0.0
      %3243 = vmatprep.subr.mxu0 0.0
      %3244 = vmatpush1.msra.mxu0 0.0
      %3245 = vmatprep.subr.mxu0 0.0
      %3246 = vmatpush1.msra.mxu0 0.0
      %3247 = vmatprep.mubr.f32.mxu0 %v3181
      %3248 = vmatmul.mubr.f32.gmra.mrb[0].mxu0 %v3058
      %v3249 = vpop.f32.mrb[0].mxu0
      %v3250 = vadd.f32 %v3106, %v3249
      %v3251 = vpop.f32.mrb[0].mxu0
      %3252 = vdwg.mxu0
      %v3253 = vld [vmem:[%s656 + $0x13] sm:$0x1]
      %v3254 = vld [vmem:[%s656 + $0x33] sm:$0x1]
      %v3255 = vld [vmem:[%s656 + $0x14] sm:$0x1]
      %v3256 = vld [vmem:[%s656 + $0x34] sm:$0x1]
      %v3257 = vsel %vm850, %v3177, 0.0
      %3258 = vadd.xlane.f32.xlu0 %v3257
      %v3259 = vpop.xlane.xlu0 %3258
      %v3260 = vsel %vm850, %v3250, 0.0
      %3261 = vadd.xlane.f32.xlu0 %v3260
      %v3262 = vpop.xlane.xlu0 %3261
      %v3263 = vmul.f32 %v3259, %v857
      %v3264 = vmul.f32 %v3262, %v857
      %v3265 = vsub.f32 %v3177, %v3263
      %v3266 = vsub.f32 %v3250, %v3264
      %v3267 = vmul.f32 %v3265, %v3265
      %v3268 = vmul.f32 %v3266, %v3266
      %v3269 = vsel %vm850, %v3267, 0.0
      %3270 = vadd.xlane.f32.xlu0 %v3269
      %v3271 = vpop.xlane.xlu0 %3270
      %v3272 = vsel %vm850, %v3268, 0.0
      %3273 = vadd.xlane.f32.xlu0 %v3272
      %v3274 = vpop.xlane.xlu0 %3273
      %v3275 = vmul.f32 %v3271, %v857
      %v3276 = vmul.f32 %v3274, %v857
      %v3277 = vadd.f32 %v3275, 1e-05
      %v3278 = vadd.f32 %v3276, 1e-05
      %v3279 = vrsqrt.pop %v3277
      %v3280 = vrsqrt.pop %v3278
      %v3281 = vmul.f32 %v3265, %v3279
      %v3282 = vmul.f32 %v3266, %v3280
      %v3283 = vlaneseq
      %v3284 = vshrl.u32 %v3283, 7
      %v3285 = vsub.s32 0, %v3284
      %v3286 = vrot.slane %v3253, %v3285
      %v3287 = vlaneseq
      %v3288 = vshrl.u32 %v3287, 7
      %v3289 = vsub.s32 0, %v3288
      %v3290 = vrot.slane %v3254, %v3289
      %v3291 = vmul.f32 %v3281, %v3286
      %v3292 = vmul.f32 %v3282, %v3290
      %v3293 = vlaneseq
      %v3294 = vshrl.u32 %v3293, 7
      %v3295 = vsub.s32 0, %v3294
      %v3296 = vrot.slane %v3255, %v3295
      %v3297 = vlaneseq
      %v3298 = vshrl.u32 %v3297, 7
      %v3299 = vsub.s32 0, %v3298
      %v3300 = vrot.slane %v3256, %v3299
      %v3301 = vadd.f32 %v3291, %v3296
      %v3302 = vadd.f32 %v3292, %v3300
      %v3303 = vadd.f32 %v2502, %v3301
      %v3304 = vadd.f32 %v2503, %v3302
      %v3305 = vmax.f32 %v3303, 0.0
      %v3306 = vmax.f32 %v3304, 0.0
      %s3307 = scalar_lea.vmem %s621, 576
      %v3308 = vld [vmem:[%s3307] sm:$0xff]
      %v3309 = vld [vmem:[%s3307 + $0x8] sm:$0xff]
      %v3310 = vld [vmem:[%s3307 + $0x10] sm:$0xff]
      %v3311 = vld [vmem:[%s3307 + $0x18] sm:$0xff]
      %v3312 = vld [vmem:[%s3307 + $0x20] sm:$0xff]
      %v3313 = vld [vmem:[%s3307 + $0x28] sm:$0xff]
      %v3314 = vld [vmem:[%s3307 + $0x30] sm:$0xff]
      %v3315 = vld [vmem:[%s3307 + $0x38] sm:$0xff]
      %v3316 = vld [vmem:[%s3307 + $0x40] sm:$0xff]
      %v3317 = vld [vmem:[%s3307 + $0x48] sm:$0xff]
      %v3318 = vld [vmem:[%s3307 + $0x50] sm:$0xff]
      %v3319 = vld [vmem:[%s3307 + $0x58] sm:$0xff]
      %v3320 = vld [vmem:[%s3307 + $0x60] sm:$0xff]
      %v3321 = vld [vmem:[%s3307 + $0x68] sm:$0xff]
      %v3322 = vld [vmem:[%s3307 + $0x70] sm:$0xff]
      %v3323 = vld [vmem:[%s3307 + $0x78] sm:$0xff]
      %v3324 = vld [vmem:[%s3307 + $0x80] sm:$0xff]
      %v3325 = vld [vmem:[%s3307 + $0x88] sm:$0xff]
      %v3326 = vld [vmem:[%s3307 + $0x90] sm:$0xff]
      %v3327 = vld [vmem:[%s3307 + $0x98] sm:$0xff]
      %v3328 = vld [vmem:[%s3307 + $0xa0] sm:$0xff]
      %v3329 = vld [vmem:[%s3307 + $0xa8] sm:$0xff]
      %v3330 = vld [vmem:[%s3307 + $0xb0] sm:$0xff]
      %v3331 = vld [vmem:[%s3307 + $0xb8] sm:$0xff]
      %v3332 = vld [vmem:[%s656 + $0x15] sm:$0x1]
      %v3333 = vld [vmem:[%s656 + $0x35] sm:$0x1]
      %v3334 = vlaneseq
      %v3335 = vshrl.u32 %v3334, 7
      %v3336 = vsub.s32 0, %v3335
      %v3337 = vrot.slane %v3332, %v3336
      %v3338 = vlaneseq
      %v3339 = vshrl.u32 %v3338, 7
      %v3340 = vsub.s32 0, %v3339
      %v3341 = vrot.slane %v3333, %v3340
      %v3343 = vsel %vm850, %v3305, 0
      %3345 = vmatprep.subr.mxu0 0.0
      %3346 = vmatpush1.msra.mxu0 %v3308
      %3347 = vmatprep.subr.mxu0 0.0
      %3348 = vmatpush1.msra.mxu0 %v3309
      %3349 = vmatprep.subr.mxu0 0.0
      %3350 = vmatpush1.msra.mxu0 %v3310
      %3351 = vmatprep.subr.mxu0 0.0
      %3352 = vmatpush1.msra.mxu0 %v3311
      %3353 = vmatprep.subr.mxu0 0.0
      %3354 = vmatpush1.msra.mxu0 %v3312
      %3355 = vmatprep.subr.mxu0 0.0
      %3356 = vmatpush1.msra.mxu0 %v3313
      %3357 = vmatprep.subr.mxu0 0.0
      %3358 = vmatpush1.msra.mxu0 %v3314
      %3359 = vmatprep.subr.mxu0 0.0
      %3360 = vmatpush1.msra.mxu0 %v3315
      %3361 = vmatprep.subr.mxu0 0.0
      %3362 = vmatpush1.msra.mxu0 %v3316
      %3363 = vmatprep.subr.mxu0 0.0
      %3364 = vmatpush1.msra.mxu0 %v3317
      %3365 = vmatprep.subr.mxu0 0.0
      %3366 = vmatpush1.msra.mxu0 %v3318
      %3367 = vmatprep.subr.mxu0 0.0
      %3368 = vmatpush1.msra.mxu0 %v3319
      %3369 = vmatprep.subr.mxu0 0.0
      %3370 = vmatpush1.msra.mxu0 0.0
      %3371 = vmatprep.subr.mxu0 0.0
      %3372 = vmatpush1.msra.mxu0 0.0
      %3373 = vmatprep.subr.mxu0 0.0
      %3374 = vmatpush1.msra.mxu0 0.0
      %3375 = vmatprep.subr.mxu0 0.0
      %3376 = vmatpush1.msra.mxu0 0.0
      %3377 = vmatprep.subr.mxu0 0.0
      %3378 = vmatpush1.msra.mxu0 0.0
      %3379 = vmatprep.subr.mxu0 0.0
      %3380 = vmatpush1.msra.mxu0 0.0
      %3381 = vmatprep.subr.mxu0 0.0
      %3382 = vmatpush1.msra.mxu0 0.0
      %3383 = vmatprep.subr.mxu0 0.0
      %3384 = vmatpush1.msra.mxu0 0.0
      %3385 = vmatprep.subr.mxu0 0.0
      %3386 = vmatpush1.msra.mxu0 0.0
      %3387 = vmatprep.subr.mxu0 0.0
      %3388 = vmatpush1.msra.mxu0 0.0
      %3389 = vmatprep.subr.mxu0 0.0
      %3390 = vmatpush1.msra.mxu0 0.0
      %3391 = vmatprep.subr.mxu0 0.0
      %3392 = vmatpush1.msra.mxu0 0.0
      %3393 = vmatprep.subr.mxu0 0.0
      %3394 = vmatpush1.msra.mxu0 0.0
      %3395 = vmatprep.subr.mxu0 0.0
      %3396 = vmatpush1.msra.mxu0 0.0
      %3397 = vmatprep.subr.mxu0 0.0
      %3398 = vmatpush1.msra.mxu0 0.0
      %3399 = vmatprep.subr.mxu0 0.0
      %3400 = vmatpush1.msra.mxu0 0.0
      %3401 = vmatprep.subr.mxu0 0.0
      %3402 = vmatpush1.msra.mxu0 0.0
      %3403 = vmatprep.subr.mxu0 0.0
      %3404 = vmatpush1.msra.mxu0 0.0
      %3405 = vmatprep.subr.mxu0 0.0
      %3406 = vmatpush1.msra.mxu0 0.0
      %3407 = vmatprep.subr.mxu0 0.0
      %3408 = vmatpush1.msra.mxu0 0.0
      %3409 = vmatprep.mubr.f32.mxu0 0.0
      %3410 = vmatmul.mubr.f32.gmra.mrb[0].mxu0 %v3343
      %v3411 = vpop.f32.mrb[0].mxu0
      %v3412 = vadd.f32 %v3337, %v3411
      %v3413 = vpop.f32.mrb[0].mxu0
      %3414 = vdwg.mxu0
      %v3416 = vsel %vm850, %v3306, 0
      %3418 = vmatprep.subr.mxu0 0.0
      %3419 = vmatpush1.msra.mxu0 %v3320
      %3420 = vmatprep.subr.mxu0 0.0
      %3421 = vmatpush1.msra.mxu0 %v3321
      %3422 = vmatprep.subr.mxu0 0.0
      %3423 = vmatpush1.msra.mxu0 %v3322
      %3424 = vmatprep.subr.mxu0 0.0
      %3425 = vmatpush1.msra.mxu0 %v3323
      %3426 = vmatprep.subr.mxu0 0.0
      %3427 = vmatpush1.msra.mxu0 %v3324
      %3428 = vmatprep.subr.mxu0 0.0
      %3429 = vmatpush1.msra.mxu0 %v3325
      %3430 = vmatprep.subr.mxu0 0.0
      %3431 = vmatpush1.msra.mxu0 %v3326
      %3432 = vmatprep.subr.mxu0 0.0
      %3433 = vmatpush1.msra.mxu0 %v3327
      %3434 = vmatprep.subr.mxu0 0.0
      %3435 = vmatpush1.msra.mxu0 %v3328
      %3436 = vmatprep.subr.mxu0 0.0
      %3437 = vmatpush1.msra.mxu0 %v3329
      %3438 = vmatprep.subr.mxu0 0.0
      %3439 = vmatpush1.msra.mxu0 %v3330
      %3440 = vmatprep.subr.mxu0 0.0
      %3441 = vmatpush1.msra.mxu0 %v3331
      %3442 = vmatprep.subr.mxu0 0.0
      %3443 = vmatpush1.msra.mxu0 0.0
      %3444 = vmatprep.subr.mxu0 0.0
      %3445 = vmatpush1.msra.mxu0 0.0
      %3446 = vmatprep.subr.mxu0 0.0
      %3447 = vmatpush1.msra.mxu0 0.0
      %3448 = vmatprep.subr.mxu0 0.0
      %3449 = vmatpush1.msra.mxu0 0.0
      %3450 = vmatprep.subr.mxu0 0.0
      %3451 = vmatpush1.msra.mxu0 0.0
      %3452 = vmatprep.subr.mxu0 0.0
      %3453 = vmatpush1.msra.mxu0 0.0
      %3454 = vmatprep.subr.mxu0 0.0
      %3455 = vmatpush1.msra.mxu0 0.0
      %3456 = vmatprep.subr.mxu0 0.0
      %3457 = vmatpush1.msra.mxu0 0.0
      %3458 = vmatprep.subr.mxu0 0.0
      %3459 = vmatpush1.msra.mxu0 0.0
      %3460 = vmatprep.subr.mxu0 0.0
      %3461 = vmatpush1.msra.mxu0 0.0
      %3462 = vmatprep.subr.mxu0 0.0
      %3463 = vmatpush1.msra.mxu0 0.0
      %3464 = vmatprep.subr.mxu0 0.0
      %3465 = vmatpush1.msra.mxu0 0.0
      %3466 = vmatprep.subr.mxu0 0.0
      %3467 = vmatpush1.msra.mxu0 0.0
      %3468 = vmatprep.subr.mxu0 0.0
      %3469 = vmatpush1.msra.mxu0 0.0
      %3470 = vmatprep.subr.mxu0 0.0
      %3471 = vmatpush1.msra.mxu0 0.0
      %3472 = vmatprep.subr.mxu0 0.0
      %3473 = vmatpush1.msra.mxu0 0.0
      %3474 = vmatprep.subr.mxu0 0.0
      %3475 = vmatpush1.msra.mxu0 0.0
      %3476 = vmatprep.subr.mxu0 0.0
      %3477 = vmatpush1.msra.mxu0 0.0
      %3478 = vmatprep.subr.mxu0 0.0
      %3479 = vmatpush1.msra.mxu0 0.0
      %3480 = vmatprep.subr.mxu0 0.0
      %3481 = vmatpush1.msra.mxu0 0.0
      %3482 = vmatprep.mubr.f32.mxu0 0.0
      %3483 = vmatmul.mubr.f32.gmra.mrb[0].mxu0 %v3416
      %v3484 = vpop.f32.mrb[0].mxu0
      %v3485 = vadd.f32 %v3341, %v3484
      %v3486 = vpop.f32.mrb[0].mxu0
      %3487 = vdwg.mxu0
      %v3488 = vld [vmem:[%s656 + $0x16] sm:$0x1]
      %v3489 = vld [vmem:[%s656 + $0x36] sm:$0x1]
      %v3490 = vld [vmem:[%s656 + $0x17] sm:$0x1]
      %v3491 = vld [vmem:[%s656 + $0x37] sm:$0x1]
      %v3492 = vsel %vm850, %v3412, 0.0
      %3493 = vadd.xlane.f32.xlu0 %v3492
      %v3494 = vpop.xlane.xlu0 %3493
      %v3495 = vsel %vm850, %v3485, 0.0
      %3496 = vadd.xlane.f32.xlu0 %v3495
      %v3497 = vpop.xlane.xlu0 %3496
      %v3498 = vmul.f32 %v3494, %v857
      %v3499 = vmul.f32 %v3497, %v857
      %v3500 = vsub.f32 %v3412, %v3498
      %v3501 = vsub.f32 %v3485, %v3499
      %v3502 = vmul.f32 %v3500, %v3500
      %v3503 = vmul.f32 %v3501, %v3501
      %v3504 = vsel %vm850, %v3502, 0.0
      %3505 = vadd.xlane.f32.xlu0 %v3504
      %v3506 = vpop.xlane.xlu0 %3505
      %v3507 = vsel %vm850, %v3503, 0.0
      %3508 = vadd.xlane.f32.xlu0 %v3507
      %v3509 = vpop.xlane.xlu0 %3508
      %v3510 = vmul.f32 %v3506, %v857
      %v3511 = vmul.f32 %v3509, %v857
      %v3512 = vadd.f32 %v3510, 1e-05
      %v3513 = vadd.f32 %v3511, 1e-05
      %v3514 = vrsqrt.pop %v3512
      %v3515 = vrsqrt.pop %v3513
      %v3516 = vmul.f32 %v3500, %v3514
      %v3517 = vmul.f32 %v3501, %v3515
      %v3518 = vlaneseq
      %v3519 = vshrl.u32 %v3518, 7
      %v3520 = vsub.s32 0, %v3519
      %v3521 = vrot.slane %v3488, %v3520
      %v3522 = vlaneseq
      %v3523 = vshrl.u32 %v3522, 7
      %v3524 = vsub.s32 0, %v3523
      %v3525 = vrot.slane %v3489, %v3524
      %v3526 = vmul.f32 %v3516, %v3521
      %v3527 = vmul.f32 %v3517, %v3525
      %v3528 = vlaneseq
      %v3529 = vshrl.u32 %v3528, 7
      %v3530 = vsub.s32 0, %v3529
      %v3531 = vrot.slane %v3490, %v3530
      %v3532 = vlaneseq
      %v3533 = vshrl.u32 %v3532, 7
      %v3534 = vsub.s32 0, %v3533
      %v3535 = vrot.slane %v3491, %v3534
      %v3536 = vadd.f32 %v3526, %v3531
      %v3537 = vadd.f32 %v3527, %v3535
      %v3538 = vmax.f32 %v3536, 0.0
      %v3539 = vmax.f32 %v3537, 0.0
      %s3540 = scalar_lea.vmem %s626, 1152
      %v3541 = vld [vmem:[%s3540] sm:$0xff]
      %v3542 = vld [vmem:[%s3540 + $0x8] sm:$0xff]
      %v3543 = vld [vmem:[%s3540 + $0x10] sm:$0xff]
      %v3544 = vld [vmem:[%s3540 + $0x18] sm:$0xff]
      %v3545 = vld [vmem:[%s3540 + $0x20] sm:$0xff]
      %v3546 = vld [vmem:[%s3540 + $0x28] sm:$0xff]
      %v3547 = vld [vmem:[%s3540 + $0x30] sm:$0xff]
      %v3548 = vld [vmem:[%s3540 + $0x38] sm:$0xff]
      %v3549 = vld [vmem:[%s3540 + $0x40] sm:$0xff]
      %v3550 = vld [vmem:[%s3540 + $0x48] sm:$0xff]
      %v3551 = vld [vmem:[%s3540 + $0x50] sm:$0xff]
      %v3552 = vld [vmem:[%s3540 + $0x58] sm:$0xff]
      %v3553 = vld [vmem:[%s3540 + $0x60] sm:$0xff]
      %v3554 = vld [vmem:[%s3540 + $0x68] sm:$0xff]
      %v3555 = vld [vmem:[%s3540 + $0x70] sm:$0xff]
      %v3556 = vld [vmem:[%s3540 + $0x78] sm:$0xff]
      %v3557 = vld [vmem:[%s3540 + $0x80] sm:$0xff]
      %v3558 = vld [vmem:[%s3540 + $0x88] sm:$0xff]
      %v3559 = vld [vmem:[%s3540 + $0x90] sm:$0xff]
      %v3560 = vld [vmem:[%s3540 + $0x98] sm:$0xff]
      %v3561 = vld [vmem:[%s3540 + $0xa0] sm:$0xff]
      %v3562 = vld [vmem:[%s3540 + $0xa8] sm:$0xff]
      %v3563 = vld [vmem:[%s3540 + $0xb0] sm:$0xff]
      %v3564 = vld [vmem:[%s3540 + $0xb8] sm:$0xff]
      %v3565 = vld [vmem:[%s3540 + $0xc0] sm:$0xff]
      %v3566 = vld [vmem:[%s3540 + $0xc8] sm:$0xff]
      %v3567 = vld [vmem:[%s3540 + $0xd0] sm:$0xff]
      %v3568 = vld [vmem:[%s3540 + $0xd8] sm:$0xff]
      %v3569 = vld [vmem:[%s3540 + $0xe0] sm:$0xff]
      %v3570 = vld [vmem:[%s3540 + $0xe8] sm:$0xff]
      %v3571 = vld [vmem:[%s3540 + $0xf0] sm:$0xff]
      %v3572 = vld [vmem:[%s3540 + $0xf8] sm:$0xff]
      %v3573 = vld [vmem:[%s3540 + $0x100] sm:$0xff]
      %v3574 = vld [vmem:[%s3540 + $0x108] sm:$0xff]
      %v3575 = vld [vmem:[%s3540 + $0x110] sm:$0xff]
      %v3576 = vld [vmem:[%s3540 + $0x118] sm:$0xff]
      %v3577 = vld [vmem:[%s3540 + $0x120] sm:$0xff]
      %v3578 = vld [vmem:[%s3540 + $0x128] sm:$0xff]
      %v3579 = vld [vmem:[%s3540 + $0x130] sm:$0xff]
      %v3580 = vld [vmem:[%s3540 + $0x138] sm:$0xff]
      %v3581 = vld [vmem:[%s3540 + $0x140] sm:$0xff]
      %v3582 = vld [vmem:[%s3540 + $0x148] sm:$0xff]
      %v3583 = vld [vmem:[%s3540 + $0x150] sm:$0xff]
      %v3584 = vld [vmem:[%s3540 + $0x158] sm:$0xff]
      %v3585 = vld [vmem:[%s3540 + $0x160] sm:$0xff]
      %v3586 = vld [vmem:[%s3540 + $0x168] sm:$0xff]
      %v3587 = vld [vmem:[%s3540 + $0x170] sm:$0xff]
      %v3588 = vld [vmem:[%s3540 + $0x178] sm:$0xff]
      %s3589 = scalar_lea.vmem %s661, 17
      %v3590 = vld [vmem:[%s3589] ss:$8 sm:$0x3]
      %s3591 = scalar_lea.vmem %s661, 49
      %v3592 = vld [vmem:[%s3591] ss:$8 sm:$0x3]
      %v3595 = vlaneseq
      %v3596 = vshrl.u32 %v3595, 7
      %v3597 = vsub.s32 0, %v3596
      %v3598 = vrot.slane %v3590, %v3597
      %v3599 = vlaneseq
      %v3600 = vshrl.u32 %v3599, 7
      %v3601 = vsub.s32 1, %v3600
      %v3602 = vrot.slane %v3590, %v3601
      %v3603 = vlaneseq
      %v3604 = vshrl.u32 %v3603, 7
      %v3605 = vsub.s32 0, %v3604
      %v3606 = vrot.slane %v3592, %v3605
      %v3607 = vlaneseq
      %v3608 = vshrl.u32 %v3607, 7
      %v3609 = vsub.s32 1, %v3608
      %v3610 = vrot.slane %v3592, %v3609
      %v3616 = vsel %vm850, %v3538, 0
      %3618 = vmatprep.subr.mxu0 %v3542
      %3619 = vmatpush1.msra.mxu0 %v3541
      %3620 = vmatprep.subr.mxu0 %v3544
      %3621 = vmatpush1.msra.mxu0 %v3543
      %3622 = vmatprep.subr.mxu0 %v3546
      %3623 = vmatpush1.msra.mxu0 %v3545
      %3624 = vmatprep.subr.mxu0 %v3548
      %3625 = vmatpush1.msra.mxu0 %v3547
      %3626 = vmatprep.subr.mxu0 %v3550
      %3627 = vmatpush1.msra.mxu0 %v3549
      %3628 = vmatprep.subr.mxu0 %v3552
      %3629 = vmatpush1.msra.mxu0 %v3551
      %3630 = vmatprep.subr.mxu0 %v3554
      %3631 = vmatpush1.msra.mxu0 %v3553
      %3632 = vmatprep.subr.mxu0 %v3556
      %3633 = vmatpush1.msra.mxu0 %v3555
      %3634 = vmatprep.subr.mxu0 %v3558
      %3635 = vmatpush1.msra.mxu0 %v3557
      %3636 = vmatprep.subr.mxu0 %v3560
      %3637 = vmatpush1.msra.mxu0 %v3559
      %3638 = vmatprep.subr.mxu0 %v3562
      %3639 = vmatpush1.msra.mxu0 %v3561
      %3640 = vmatprep.subr.mxu0 %v3564
      %3641 = vmatpush1.msra.mxu0 %v3563
      %3642 = vmatprep.subr.mxu0 0.0
      %3643 = vmatpush1.msra.mxu0 0.0
      %3644 = vmatprep.subr.mxu0 0.0
      %3645 = vmatpush1.msra.mxu0 0.0
      %3646 = vmatprep.subr.mxu0 0.0
      %3647 = vmatpush1.msra.mxu0 0.0
      %3648 = vmatprep.subr.mxu0 0.0
      %3649 = vmatpush1.msra.mxu0 0.0
      %3650 = vmatprep.subr.mxu0 0.0
      %3651 = vmatpush1.msra.mxu0 0.0
      %3652 = vmatprep.subr.mxu0 0.0
      %3653 = vmatpush1.msra.mxu0 0.0
      %3654 = vmatprep.subr.mxu0 0.0
      %3655 = vmatpush1.msra.mxu0 0.0
      %3656 = vmatprep.subr.mxu0 0.0
      %3657 = vmatpush1.msra.mxu0 0.0
      %3658 = vmatprep.subr.mxu0 0.0
      %3659 = vmatpush1.msra.mxu0 0.0
      %3660 = vmatprep.subr.mxu0 0.0
      %3661 = vmatpush1.msra.mxu0 0.0
      %3662 = vmatprep.subr.mxu0 0.0
      %3663 = vmatpush1.msra.mxu0 0.0
      %3664 = vmatprep.subr.mxu0 0.0
      %3665 = vmatpush1.msra.mxu0 0.0
      %3666 = vmatprep.subr.mxu0 0.0
      %3667 = vmatpush1.msra.mxu0 0.0
      %3668 = vmatprep.subr.mxu0 0.0
      %3669 = vmatpush1.msra.mxu0 0.0
      %3670 = vmatprep.subr.mxu0 0.0
      %3671 = vmatpush1.msra.mxu0 0.0
      %3672 = vmatprep.subr.mxu0 0.0
      %3673 = vmatpush1.msra.mxu0 0.0
      %3674 = vmatprep.subr.mxu0 0.0
      %3675 = vmatpush1.msra.mxu0 0.0
      %3676 = vmatprep.subr.mxu0 0.0
      %3677 = vmatpush1.msra.mxu0 0.0
      %3678 = vmatprep.subr.mxu0 0.0
      %3679 = vmatpush1.msra.mxu0 0.0
      %3680 = vmatprep.subr.mxu0 0.0
      %3681 = vmatpush1.msra.mxu0 0.0
      %3682 = vmatprep.mubr.f32.mxu0 0.0
      %3683 = vmatmul.mubr.f32.gmra.mrb[0].mxu0 %v3616
      %v3684 = vpop.f32.mrb[0].mxu0
      %v3685 = vadd.f32 %v3598, %v3684
      %v3686 = vpop.f32.mrb[0].mxu0
      %v3687 = vadd.f32 %v3602, %v3686
      %3688 = vdwg.mxu0
      %v3690 = vsel %vm850, %v3539, 0
      %3692 = vmatprep.subr.mxu0 %v3566
      %3693 = vmatpush1.msra.mxu0 %v3565
      %3694 = vmatprep.subr.mxu0 %v3568
      %3695 = vmatpush1.msra.mxu0 %v3567
      %3696 = vmatprep.subr.mxu0 %v3570
      %3697 = vmatpush1.msra.mxu0 %v3569
      %3698 = vmatprep.subr.mxu0 %v3572
      %3699 = vmatpush1.msra.mxu0 %v3571
      %3700 = vmatprep.subr.mxu0 %v3574
      %3701 = vmatpush1.msra.mxu0 %v3573
      %3702 = vmatprep.subr.mxu0 %v3576
      %3703 = vmatpush1.msra.mxu0 %v3575
      %3704 = vmatprep.subr.mxu0 %v3578
      %3705 = vmatpush1.msra.mxu0 %v3577
      %3706 = vmatprep.subr.mxu0 %v3580
      %3707 = vmatpush1.msra.mxu0 %v3579
      %3708 = vmatprep.subr.mxu0 %v3582
      %3709 = vmatpush1.msra.mxu0 %v3581
      %3710 = vmatprep.subr.mxu0 %v3584
      %3711 = vmatpush1.msra.mxu0 %v3583
      %3712 = vmatprep.subr.mxu0 %v3586
      %3713 = vmatpush1.msra.mxu0 %v3585
      %3714 = vmatprep.subr.mxu0 %v3588
      %3715 = vmatpush1.msra.mxu0 %v3587
      %3716 = vmatprep.subr.mxu0 0.0
      %3717 = vmatpush1.msra.mxu0 0.0
      %3718 = vmatprep.subr.mxu0 0.0
      %3719 = vmatpush1.msra.mxu0 0.0
      %3720 = vmatprep.subr.mxu0 0.0
      %3721 = vmatpush1.msra.mxu0 0.0
      %3722 = vmatprep.subr.mxu0 0.0
      %3723 = vmatpush1.msra.mxu0 0.0
      %3724 = vmatprep.subr.mxu0 0.0
      %3725 = vmatpush1.msra.mxu0 0.0
      %3726 = vmatprep.subr.mxu0 0.0
      %3727 = vmatpush1.msra.mxu0 0.0
      %3728 = vmatprep.subr.mxu0 0.0
      %3729 = vmatpush1.msra.mxu0 0.0
      %3730 = vmatprep.subr.mxu0 0.0
      %3731 = vmatpush1.msra.mxu0 0.0
      %3732 = vmatprep.subr.mxu0 0.0
      %3733 = vmatpush1.msra.mxu0 0.0
      %3734 = vmatprep.subr.mxu0 0.0
      %3735 = vmatpush1.msra.mxu0 0.0
      %3736 = vmatprep.subr.mxu0 0.0
      %3737 = vmatpush1.msra.mxu0 0.0
      %3738 = vmatprep.subr.mxu0 0.0
      %3739 = vmatpush1.msra.mxu0 0.0
      %3740 = vmatprep.subr.mxu0 0.0
      %3741 = vmatpush1.msra.mxu0 0.0
      %3742 = vmatprep.subr.mxu0 0.0
      %3743 = vmatpush1.msra.mxu0 0.0
      %3744 = vmatprep.subr.mxu0 0.0
      %3745 = vmatpush1.msra.mxu0 0.0
      %3746 = vmatprep.subr.mxu0 0.0
      %3747 = vmatpush1.msra.mxu0 0.0
      %3748 = vmatprep.subr.mxu0 0.0
      %3749 = vmatpush1.msra.mxu0 0.0
      %3750 = vmatprep.subr.mxu0 0.0
      %3751 = vmatpush1.msra.mxu0 0.0
      %3752 = vmatprep.subr.mxu0 0.0
      %3753 = vmatpush1.msra.mxu0 0.0
      %3754 = vmatprep.subr.mxu0 0.0
      %3755 = vmatpush1.msra.mxu0 0.0
      %3756 = vmatprep.mubr.f32.mxu0 0.0
      %3757 = vmatmul.mubr.f32.gmra.mrb[0].mxu0 %v3690
      %v3758 = vpop.f32.mrb[0].mxu0
      %v3759 = vadd.f32 %v3606, %v3758
      %v3760 = vpop.f32.mrb[0].mxu0
      %v3761 = vadd.f32 %v3610, %v3760
      %3762 = vdwg.mxu0
      %s3763 = scalar_lea.vmem %s661, 18
      %v3764 = vld [vmem:[%s3763] ss:$8 sm:$0x3]
      %s3765 = scalar_lea.vmem %s661, 50
      %v3766 = vld [vmem:[%s3765] ss:$8 sm:$0x3]
      %s3767 = scalar_lea.vmem %s661, 19
      %v3768 = vld [vmem:[%s3767] ss:$8 sm:$0x3]
      %s3769 = scalar_lea.vmem %s661, 51
      %v3770 = vld [vmem:[%s3769] ss:$8 sm:$0x3]
      %v3771 = vsel %vm1361, %v3687, 0.0
      %v3772 = vadd.f32 %v3685, %v3771
      %3773 = vadd.xlane.f32.xlu0 %v3772
      %v3774 = vpop.xlane.xlu0 %3773
      %v3775 = vsel %vm1361, %v3761, 0.0
      %v3776 = vadd.f32 %v3759, %v3775
      %3777 = vadd.xlane.f32.xlu0 %v3776
      %v3778 = vpop.xlane.xlu0 %3777
      %v3779 = vmul.f32 %v3774, %v1370
      %v3780 = vmul.f32 %v3778, %v1370
      %v3781 = vsub.f32 %v3685, %v3779
      %v3782 = vsub.f32 %v3687, %v3779
      %v3783 = vsub.f32 %v3759, %v3780
      %v3784 = vsub.f32 %v3761, %v3780
      %v3785 = vmul.f32 %v3781, %v3781
      %v3786 = vmul.f32 %v3782, %v3782
      %v3787 = vmul.f32 %v3783, %v3783
      %v3788 = vmul.f32 %v3784, %v3784
      %v3789 = vsel %vm1361, %v3786, 0.0
      %v3790 = vadd.f32 %v3785, %v3789
      %3791 = vadd.xlane.f32.xlu0 %v3790
      %v3792 = vpop.xlane.xlu0 %3791
      %v3793 = vsel %vm1361, %v3788, 0.0
      %v3794 = vadd.f32 %v3787, %v3793
      %3795 = vadd.xlane.f32.xlu0 %v3794
      %v3796 = vpop.xlane.xlu0 %3795
      %v3797 = vmul.f32 %v3792, %v1370
      %v3798 = vmul.f32 %v3796, %v1370
      %v3799 = vadd.f32 %v3797, 1e-05
      %v3800 = vadd.f32 %v3798, 1e-05
      %v3801 = vrsqrt.pop %v3799
      %v3802 = vrsqrt.pop %v3800
      %v3803 = vmul.f32 %v3781, %v3801
      %v3804 = vmul.f32 %v3782, %v3801
      %v3805 = vmul.f32 %v3783, %v3802
      %v3806 = vmul.f32 %v3784, %v3802
      %v3809 = vlaneseq
      %v3810 = vshrl.u32 %v3809, 7
      %v3811 = vsub.s32 0, %v3810
      %v3812 = vrot.slane %v3764, %v3811
      %v3813 = vlaneseq
      %v3814 = vshrl.u32 %v3813, 7
      %v3815 = vsub.s32 1, %v3814
      %v3816 = vrot.slane %v3764, %v3815
      %v3817 = vlaneseq
      %v3818 = vshrl.u32 %v3817, 7
      %v3819 = vsub.s32 0, %v3818
      %v3820 = vrot.slane %v3766, %v3819
      %v3821 = vlaneseq
      %v3822 = vshrl.u32 %v3821, 7
      %v3823 = vsub.s32 1, %v3822
      %v3824 = vrot.slane %v3766, %v3823
      %v3829 = vmul.f32 %v3803, %v3812
      %v3830 = vmul.f32 %v3804, %v3816
      %v3831 = vmul.f32 %v3805, %v3820
      %v3832 = vmul.f32 %v3806, %v3824
      %v3835 = vlaneseq
      %v3836 = vshrl.u32 %v3835, 7
      %v3837 = vsub.s32 0, %v3836
      %v3838 = vrot.slane %v3768, %v3837
      %v3839 = vlaneseq
      %v3840 = vshrl.u32 %v3839, 7
      %v3841 = vsub.s32 1, %v3840
      %v3842 = vrot.slane %v3768, %v3841
      %v3843 = vlaneseq
      %v3844 = vshrl.u32 %v3843, 7
      %v3845 = vsub.s32 0, %v3844
      %v3846 = vrot.slane %v3770, %v3845
      %v3847 = vlaneseq
      %v3848 = vshrl.u32 %v3847, 7
      %v3849 = vsub.s32 1, %v3848
      %v3850 = vrot.slane %v3770, %v3849
      %v3855 = vadd.f32 %v3829, %v3838
      %v3856 = vadd.f32 %v3830, %v3842
      %v3857 = vadd.f32 %v3831, %v3846
      %v3858 = vadd.f32 %v3832, %v3850
      %v3859 = vmax.f32 %v3855, 0.0
      %v3860 = vmax.f32 %v3856, 0.0
      %v3861 = vmax.f32 %v3857, 0.0
      %v3862 = vmax.f32 %v3858, 0.0
      %s3863 = scalar_lea.vmem %s631, 864
      %v3864 = vld [vmem:[%s3863] sm:$0xff]
      %v3865 = vld [vmem:[%s3863 + $0x8] sm:$0xff]
      %v3866 = vld [vmem:[%s3863 + $0x10] sm:$0xff]
      %v3867 = vld [vmem:[%s3863 + $0x18] sm:$0xff]
      %v3868 = vld [vmem:[%s3863 + $0x20] sm:$0xff]
      %v3869 = vld [vmem:[%s3863 + $0x28] sm:$0xff]
      %v3870 = vld [vmem:[%s3863 + $0x30] sm:$0xff]
      %v3871 = vld [vmem:[%s3863 + $0x38] sm:$0xff]
      %v3872 = vld [vmem:[%s3863 + $0x40] sm:$0xff]
      %v3873 = vld [vmem:[%s3863 + $0x48] sm:$0xff]
      %v3874 = vld [vmem:[%s3863 + $0x50] sm:$0xff]
      %v3875 = vld [vmem:[%s3863 + $0x58] sm:$0xff]
      %v3876 = vld [vmem:[%s3863 + $0x60] sm:$0xff]
      %v3877 = vld [vmem:[%s3863 + $0x68] sm:$0xff]
      %v3878 = vld [vmem:[%s3863 + $0x70] sm:$0xff]
      %v3879 = vld [vmem:[%s3863 + $0x78] sm:$0xff]
      %v3880 = vld [vmem:[%s3863 + $0x80] sm:$0xff]
      %v3881 = vld [vmem:[%s3863 + $0x88] sm:$0xff]
      %v3882 = vld [vmem:[%s3863 + $0x90] sm:$0xff]
      %v3883 = vld [vmem:[%s3863 + $0x98] sm:$0xff]
      %v3884 = vld [vmem:[%s3863 + $0xa0] sm:$0xff]
      %v3885 = vld [vmem:[%s3863 + $0xa8] sm:$0xff]
      %v3886 = vld [vmem:[%s3863 + $0xb0] sm:$0xff]
      %v3887 = vld [vmem:[%s3863 + $0xb8] sm:$0xff]
      %v3888 = vld [vmem:[%s3863 + $0xc0] sm:$0xff]
      %v3889 = vld [vmem:[%s3863 + $0xc8] sm:$0xff]
      %v3890 = vld [vmem:[%s3863 + $0xd0] sm:$0xff]
      %v3891 = vld [vmem:[%s3863 + $0xd8] sm:$0xff]
      %v3892 = vld [vmem:[%s3863 + $0xe0] sm:$0xff]
      %v3893 = vld [vmem:[%s3863 + $0xe8] sm:$0xff]
      %v3894 = vld [vmem:[%s3863 + $0xf0] sm:$0xff]
      %v3895 = vld [vmem:[%s3863 + $0xf8] sm:$0xff]
      %v3896 = vld [vmem:[%s3863 + $0x100] sm:$0xff]
      %v3897 = vld [vmem:[%s3863 + $0x108] sm:$0xff]
      %v3898 = vld [vmem:[%s3863 + $0x110] sm:$0xff]
      %v3899 = vld [vmem:[%s3863 + $0x118] sm:$0xff]
      %v3900 = vld [vmem:[%s656 + $0x18] sm:$0x1]
      %v3901 = vld [vmem:[%s656 + $0x38] sm:$0x1]
      %v3902 = vlaneseq
      %v3903 = vshrl.u32 %v3902, 7
      %v3904 = vsub.s32 0, %v3903
      %v3905 = vrot.slane %v3900, %v3904
      %v3906 = vlaneseq
      %v3907 = vshrl.u32 %v3906, 7
      %v3908 = vsub.s32 0, %v3907
      %v3909 = vrot.slane %v3901, %v3908
      %v3911 = vsel %vm1361, %v3860, 0
      %3913 = vmatprep.subr.mxu0 0.0
      %3914 = vmatpush1.msra.mxu0 %v3864
      %3915 = vmatprep.subr.mxu0 0.0
      %3916 = vmatpush1.msra.mxu0 %v3865
      %3917 = vmatprep.subr.mxu0 0.0
      %3918 = vmatpush1.msra.mxu0 %v3866
      %3919 = vmatprep.subr.mxu0 0.0
      %3920 = vmatpush1.msra.mxu0 %v3867
      %3921 = vmatprep.subr.mxu0 0.0
      %3922 = vmatpush1.msra.mxu0 %v3868
      %3923 = vmatprep.subr.mxu0 0.0
      %3924 = vmatpush1.msra.mxu0 %v3869
      %3925 = vmatprep.subr.mxu0 0.0
      %3926 = vmatpush1.msra.mxu0 %v3870
      %3927 = vmatprep.subr.mxu0 0.0
      %3928 = vmatpush1.msra.mxu0 %v3871
      %3929 = vmatprep.subr.mxu0 0.0
      %3930 = vmatpush1.msra.mxu0 %v3872
      %3931 = vmatprep.subr.mxu0 0.0
      %3932 = vmatpush1.msra.mxu0 %v3873
      %3933 = vmatprep.subr.mxu0 0.0
      %3934 = vmatpush1.msra.mxu0 %v3874
      %3935 = vmatprep.subr.mxu0 0.0
      %3936 = vmatpush1.msra.mxu0 %v3875
      %3937 = vmatprep.subr.mxu0 0.0
      %3938 = vmatpush1.msra.mxu0 %v3876
      %3939 = vmatprep.subr.mxu0 0.0
      %3940 = vmatpush1.msra.mxu0 %v3877
      %3941 = vmatprep.subr.mxu0 0.0
      %3942 = vmatpush1.msra.mxu0 %v3878
      %3943 = vmatprep.subr.mxu0 0.0
      %3944 = vmatpush1.msra.mxu0 %v3879
      %3945 = vmatprep.subr.mxu0 0.0
      %3946 = vmatpush1.msra.mxu0 %v3880
      %3947 = vmatprep.subr.mxu0 0.0
      %3948 = vmatpush1.msra.mxu0 %v3881
      %3949 = vmatprep.subr.mxu0 0.0
      %3950 = vmatpush1.msra.mxu0 0.0
      %3951 = vmatprep.subr.mxu0 0.0
      %3952 = vmatpush1.msra.mxu0 0.0
      %3953 = vmatprep.subr.mxu0 0.0
      %3954 = vmatpush1.msra.mxu0 0.0
      %3955 = vmatprep.subr.mxu0 0.0
      %3956 = vmatpush1.msra.mxu0 0.0
      %3957 = vmatprep.subr.mxu0 0.0
      %3958 = vmatpush1.msra.mxu0 0.0
      %3959 = vmatprep.subr.mxu0 0.0
      %3960 = vmatpush1.msra.mxu0 0.0
      %3961 = vmatprep.subr.mxu0 0.0
      %3962 = vmatpush1.msra.mxu0 0.0
      %3963 = vmatprep.subr.mxu0 0.0
      %3964 = vmatpush1.msra.mxu0 0.0
      %3965 = vmatprep.subr.mxu0 0.0
      %3966 = vmatpush1.msra.mxu0 0.0
      %3967 = vmatprep.subr.mxu0 0.0
      %3968 = vmatpush1.msra.mxu0 0.0
      %3969 = vmatprep.subr.mxu0 0.0
      %3970 = vmatpush1.msra.mxu0 0.0
      %3971 = vmatprep.subr.mxu0 0.0
      %3972 = vmatpush1.msra.mxu0 0.0
      %3973 = vmatprep.subr.mxu0 0.0
      %3974 = vmatpush1.msra.mxu0 0.0
      %3975 = vmatprep.subr.mxu0 0.0
      %3976 = vmatpush1.msra.mxu0 0.0
      %3977 = vmatprep.mubr.f32.mxu0 %v3911
      %3978 = vmatmul.mubr.f32.gmra.mrb[0].mxu0 %v3859
      %v3979 = vpop.f32.mrb[0].mxu0
      %v3980 = vadd.f32 %v3905, %v3979
      %v3981 = vpop.f32.mrb[0].mxu0
      %3982 = vdwg.mxu0
      %v3984 = vsel %vm1361, %v3862, 0
      %3986 = vmatprep.subr.mxu0 0.0
      %3987 = vmatpush1.msra.mxu0 %v3882
      %3988 = vmatprep.subr.mxu0 0.0
      %3989 = vmatpush1.msra.mxu0 %v3883
      %3990 = vmatprep.subr.mxu0 0.0
      %3991 = vmatpush1.msra.mxu0 %v3884
      %3992 = vmatprep.subr.mxu0 0.0
      %3993 = vmatpush1.msra.mxu0 %v3885
      %3994 = vmatprep.subr.mxu0 0.0
      %3995 = vmatpush1.msra.mxu0 %v3886
      %3996 = vmatprep.subr.mxu0 0.0
      %3997 = vmatpush1.msra.mxu0 %v3887
      %3998 = vmatprep.subr.mxu0 0.0
      %3999 = vmatpush1.msra.mxu0 %v3888
      %4000 = vmatprep.subr.mxu0 0.0
      %4001 = vmatpush1.msra.mxu0 %v3889
      %4002 = vmatprep.subr.mxu0 0.0
      %4003 = vmatpush1.msra.mxu0 %v3890
      %4004 = vmatprep.subr.mxu0 0.0
      %4005 = vmatpush1.msra.mxu0 %v3891
      %4006 = vmatprep.subr.mxu0 0.0
      %4007 = vmatpush1.msra.mxu0 %v3892
      %4008 = vmatprep.subr.mxu0 0.0
      %4009 = vmatpush1.msra.mxu0 %v3893
      %4010 = vmatprep.subr.mxu0 0.0
      %4011 = vmatpush1.msra.mxu0 %v3894
      %4012 = vmatprep.subr.mxu0 0.0
      %4013 = vmatpush1.msra.mxu0 %v3895
      %4014 = vmatprep.subr.mxu0 0.0
      %4015 = vmatpush1.msra.mxu0 %v3896
      %4016 = vmatprep.subr.mxu0 0.0
      %4017 = vmatpush1.msra.mxu0 %v3897
      %4018 = vmatprep.subr.mxu0 0.0
      %4019 = vmatpush1.msra.mxu0 %v3898
      %4020 = vmatprep.subr.mxu0 0.0
      %4021 = vmatpush1.msra.mxu0 %v3899
      %4022 = vmatprep.subr.mxu0 0.0
      %4023 = vmatpush1.msra.mxu0 0.0
      %4024 = vmatprep.subr.mxu0 0.0
      %4025 = vmatpush1.msra.mxu0 0.0
      %4026 = vmatprep.subr.mxu0 0.0
      %4027 = vmatpush1.msra.mxu0 0.0
      %4028 = vmatprep.subr.mxu0 0.0
      %4029 = vmatpush1.msra.mxu0 0.0
      %4030 = vmatprep.subr.mxu0 0.0
      %4031 = vmatpush1.msra.mxu0 0.0
      %4032 = vmatprep.subr.mxu0 0.0
      %4033 = vmatpush1.msra.mxu0 0.0
      %4034 = vmatprep.subr.mxu0 0.0
      %4035 = vmatpush1.msra.mxu0 0.0
      %4036 = vmatprep.subr.mxu0 0.0
      %4037 = vmatpush1.msra.mxu0 0.0
      %4038 = vmatprep.subr.mxu0 0.0
      %4039 = vmatpush1.msra.mxu0 0.0
      %4040 = vmatprep.subr.mxu0 0.0
      %4041 = vmatpush1.msra.mxu0 0.0
      %4042 = vmatprep.subr.mxu0 0.0
      %4043 = vmatpush1.msra.mxu0 0.0
      %4044 = vmatprep.subr.mxu0 0.0
      %4045 = vmatpush1.msra.mxu0 0.0
      %4046 = vmatprep.subr.mxu0 0.0
      %4047 = vmatpush1.msra.mxu0 0.0
      %4048 = vmatprep.subr.mxu0 0.0
      %4049 = vmatpush1.msra.mxu0 0.0
      %4050 = vmatprep.mubr.f32.mxu0 %v3984
      %4051 = vmatmul.mubr.f32.gmra.mrb[0].mxu0 %v3861
      %v4052 = vpop.f32.mrb[0].mxu0
      %v4053 = vadd.f32 %v3909, %v4052
      %v4054 = vpop.f32.mrb[0].mxu0
      %4055 = vdwg.mxu0
      %v4056 = vld [vmem:[%s656 + $0x19] sm:$0x1]
      %v4057 = vld [vmem:[%s656 + $0x39] sm:$0x1]
      %v4058 = vld [vmem:[%s656 + $0x1a] sm:$0x1]
      %v4059 = vld [vmem:[%s656 + $0x3a] sm:$0x1]
      %v4060 = vsel %vm850, %v3980, 0.0
      %4061 = vadd.xlane.f32.xlu0 %v4060
      %v4062 = vpop.xlane.xlu0 %4061
      %v4063 = vsel %vm850, %v4053, 0.0
      %4064 = vadd.xlane.f32.xlu0 %v4063
      %v4065 = vpop.xlane.xlu0 %4064
      %v4066 = vmul.f32 %v4062, %v857
      %v4067 = vmul.f32 %v4065, %v857
      %v4068 = vsub.f32 %v3980, %v4066
      %v4069 = vsub.f32 %v4053, %v4067
      %v4070 = vmul.f32 %v4068, %v4068
      %v4071 = vmul.f32 %v4069, %v4069
      %v4072 = vsel %vm850, %v4070, 0.0
      %4073 = vadd.xlane.f32.xlu0 %v4072
      %v4074 = vpop.xlane.xlu0 %4073
      %v4075 = vsel %vm850, %v4071, 0.0
      %4076 = vadd.xlane.f32.xlu0 %v4075
      %v4077 = vpop.xlane.xlu0 %4076
      %v4078 = vmul.f32 %v4074, %v857
      %v4079 = vmul.f32 %v4077, %v857
      %v4080 = vadd.f32 %v4078, 1e-05
      %v4081 = vadd.f32 %v4079, 1e-05
      %v4082 = vrsqrt.pop %v4080
      %v4083 = vrsqrt.pop %v4081
      %v4084 = vmul.f32 %v4068, %v4082
      %v4085 = vmul.f32 %v4069, %v4083
      %v4086 = vlaneseq
      %v4087 = vshrl.u32 %v4086, 7
      %v4088 = vsub.s32 0, %v4087
      %v4089 = vrot.slane %v4056, %v4088
      %v4090 = vlaneseq
      %v4091 = vshrl.u32 %v4090, 7
      %v4092 = vsub.s32 0, %v4091
      %v4093 = vrot.slane %v4057, %v4092
      %v4094 = vmul.f32 %v4084, %v4089
      %v4095 = vmul.f32 %v4085, %v4093
      %v4096 = vlaneseq
      %v4097 = vshrl.u32 %v4096, 7
      %v4098 = vsub.s32 0, %v4097
      %v4099 = vrot.slane %v4058, %v4098
      %v4100 = vlaneseq
      %v4101 = vshrl.u32 %v4100, 7
      %v4102 = vsub.s32 0, %v4101
      %v4103 = vrot.slane %v4059, %v4102
      %v4104 = vadd.f32 %v4094, %v4099
      %v4105 = vadd.f32 %v4095, %v4103
      %v4106 = vadd.f32 %v3305, %v4104
      %v4107 = vadd.f32 %v3306, %v4105
      %v4108 = vmax.f32 %v4106, 0.0
      %v4109 = vmax.f32 %v4107, 0.0
      %v4110 = vld [vmem:[%s636] sm:$0xff]
      %v4111 = vld [vmem:[%s636 + $0x8] sm:$0xff]
      %v4112 = vld [vmem:[%s636 + $0x10] sm:$0xff]
      %v4113 = vld [vmem:[%s636 + $0x18] sm:$0xff]
      %v4114 = vld [vmem:[%s636 + $0x20] sm:$0xff]
      %v4115 = vld [vmem:[%s636 + $0x28] sm:$0xff]
      %v4116 = vld [vmem:[%s636 + $0x30] sm:$0xff]
      %v4117 = vld [vmem:[%s636 + $0x38] sm:$0xff]
      %v4118 = vld [vmem:[%s636 + $0x40] sm:$0xff]
      %v4119 = vld [vmem:[%s636 + $0x48] sm:$0xff]
      %v4120 = vld [vmem:[%s636 + $0x50] sm:$0xff]
      %v4121 = vld [vmem:[%s636 + $0x58] sm:$0xff]
      %v4122 = vld [vmem:[%s636 + $0x60] sm:$0xff]
      %v4123 = vld [vmem:[%s636 + $0x68] sm:$0xff]
      %v4124 = vld [vmem:[%s636 + $0x70] sm:$0xff]
      %v4125 = vld [vmem:[%s636 + $0x78] sm:$0xff]
      %v4126 = vld [vmem:[%s636 + $0x80] sm:$0xff]
      %v4127 = vld [vmem:[%s636 + $0x88] sm:$0xff]
      %v4128 = vld [vmem:[%s636 + $0x90] sm:$0xff]
      %v4129 = vld [vmem:[%s636 + $0x98] sm:$0xff]
      %v4130 = vld [vmem:[%s636 + $0xa0] sm:$0xff]
      %v4131 = vld [vmem:[%s636 + $0xa8] sm:$0xff]
      %v4132 = vld [vmem:[%s636 + $0xb0] sm:$0xff]
      %v4133 = vld [vmem:[%s636 + $0xb8] sm:$0xff]
      %v4134 = vld [vmem:[%s665] sm:$0x1]
      %v4135 = vld [vmem:[%s665 + $0x1] sm:$0x1]
      %v4138 = vlaneseq
      %v4139 = vshrl.u32 %v4138, 7
      %v4140 = vsub.s32 0, %v4139
      %v4141 = vrot.slane %v4134, %v4140
      %v4142 = vlaneseq
      %v4143 = vshrl.u32 %v4142, 7
      %v4144 = vsub.s32 0, %v4143
      %v4145 = vrot.slane %v4135, %v4144
      %v4149 = vsel %vm850, %v4108, 0
      %4151 = vmatprep.subr.mxu0 0.0
      %4152 = vmatpush1.msra.mxu0 %v4110
      %4153 = vmatprep.subr.mxu0 0.0
      %4154 = vmatpush1.msra.mxu0 %v4111
      %4155 = vmatprep.subr.mxu0 0.0
      %4156 = vmatpush1.msra.mxu0 %v4112
      %4157 = vmatprep.subr.mxu0 0.0
      %4158 = vmatpush1.msra.mxu0 %v4113
      %4159 = vmatprep.subr.mxu0 0.0
      %4160 = vmatpush1.msra.mxu0 %v4114
      %4161 = vmatprep.subr.mxu0 0.0
      %4162 = vmatpush1.msra.mxu0 %v4115
      %4163 = vmatprep.subr.mxu0 0.0
      %4164 = vmatpush1.msra.mxu0 %v4116
      %4165 = vmatprep.subr.mxu0 0.0
      %4166 = vmatpush1.msra.mxu0 %v4117
      %4167 = vmatprep.subr.mxu0 0.0
      %4168 = vmatpush1.msra.mxu0 %v4118
      %4169 = vmatprep.subr.mxu0 0.0
      %4170 = vmatpush1.msra.mxu0 %v4119
      %4171 = vmatprep.subr.mxu0 0.0
      %4172 = vmatpush1.msra.mxu0 %v4120
      %4173 = vmatprep.subr.mxu0 0.0
      %4174 = vmatpush1.msra.mxu0 %v4121
      %4175 = vmatprep.subr.mxu0 0.0
      %4176 = vmatpush1.msra.mxu0 0.0
      %4177 = vmatprep.subr.mxu0 0.0
      %4178 = vmatpush1.msra.mxu0 0.0
      %4179 = vmatprep.subr.mxu0 0.0
      %4180 = vmatpush1.msra.mxu0 0.0
      %4181 = vmatprep.subr.mxu0 0.0
      %4182 = vmatpush1.msra.mxu0 0.0
      %4183 = vmatprep.subr.mxu0 0.0
      %4184 = vmatpush1.msra.mxu0 0.0
      %4185 = vmatprep.subr.mxu0 0.0
      %4186 = vmatpush1.msra.mxu0 0.0
      %4187 = vmatprep.subr.mxu0 0.0
      %4188 = vmatpush1.msra.mxu0 0.0
      %4189 = vmatprep.subr.mxu0 0.0
      %4190 = vmatpush1.msra.mxu0 0.0
      %4191 = vmatprep.subr.mxu0 0.0
      %4192 = vmatpush1.msra.mxu0 0.0
      %4193 = vmatprep.subr.mxu0 0.0
      %4194 = vmatpush1.msra.mxu0 0.0
      %4195 = vmatprep.subr.mxu0 0.0
      %4196 = vmatpush1.msra.mxu0 0.0
      %4197 = vmatprep.subr.mxu0 0.0
      %4198 = vmatpush1.msra.mxu0 0.0
      %4199 = vmatprep.subr.mxu0 0.0
      %4200 = vmatpush1.msra.mxu0 0.0
      %4201 = vmatprep.subr.mxu0 0.0
      %4202 = vmatpush1.msra.mxu0 0.0
      %4203 = vmatprep.subr.mxu0 0.0
      %4204 = vmatpush1.msra.mxu0 0.0
      %4205 = vmatprep.subr.mxu0 0.0
      %4206 = vmatpush1.msra.mxu0 0.0
      %4207 = vmatprep.subr.mxu0 0.0
      %4208 = vmatpush1.msra.mxu0 0.0
      %4209 = vmatprep.subr.mxu0 0.0
      %4210 = vmatpush1.msra.mxu0 0.0
      %4211 = vmatprep.subr.mxu0 0.0
      %4212 = vmatpush1.msra.mxu0 0.0
      %4213 = vmatprep.subr.mxu0 0.0
      %4214 = vmatpush1.msra.mxu0 0.0
      %4215 = vmatprep.mubr.f32.mxu0 0.0
      %4216 = vmatmul.mubr.f32.gmra.mrb[0].mxu0 %v4149
      %v4217 = vpop.f32.mrb[0].mxu0
      %v4218 = vadd.f32 %v4141, %v4217
      %v4219 = vpop.f32.mrb[0].mxu0
      %4220 = vdwg.mxu0
      %v4222 = vsel %vm850, %v4109, 0
      %4224 = vmatprep.subr.mxu0 0.0
      %4225 = vmatpush1.msra.mxu0 %v4122
      %4226 = vmatprep.subr.mxu0 0.0
      %4227 = vmatpush1.msra.mxu0 %v4123
      %4228 = vmatprep.subr.mxu0 0.0
      %4229 = vmatpush1.msra.mxu0 %v4124
      %4230 = vmatprep.subr.mxu0 0.0
      %4231 = vmatpush1.msra.mxu0 %v4125
      %4232 = vmatprep.subr.mxu0 0.0
      %4233 = vmatpush1.msra.mxu0 %v4126
      %4234 = vmatprep.subr.mxu0 0.0
      %4235 = vmatpush1.msra.mxu0 %v4127
      %4236 = vmatprep.subr.mxu0 0.0
      %4237 = vmatpush1.msra.mxu0 %v4128
      %4238 = vmatprep.subr.mxu0 0.0
      %4239 = vmatpush1.msra.mxu0 %v4129
      %4240 = vmatprep.subr.mxu0 0.0
      %4241 = vmatpush1.msra.mxu0 %v4130
      %4242 = vmatprep.subr.mxu0 0.0
      %4243 = vmatpush1.msra.mxu0 %v4131
      %4244 = vmatprep.subr.mxu0 0.0
      %4245 = vmatpush1.msra.mxu0 %v4132
      %4246 = vmatprep.subr.mxu0 0.0
      %4247 = vmatpush1.msra.mxu0 %v4133
      %4248 = vmatprep.subr.mxu0 0.0
      %4249 = vmatpush1.msra.mxu0 0.0
      %4250 = vmatprep.subr.mxu0 0.0
      %4251 = vmatpush1.msra.mxu0 0.0
      %4252 = vmatprep.subr.mxu0 0.0
      %4253 = vmatpush1.msra.mxu0 0.0
      %4254 = vmatprep.subr.mxu0 0.0
      %4255 = vmatpush1.msra.mxu0 0.0
      %4256 = vmatprep.subr.mxu0 0.0
      %4257 = vmatpush1.msra.mxu0 0.0
      %4258 = vmatprep.subr.mxu0 0.0
      %4259 = vmatpush1.msra.mxu0 0.0
      %4260 = vmatprep.subr.mxu0 0.0
      %4261 = vmatpush1.msra.mxu0 0.0
      %4262 = vmatprep.subr.mxu0 0.0
      %4263 = vmatpush1.msra.mxu0 0.0
      %4264 = vmatprep.subr.mxu0 0.0
      %4265 = vmatpush1.msra.mxu0 0.0
      %4266 = vmatprep.subr.mxu0 0.0
      %4267 = vmatpush1.msra.mxu0 0.0
      %4268 = vmatprep.subr.mxu0 0.0
      %4269 = vmatpush1.msra.mxu0 0.0
      %4270 = vmatprep.subr.mxu0 0.0
      %4271 = vmatpush1.msra.mxu0 0.0
      %4272 = vmatprep.subr.mxu0 0.0
      %4273 = vmatpush1.msra.mxu0 0.0
      %4274 = vmatprep.subr.mxu0 0.0
      %4275 = vmatpush1.msra.mxu0 0.0
      %4276 = vmatprep.subr.mxu0 0.0
      %4277 = vmatpush1.msra.mxu0 0.0
      %4278 = vmatprep.subr.mxu0 0.0
      %4279 = vmatpush1.msra.mxu0 0.0
      %4280 = vmatprep.subr.mxu0 0.0
      %4281 = vmatpush1.msra.mxu0 0.0
      %4282 = vmatprep.subr.mxu0 0.0
      %4283 = vmatpush1.msra.mxu0 0.0
      %4284 = vmatprep.subr.mxu0 0.0
      %4285 = vmatpush1.msra.mxu0 0.0
      %4286 = vmatprep.subr.mxu0 0.0
      %4287 = vmatpush1.msra.mxu0 0.0
      %4288 = vmatprep.mubr.f32.mxu0 0.0
      %4289 = vmatmul.mubr.f32.gmra.mrb[0].mxu0 %v4222
      %v4290 = vpop.f32.mrb[0].mxu0
      %v4291 = vadd.f32 %v4145, %v4290
      %v4292 = vpop.f32.mrb[0].mxu0
      %4293 = vdwg.mxu0
      %v4294 = vmax.f32 %v4218, 0.0
      %v4295 = vmax.f32 %v4291, 0.0
      %v4296 = vld [vmem:[%s641] sm:$0xff]
      %v4297 = vld [vmem:[%s641 + $0x8] sm:$0xff]
      %v4298 = vld [vmem:[%s641 + $0x10] sm:$0xff]
      %v4299 = vld [vmem:[%s641 + $0x18] sm:$0xff]
      %v4300 = vld [vmem:[%s641 + $0x20] sm:$0xff]
      %v4301 = vld [vmem:[%s641 + $0x28] sm:$0xff]
      %v4302 = vld [vmem:[%s641 + $0x30] sm:$0xff]
      %v4303 = vld [vmem:[%s641 + $0x38] sm:$0xff]
      %v4304 = vld [vmem:[%s641 + $0x40] sm:$0xff]
      %v4305 = vld [vmem:[%s641 + $0x48] sm:$0xff]
      %v4306 = vld [vmem:[%s641 + $0x50] sm:$0xff]
      %v4307 = vld [vmem:[%s641 + $0x58] sm:$0xff]
      %v4308 = vld [vmem:[%s656 + $0x1b] sm:$0x1]
      %v4309 = vld [vmem:[%s656 + $0x3b] sm:$0x1]
      %v4310 = vlaneseq
      %v4311 = vshrl.u32 %v4310, 7
      %v4312 = vsub.s32 0, %v4311
      %v4313 = vrot.slane %v4308, %v4312
      %v4314 = vlaneseq
      %v4315 = vshrl.u32 %v4314, 7
      %v4316 = vsub.s32 0, %v4315
      %v4317 = vrot.slane %v4309, %v4316
      %vm4318 = vcmask 392192
      %v4320 = vsel %vm4318, %v4294, 0
      %4322 = vmatprep.subr.mxu0 0.0
      %4323 = vmatpush1.msra.mxu0 %v4296
      %4324 = vmatprep.subr.mxu0 0.0
      %4325 = vmatpush1.msra.mxu0 %v4297
      %4326 = vmatprep.subr.mxu0 0.0
      %4327 = vmatpush1.msra.mxu0 %v4298
      %4328 = vmatprep.subr.mxu0 0.0
      %4329 = vmatpush1.msra.mxu0 %v4299
      %4330 = vmatprep.subr.mxu0 0.0
      %4331 = vmatpush1.msra.mxu0 %v4300
      %4332 = vmatprep.subr.mxu0 0.0
      %4333 = vmatpush1.msra.mxu0 %v4301
      %4334 = vmatprep.subr.mxu0 0.0
      %4335 = vmatpush1.msra.mxu0 0.0
      %4336 = vmatprep.subr.mxu0 0.0
      %4337 = vmatpush1.msra.mxu0 0.0
      %4338 = vmatprep.subr.mxu0 0.0
      %4339 = vmatpush1.msra.mxu0 0.0
      %4340 = vmatprep.subr.mxu0 0.0
      %4341 = vmatpush1.msra.mxu0 0.0
      %4342 = vmatprep.subr.mxu0 0.0
      %4343 = vmatpush1.msra.mxu0 0.0
      %4344 = vmatprep.subr.mxu0 0.0
      %4345 = vmatpush1.msra.mxu0 0.0
      %4346 = vmatprep.subr.mxu0 0.0
      %4347 = vmatpush1.msra.mxu0 0.0
      %4348 = vmatprep.subr.mxu0 0.0
      %4349 = vmatpush1.msra.mxu0 0.0
      %4350 = vmatprep.subr.mxu0 0.0
      %4351 = vmatpush1.msra.mxu0 0.0
      %4352 = vmatprep.subr.mxu0 0.0
      %4353 = vmatpush1.msra.mxu0 0.0
      %4354 = vmatprep.subr.mxu0 0.0
      %4355 = vmatpush1.msra.mxu0 0.0
      %4356 = vmatprep.subr.mxu0 0.0
      %4357 = vmatpush1.msra.mxu0 0.0
      %4358 = vmatprep.subr.mxu0 0.0
      %4359 = vmatpush1.msra.mxu0 0.0
      %4360 = vmatprep.subr.mxu0 0.0
      %4361 = vmatpush1.msra.mxu0 0.0
      %4362 = vmatprep.subr.mxu0 0.0
      %4363 = vmatpush1.msra.mxu0 0.0
      %4364 = vmatprep.subr.mxu0 0.0
      %4365 = vmatpush1.msra.mxu0 0.0
      %4366 = vmatprep.subr.mxu0 0.0
      %4367 = vmatpush1.msra.mxu0 0.0
      %4368 = vmatprep.subr.mxu0 0.0
      %4369 = vmatpush1.msra.mxu0 0.0
      %4370 = vmatprep.subr.mxu0 0.0
      %4371 = vmatpush1.msra.mxu0 0.0
      %4372 = vmatprep.subr.mxu0 0.0
      %4373 = vmatpush1.msra.mxu0 0.0
      %4374 = vmatprep.subr.mxu0 0.0
      %4375 = vmatpush1.msra.mxu0 0.0
      %4376 = vmatprep.subr.mxu0 0.0
      %4377 = vmatpush1.msra.mxu0 0.0
      %4378 = vmatprep.subr.mxu0 0.0
      %4379 = vmatpush1.msra.mxu0 0.0
      %4380 = vmatprep.subr.mxu0 0.0
      %4381 = vmatpush1.msra.mxu0 0.0
      %4382 = vmatprep.subr.mxu0 0.0
      %4383 = vmatpush1.msra.mxu0 0.0
      %4384 = vmatprep.subr.mxu0 0.0
      %4385 = vmatpush1.msra.mxu0 0.0
      %4386 = vmatprep.mubr.f32.mxu0 0.0
      %4387 = vmatmul.mubr.f32.gmra.mrb[0].mxu0 %v4320
      %v4388 = vpop.f32.mrb[0].mxu0
      %v4389 = vadd.f32 %v4313, %v4388
      %v4390 = vpop.f32.mrb[0].mxu0
      %4391 = vdwg.mxu0
      %v4393 = vsel %vm4318, %v4295, 0
      %4395 = vmatprep.subr.mxu0 0.0
      %4396 = vmatpush1.msra.mxu0 %v4302
      %4397 = vmatprep.subr.mxu0 0.0
      %4398 = vmatpush1.msra.mxu0 %v4303
      %4399 = vmatprep.subr.mxu0 0.0
      %4400 = vmatpush1.msra.mxu0 %v4304
      %4401 = vmatprep.subr.mxu0 0.0
      %4402 = vmatpush1.msra.mxu0 %v4305
      %4403 = vmatprep.subr.mxu0 0.0
      %4404 = vmatpush1.msra.mxu0 %v4306
      %4405 = vmatprep.subr.mxu0 0.0
      %4406 = vmatpush1.msra.mxu0 %v4307
      %4407 = vmatprep.subr.mxu0 0.0
      %4408 = vmatpush1.msra.mxu0 0.0
      %4409 = vmatprep.subr.mxu0 0.0
      %4410 = vmatpush1.msra.mxu0 0.0
      %4411 = vmatprep.subr.mxu0 0.0
      %4412 = vmatpush1.msra.mxu0 0.0
      %4413 = vmatprep.subr.mxu0 0.0
      %4414 = vmatpush1.msra.mxu0 0.0
      %4415 = vmatprep.subr.mxu0 0.0
      %4416 = vmatpush1.msra.mxu0 0.0
      %4417 = vmatprep.subr.mxu0 0.0
      %4418 = vmatpush1.msra.mxu0 0.0
      %4419 = vmatprep.subr.mxu0 0.0
      %4420 = vmatpush1.msra.mxu0 0.0
      %4421 = vmatprep.subr.mxu0 0.0
      %4422 = vmatpush1.msra.mxu0 0.0
      %4423 = vmatprep.subr.mxu0 0.0
      %4424 = vmatpush1.msra.mxu0 0.0
      %4425 = vmatprep.subr.mxu0 0.0
      %4426 = vmatpush1.msra.mxu0 0.0
      %4427 = vmatprep.subr.mxu0 0.0
      %4428 = vmatpush1.msra.mxu0 0.0
      %4429 = vmatprep.subr.mxu0 0.0
      %4430 = vmatpush1.msra.mxu0 0.0
      %4431 = vmatprep.subr.mxu0 0.0
      %4432 = vmatpush1.msra.mxu0 0.0
      %4433 = vmatprep.subr.mxu0 0.0
      %4434 = vmatpush1.msra.mxu0 0.0
      %4435 = vmatprep.subr.mxu0 0.0
      %4436 = vmatpush1.msra.mxu0 0.0
      %4437 = vmatprep.subr.mxu0 0.0
      %4438 = vmatpush1.msra.mxu0 0.0
      %4439 = vmatprep.subr.mxu0 0.0
      %4440 = vmatpush1.msra.mxu0 0.0
      %4441 = vmatprep.subr.mxu0 0.0
      %4442 = vmatpush1.msra.mxu0 0.0
      %4443 = vmatprep.subr.mxu0 0.0
      %4444 = vmatpush1.msra.mxu0 0.0
      %4445 = vmatprep.subr.mxu0 0.0
      %4446 = vmatpush1.msra.mxu0 0.0
      %4447 = vmatprep.subr.mxu0 0.0
      %4448 = vmatpush1.msra.mxu0 0.0
      %4449 = vmatprep.subr.mxu0 0.0
      %4450 = vmatpush1.msra.mxu0 0.0
      %4451 = vmatprep.subr.mxu0 0.0
      %4452 = vmatpush1.msra.mxu0 0.0
      %4453 = vmatprep.subr.mxu0 0.0
      %4454 = vmatpush1.msra.mxu0 0.0
      %4455 = vmatprep.subr.mxu0 0.0
      %4456 = vmatpush1.msra.mxu0 0.0
      %4457 = vmatprep.subr.mxu0 0.0
      %4458 = vmatpush1.msra.mxu0 0.0
      %4459 = vmatprep.mubr.f32.mxu0 0.0
      %4460 = vmatmul.mubr.f32.gmra.mrb[0].mxu0 %v4393
      %v4461 = vpop.f32.mrb[0].mxu0
      %v4462 = vadd.f32 %v4317, %v4461
      %v4463 = vpop.f32.mrb[0].mxu0
      %4464 = vdwg.mxu0
      %v4465 = vadd.f32 %v4108, %v4389
      %v4466 = vadd.f32 %v4109, %v4462
      %v4467 = vmax.f32 %v4465, 0.0
      %v4468 = vmax.f32 %v4466, 0.0
      %v4469 = vld [vmem:[%s646] sm:$0xff]
      %v4470 = vld [vmem:[%s646 + $0x8] sm:$0xff]
      %v4471 = vld [vmem:[%s646 + $0x10] sm:$0xff]
      %v4472 = vld [vmem:[%s646 + $0x18] sm:$0xff]
      %v4473 = vld [vmem:[%s646 + $0x20] sm:$0xff]
      %v4474 = vld [vmem:[%s646 + $0x28] sm:$0xff]
      %v4475 = vld [vmem:[%s646 + $0x30] sm:$0xff]
      %v4476 = vld [vmem:[%s646 + $0x38] sm:$0xff]
      %v4477 = vld [vmem:[%s646 + $0x40] sm:$0xff]
      %v4478 = vld [vmem:[%s646 + $0x48] sm:$0xff]
      %v4479 = vld [vmem:[%s646 + $0x50] sm:$0xff]
      %v4480 = vld [vmem:[%s646 + $0x58] sm:$0xff]
      %v4481 = vld [vmem:[%s646 + $0x60] sm:$0xff]
      %v4482 = vld [vmem:[%s646 + $0x68] sm:$0xff]
      %v4483 = vld [vmem:[%s646 + $0x70] sm:$0xff]
      %v4484 = vld [vmem:[%s646 + $0x78] sm:$0xff]
      %v4485 = vld [vmem:[%s646 + $0x80] sm:$0xff]
      %v4486 = vld [vmem:[%s646 + $0x88] sm:$0xff]
      %v4487 = vld [vmem:[%s646 + $0x90] sm:$0xff]
      %v4488 = vld [vmem:[%s646 + $0x98] sm:$0xff]
      %v4489 = vld [vmem:[%s646 + $0xa0] sm:$0xff]
      %v4490 = vld [vmem:[%s646 + $0xa8] sm:$0xff]
      %v4491 = vld [vmem:[%s646 + $0xb0] sm:$0xff]
      %v4492 = vld [vmem:[%s646 + $0xb8] sm:$0xff]
      %v4493 = vld [vmem:[%s656 + $0x1c] sm:$0x1]
      %v4494 = vld [vmem:[%s656 + $0x3c] sm:$0x1]
      %v4495 = vlaneseq
      %v4496 = vshrl.u32 %v4495, 7
      %v4497 = vsub.s32 0, %v4496
      %v4498 = vrot.slane %v4493, %v4497
      %v4499 = vlaneseq
      %v4500 = vshrl.u32 %v4499, 7
      %v4501 = vsub.s32 0, %v4500
      %v4502 = vrot.slane %v4494, %v4501
      %v4504 = vsel %vm850, %v4467, 0
      %4506 = vmatprep.subr.mxu0 0.0
      %4507 = vmatpush1.msra.mxu0 %v4469
      %4508 = vmatprep.subr.mxu0 0.0
      %4509 = vmatpush1.msra.mxu0 %v4470
      %4510 = vmatprep.subr.mxu0 0.0
      %4511 = vmatpush1.msra.mxu0 %v4471
      %4512 = vmatprep.subr.mxu0 0.0
      %4513 = vmatpush1.msra.mxu0 %v4472
      %4514 = vmatprep.subr.mxu0 0.0
      %4515 = vmatpush1.msra.mxu0 %v4473
      %4516 = vmatprep.subr.mxu0 0.0
      %4517 = vmatpush1.msra.mxu0 %v4474
      %4518 = vmatprep.subr.mxu0 0.0
      %4519 = vmatpush1.msra.mxu0 %v4475
      %4520 = vmatprep.subr.mxu0 0.0
      %4521 = vmatpush1.msra.mxu0 %v4476
      %4522 = vmatprep.subr.mxu0 0.0
      %4523 = vmatpush1.msra.mxu0 %v4477
      %4524 = vmatprep.subr.mxu0 0.0
      %4525 = vmatpush1.msra.mxu0 %v4478
      %4526 = vmatprep.subr.mxu0 0.0
      %4527 = vmatpush1.msra.mxu0 %v4479
      %4528 = vmatprep.subr.mxu0 0.0
      %4529 = vmatpush1.msra.mxu0 %v4480
      %4530 = vmatprep.subr.mxu0 0.0
      %4531 = vmatpush1.msra.mxu0 0.0
      %4532 = vmatprep.subr.mxu0 0.0
      %4533 = vmatpush1.msra.mxu0 0.0
      %4534 = vmatprep.subr.mxu0 0.0
      %4535 = vmatpush1.msra.mxu0 0.0
      %4536 = vmatprep.subr.mxu0 0.0
      %4537 = vmatpush1.msra.mxu0 0.0
      %4538 = vmatprep.subr.mxu0 0.0
      %4539 = vmatpush1.msra.mxu0 0.0
      %4540 = vmatprep.subr.mxu0 0.0
      %4541 = vmatpush1.msra.mxu0 0.0
      %4542 = vmatprep.subr.mxu0 0.0
      %4543 = vmatpush1.msra.mxu0 0.0
      %4544 = vmatprep.subr.mxu0 0.0
      %4545 = vmatpush1.msra.mxu0 0.0
      %4546 = vmatprep.subr.mxu0 0.0
      %4547 = vmatpush1.msra.mxu0 0.0
      %4548 = vmatprep.subr.mxu0 0.0
      %4549 = vmatpush1.msra.mxu0 0.0
      %4550 = vmatprep.subr.mxu0 0.0
      %4551 = vmatpush1.msra.mxu0 0.0
      %4552 = vmatprep.subr.mxu0 0.0
      %4553 = vmatpush1.msra.mxu0 0.0
      %4554 = vmatprep.subr.mxu0 0.0
      %4555 = vmatpush1.msra.mxu0 0.0
      %4556 = vmatprep.subr.mxu0 0.0
      %4557 = vmatpush1.msra.mxu0 0.0
      %4558 = vmatprep.subr.mxu0 0.0
      %4559 = vmatpush1.msra.mxu0 0.0
      %4560 = vmatprep.subr.mxu0 0.0
      %4561 = vmatpush1.msra.mxu0 0.0
      %4562 = vmatprep.subr.mxu0 0.0
      %4563 = vmatpush1.msra.mxu0 0.0
      %4564 = vmatprep.subr.mxu0 0.0
      %4565 = vmatpush1.msra.mxu0 0.0
      %4566 = vmatprep.subr.mxu0 0.0
      %4567 = vmatpush1.msra.mxu0 0.0
      %4568 = vmatprep.subr.mxu0 0.0
      %4569 = vmatpush1.msra.mxu0 0.0
      %4570 = vmatprep.mubr.f32.mxu0 0.0
      %4571 = vmatmul.mubr.f32.gmra.mrb[0].mxu0 %v4504
      %v4572 = vpop.f32.mrb[0].mxu0
      %v4573 = vadd.f32 %v4498, %v4572
      %v4574 = vpop.f32.mrb[0].mxu0
      %4575 = vdwg.mxu0
      %v4577 = vsel %vm850, %v4468, 0
      %4579 = vmatprep.subr.mxu0 0.0
      %4580 = vmatpush1.msra.mxu0 %v4481
      %4581 = vmatprep.subr.mxu0 0.0
      %4582 = vmatpush1.msra.mxu0 %v4482
      %4583 = vmatprep.subr.mxu0 0.0
      %4584 = vmatpush1.msra.mxu0 %v4483
      %4585 = vmatprep.subr.mxu0 0.0
      %4586 = vmatpush1.msra.mxu0 %v4484
      %4587 = vmatprep.subr.mxu0 0.0
      %4588 = vmatpush1.msra.mxu0 %v4485
      %4589 = vmatprep.subr.mxu0 0.0
      %4590 = vmatpush1.msra.mxu0 %v4486
      %4591 = vmatprep.subr.mxu0 0.0
      %4592 = vmatpush1.msra.mxu0 %v4487
      %4593 = vmatprep.subr.mxu0 0.0
      %4594 = vmatpush1.msra.mxu0 %v4488
      %4595 = vmatprep.subr.mxu0 0.0
      %4596 = vmatpush1.msra.mxu0 %v4489
      %4597 = vmatprep.subr.mxu0 0.0
      %4598 = vmatpush1.msra.mxu0 %v4490
      %4599 = vmatprep.subr.mxu0 0.0
      %4600 = vmatpush1.msra.mxu0 %v4491
      %4601 = vmatprep.subr.mxu0 0.0
      %4602 = vmatpush1.msra.mxu0 %v4492
      %4603 = vmatprep.subr.mxu0 0.0
      %4604 = vmatpush1.msra.mxu0 0.0
      %4605 = vmatprep.subr.mxu0 0.0
      %4606 = vmatpush1.msra.mxu0 0.0
      %4607 = vmatprep.subr.mxu0 0.0
      %4608 = vmatpush1.msra.mxu0 0.0
      %4609 = vmatprep.subr.mxu0 0.0
      %4610 = vmatpush1.msra.mxu0 0.0
      %4611 = vmatprep.subr.mxu0 0.0
      %4612 = vmatpush1.msra.mxu0 0.0
      %4613 = vmatprep.subr.mxu0 0.0
      %4614 = vmatpush1.msra.mxu0 0.0
      %4615 = vmatprep.subr.mxu0 0.0
      %4616 = vmatpush1.msra.mxu0 0.0
      %4617 = vmatprep.subr.mxu0 0.0
      %4618 = vmatpush1.msra.mxu0 0.0
      %4619 = vmatprep.subr.mxu0 0.0
      %4620 = vmatpush1.msra.mxu0 0.0
      %4621 = vmatprep.subr.mxu0 0.0
      %4622 = vmatpush1.msra.mxu0 0.0
      %4623 = vmatprep.subr.mxu0 0.0
      %4624 = vmatpush1.msra.mxu0 0.0
      %4625 = vmatprep.subr.mxu0 0.0
      %4626 = vmatpush1.msra.mxu0 0.0
      %4627 = vmatprep.subr.mxu0 0.0
      %4628 = vmatpush1.msra.mxu0 0.0
      %4629 = vmatprep.subr.mxu0 0.0
      %4630 = vmatpush1.msra.mxu0 0.0
      %4631 = vmatprep.subr.mxu0 0.0
      %4632 = vmatpush1.msra.mxu0 0.0
      %4633 = vmatprep.subr.mxu0 0.0
      %4634 = vmatpush1.msra.mxu0 0.0
      %4635 = vmatprep.subr.mxu0 0.0
      %4636 = vmatpush1.msra.mxu0 0.0
      %4637 = vmatprep.subr.mxu0 0.0
      %4638 = vmatpush1.msra.mxu0 0.0
      %4639 = vmatprep.subr.mxu0 0.0
      %4640 = vmatpush1.msra.mxu0 0.0
      %4641 = vmatprep.subr.mxu0 0.0
      %4642 = vmatpush1.msra.mxu0 0.0
      %4643 = vmatprep.mubr.f32.mxu0 0.0
      %4644 = vmatmul.mubr.f32.gmra.mrb[0].mxu0 %v4577
      %v4645 = vpop.f32.mrb[0].mxu0
      %v4646 = vadd.f32 %v4502, %v4645
      %v4647 = vpop.f32.mrb[0].mxu0
      %4648 = vdwg.mxu0
      %v4649 = vmax.f32 %v4573, 0.0
      %v4650 = vmax.f32 %v4646, 0.0
      %v4651 = vld [vmem:[%s651] sm:$0xff]
      %v4652 = vld [vmem:[%s651 + $0x8] sm:$0xff]
      %v4653 = vld [vmem:[%s651 + $0x10] sm:$0xff]
      %v4654 = vld [vmem:[%s651 + $0x18] sm:$0xff]
      %v4655 = vld [vmem:[%s651 + $0x20] sm:$0xff]
      %v4656 = vld [vmem:[%s651 + $0x28] sm:$0xff]
      %v4657 = vld [vmem:[%s651 + $0x30] sm:$0xff]
      %v4658 = vld [vmem:[%s651 + $0x38] sm:$0xff]
      %v4659 = vld [vmem:[%s651 + $0x40] sm:$0xff]
      %v4660 = vld [vmem:[%s651 + $0x48] sm:$0xff]
      %v4661 = vld [vmem:[%s651 + $0x50] sm:$0xff]
      %v4662 = vld [vmem:[%s651 + $0x58] sm:$0xff]
      %v4663 = vld [vmem:[%s651 + $0x60] sm:$0xff]
      %v4664 = vld [vmem:[%s651 + $0x68] sm:$0xff]
      %v4665 = vld [vmem:[%s651 + $0x70] sm:$0xff]
      %v4666 = vld [vmem:[%s651 + $0x78] sm:$0xff]
      %v4667 = vld [vmem:[%s651 + $0x80] sm:$0xff]
      %v4668 = vld [vmem:[%s651 + $0x88] sm:$0xff]
      %v4669 = vld [vmem:[%s651 + $0x90] sm:$0xff]
      %v4670 = vld [vmem:[%s651 + $0x98] sm:$0xff]
      %v4671 = vld [vmem:[%s651 + $0xa0] sm:$0xff]
      %v4672 = vld [vmem:[%s651 + $0xa8] sm:$0xff]
      %v4673 = vld [vmem:[%s651 + $0xb0] sm:$0xff]
      %v4674 = vld [vmem:[%s651 + $0xb8] sm:$0xff]
      %v4675 = vld [vmem:[%s669] sm:$0x1]
      %v4676 = vld [vmem:[%s669 + $0x1] sm:$0x1]
      %v4679 = vlaneseq
      %v4680 = vshrl.u32 %v4679, 7
      %v4681 = vsub.s32 0, %v4680
      %v4682 = vrot.slane %v4675, %v4681
      %v4683 = vlaneseq
      %v4684 = vshrl.u32 %v4683, 7
      %v4685 = vsub.s32 0, %v4684
      %v4686 = vrot.slane %v4676, %v4685
      %v4690 = vsel %vm850, %v4649, 0
      %4692 = vmatprep.subr.mxu0 0.0
      %4693 = vmatpush1.msra.mxu0 %v4651
      %4694 = vmatprep.subr.mxu0 0.0
      %4695 = vmatpush1.msra.mxu0 %v4652
      %4696 = vmatprep.subr.mxu0 0.0
      %4697 = vmatpush1.msra.mxu0 %v4653
      %4698 = vmatprep.subr.mxu0 0.0
      %4699 = vmatpush1.msra.mxu0 %v4654
      %4700 = vmatprep.subr.mxu0 0.0
      %4701 = vmatpush1.msra.mxu0 %v4655
      %4702 = vmatprep.subr.mxu0 0.0
      %4703 = vmatpush1.msra.mxu0 %v4656
      %4704 = vmatprep.subr.mxu0 0.0
      %4705 = vmatpush1.msra.mxu0 %v4657
      %4706 = vmatprep.subr.mxu0 0.0
      %4707 = vmatpush1.msra.mxu0 %v4658
      %4708 = vmatprep.subr.mxu0 0.0
      %4709 = vmatpush1.msra.mxu0 %v4659
      %4710 = vmatprep.subr.mxu0 0.0
      %4711 = vmatpush1.msra.mxu0 %v4660
      %4712 = vmatprep.subr.mxu0 0.0
      %4713 = vmatpush1.msra.mxu0 %v4661
      %4714 = vmatprep.subr.mxu0 0.0
      %4715 = vmatpush1.msra.mxu0 %v4662
      %4716 = vmatprep.subr.mxu0 0.0
      %4717 = vmatpush1.msra.mxu0 0.0
      %4718 = vmatprep.subr.mxu0 0.0
      %4719 = vmatpush1.msra.mxu0 0.0
      %4720 = vmatprep.subr.mxu0 0.0
      %4721 = vmatpush1.msra.mxu0 0.0
      %4722 = vmatprep.subr.mxu0 0.0
      %4723 = vmatpush1.msra.mxu0 0.0
      %4724 = vmatprep.subr.mxu0 0.0
      %4725 = vmatpush1.msra.mxu0 0.0
      %4726 = vmatprep.subr.mxu0 0.0
      %4727 = vmatpush1.msra.mxu0 0.0
      %4728 = vmatprep.subr.mxu0 0.0
      %4729 = vmatpush1.msra.mxu0 0.0
      %4730 = vmatprep.subr.mxu0 0.0
      %4731 = vmatpush1.msra.mxu0 0.0
      %4732 = vmatprep.subr.mxu0 0.0
      %4733 = vmatpush1.msra.mxu0 0.0
      %4734 = vmatprep.subr.mxu0 0.0
      %4735 = vmatpush1.msra.mxu0 0.0
      %4736 = vmatprep.subr.mxu0 0.0
      %4737 = vmatpush1.msra.mxu0 0.0
      %4738 = vmatprep.subr.mxu0 0.0
      %4739 = vmatpush1.msra.mxu0 0.0
      %4740 = vmatprep.subr.mxu0 0.0
      %4741 = vmatpush1.msra.mxu0 0.0
      %4742 = vmatprep.subr.mxu0 0.0
      %4743 = vmatpush1.msra.mxu0 0.0
      %4744 = vmatprep.subr.mxu0 0.0
      %4745 = vmatpush1.msra.mxu0 0.0
      %4746 = vmatprep.subr.mxu0 0.0
      %4747 = vmatpush1.msra.mxu0 0.0
      %4748 = vmatprep.subr.mxu0 0.0
      %4749 = vmatpush1.msra.mxu0 0.0
      %4750 = vmatprep.subr.mxu0 0.0
      %4751 = vmatpush1.msra.mxu0 0.0
      %4752 = vmatprep.subr.mxu0 0.0
      %4753 = vmatpush1.msra.mxu0 0.0
      %4754 = vmatprep.subr.mxu0 0.0
      %4755 = vmatpush1.msra.mxu0 0.0
      %4756 = vmatprep.mubr.f32.mxu0 0.0
      %4757 = vmatmul.mubr.f32.gmra.mrb[0].mxu0 %v4690
      %v4758 = vpop.f32.mrb[0].mxu0
      %v4759 = vadd.f32 %v4682, %v4758
      %v4760 = vpop.f32.mrb[0].mxu0
      %4761 = vdwg.mxu0
      %v4763 = vsel %vm850, %v4650, 0
      %4765 = vmatprep.subr.mxu0 0.0
      %4766 = vmatpush1.msra.mxu0 %v4663
      %4767 = vmatprep.subr.mxu0 0.0
      %4768 = vmatpush1.msra.mxu0 %v4664
      %4769 = vmatprep.subr.mxu0 0.0
      %4770 = vmatpush1.msra.mxu0 %v4665
      %4771 = vmatprep.subr.mxu0 0.0
      %4772 = vmatpush1.msra.mxu0 %v4666
      %4773 = vmatprep.subr.mxu0 0.0
      %4774 = vmatpush1.msra.mxu0 %v4667
      %4775 = vmatprep.subr.mxu0 0.0
      %4776 = vmatpush1.msra.mxu0 %v4668
      %4777 = vmatprep.subr.mxu0 0.0
      %4778 = vmatpush1.msra.mxu0 %v4669
      %4779 = vmatprep.subr.mxu0 0.0
      %4780 = vmatpush1.msra.mxu0 %v4670
      %4781 = vmatprep.subr.mxu0 0.0
      %4782 = vmatpush1.msra.mxu0 %v4671
      %4783 = vmatprep.subr.mxu0 0.0
      %4784 = vmatpush1.msra.mxu0 %v4672
      %4785 = vmatprep.subr.mxu0 0.0
      %4786 = vmatpush1.msra.mxu0 %v4673
      %4787 = vmatprep.subr.mxu0 0.0
      %4788 = vmatpush1.msra.mxu0 %v4674
      %4789 = vmatprep.subr.mxu0 0.0
      %4790 = vmatpush1.msra.mxu0 0.0
      %4791 = vmatprep.subr.mxu0 0.0
      %4792 = vmatpush1.msra.mxu0 0.0
      %4793 = vmatprep.subr.mxu0 0.0
      %4794 = vmatpush1.msra.mxu0 0.0
      %4795 = vmatprep.subr.mxu0 0.0
      %4796 = vmatpush1.msra.mxu0 0.0
      %4797 = vmatprep.subr.mxu0 0.0
      %4798 = vmatpush1.msra.mxu0 0.0
      %4799 = vmatprep.subr.mxu0 0.0
      %4800 = vmatpush1.msra.mxu0 0.0
      %4801 = vmatprep.subr.mxu0 0.0
      %4802 = vmatpush1.msra.mxu0 0.0
      %4803 = vmatprep.subr.mxu0 0.0
      %4804 = vmatpush1.msra.mxu0 0.0
      %4805 = vmatprep.subr.mxu0 0.0
      %4806 = vmatpush1.msra.mxu0 0.0
      %4807 = vmatprep.subr.mxu0 0.0
      %4808 = vmatpush1.msra.mxu0 0.0
      %4809 = vmatprep.subr.mxu0 0.0
      %4810 = vmatpush1.msra.mxu0 0.0
      %4811 = vmatprep.subr.mxu0 0.0
      %4812 = vmatpush1.msra.mxu0 0.0
      %4813 = vmatprep.subr.mxu0 0.0
      %4814 = vmatpush1.msra.mxu0 0.0
      %4815 = vmatprep.subr.mxu0 0.0
      %4816 = vmatpush1.msra.mxu0 0.0
      %4817 = vmatprep.subr.mxu0 0.0
      %4818 = vmatpush1.msra.mxu0 0.0
      %4819 = vmatprep.subr.mxu0 0.0
      %4820 = vmatpush1.msra.mxu0 0.0
      %4821 = vmatprep.subr.mxu0 0.0
      %4822 = vmatpush1.msra.mxu0 0.0
      %4823 = vmatprep.subr.mxu0 0.0
      %4824 = vmatpush1.msra.mxu0 0.0
      %4825 = vmatprep.subr.mxu0 0.0
      %4826 = vmatpush1.msra.mxu0 0.0
      %4827 = vmatprep.subr.mxu0 0.0
      %4828 = vmatpush1.msra.mxu0 0.0
      %4829 = vmatprep.mubr.f32.mxu0 0.0
      %4830 = vmatmul.mubr.f32.gmra.mrb[0].mxu0 %v4763
      %v4831 = vpop.f32.mrb[0].mxu0
      %v4832 = vadd.f32 %v4686, %v4831
      %v4833 = vpop.f32.mrb[0].mxu0
      %4834 = vdwg.mxu0
      %vm4835 = vcmask 7168
      %4836 = vst.msk [vmem:[%s674] sm:$0xff] %vm4835, %v4759
      %4837 = vst.msk [vmem:[%s674 + $0x8] sm:$0xff] %vm4835, %v4832
      %s4838 = smul.u32 2, %s24
      %p4839 = scmp.lt.s32.totalorder %s4838, 3
      %s4840 = scalar_select %p4839, %s4838, 3
      %s4841 = smul.addr %s4840, 8
      %s4842 = scalar_lea.vmem %s13, %s4841
      // Predicated region
      $region73: #{dora_forward.1} parent=71 // pred_check
        %p4843 = pneg %p380
      $region74: #{dora_forward.1} parent=71 // pred_check_branch
        %4845 = sbr.rel (%p4843) target = $region76
      $region75: #{dora_forward.1} parent=71 // pred_region
        %s4846 = smul.u32 2, %s24
      $region76: #{dora_forward.1} parent=71 // pred_fallthru
        _
    $region72: #{dora_forward.1} parent=5 // pred_fallthru
      _
    %p4847 = scmp.le.s32.totalorder 2, %s19
    // Predicated region
    $region77: #{dora_forward.1} parent=5 // pred_check
      %p4848 = pneg %p4847
    $region78: #{dora_forward.1} parent=5 // pred_check_branch
      %4850 = sbr.rel (%p4848) target = $region80
    $region79: #{dora_forward.1} parent=5 // pred_region
      %s4851 = ssub.s32 %s19, 2
      // Predicated region
      $region81: #{dora_forward.1} parent=79 // pred_check
        %p4852 = pneg %p386
      $region82: #{dora_forward.1} parent=79 // pred_check_branch
        %4854 = sbr.rel (%p4852) target = $region84
      $region83: #{dora_forward.1} parent=79 // pred_region
        %s4855 = smul.u32 2, %s25
        %p4856 = scmp.lt.s32.totalorder %s4855, 3
        %s4857 = scalar_select %p4856, %s4855, 3
        %s4858 = smul.addr %s4857, 8
        %s4859 = scalar_lea.vmem %s13, %s4858
      $region84: #{dora_forward.1} parent=79 // pred_fallthru
        _
    $region80: #{dora_forward.1} parent=5 // pred_fallthru
      _
  $region6: #{dora_forward.1} parent=0 // loop_footer
    %s23 = sadd.s32 1, %s19
  $region7: #{dora_forward.1} parent=0 // loop_footer_branch
    %18 = sbr.rel target = $region3
  $region8: #{dora_forward.1} parent=0 // loop_exit
    _

</llo_original>
